<compile_context>
chip_gen: v6e
topology: v6e:2x2x1
jax: 0.10.0
libtpu: 0.0.40
codegen_flags: <defaults>
</compile_context>

<pallas_src>
import jax
import jax.numpy as jnp
from jax import lax
from jax.experimental import pallas as pl
from jax.experimental.pallas import tpu as pltpu


def _fcn_head_kernel(x_ref, top_ref, bot_ref, w1_ref, b1_ref, w2_ref, b2_ref,
                     o_ref, xtile_ref):
    """One (sample, row-tile) block.

    x_ref    : (1, TH, W, C)      bf16  row tile of the input (NHWC)
    top_ref  : (1, 1, 1, W, C)    bf16  row just above the tile (zeros at border)
    bot_ref  : (1, 1, 1, W, C)    bf16  row just below the tile (zeros at border)
    w1_ref   : (9, C, Cinter)     bf16  3x3 conv weights (BN folded), tap-major
    b1_ref   : (1, Cinter)        f32   folded BN bias
    w2_ref   : (Cinter, Cout)     f32   1x1 conv weights
    b2_ref   : (1, Cout)          f32   1x1 conv bias
    o_ref    : (1, 1, TH*W, Cout) f32
    xtile_ref: (TH+2, W+2, C)     bf16  VMEM scratch: zero-padded halo'd tile
    """
    THp2, Wp2, C = xtile_ref.shape
    TH, W = THp2 - 2, Wp2 - 2
    Cinter = w1_ref.shape[2]

    # Assemble the zero-padded (TH+2, W+2, C) tile in VMEM (channels on lanes).
    zcol = jnp.zeros((THp2, 1, C), xtile_ref.dtype)
    xtile_ref[:, 0:1, :] = zcol                        # left pad column
    xtile_ref[:, Wp2 - 1:Wp2, :] = zcol                # right pad column
    xtile_ref[1:TH + 1, 1:W + 1, :] = x_ref[0]
    xtile_ref[0:1, 1:W + 1, :] = top_ref[0, 0]
    xtile_ref[TH + 1:TH + 2, 1:W + 1, :] = bot_ref[0, 0]

    # 3x3 conv (+ folded BN) as 9 shifted sub-matmuls with f32 accumulation.
    # Tap shifts are row/sublane slices (lanes = C stay dense); the
    # (TH, W, C) -> (TH*W, C) flatten only collapses leading dims.
    acc = jnp.zeros((TH * W, Cinter), jnp.float32)
    for idx in range(9):
        ky, kx = idx // 3, idx % 3
        tap = xtile_ref[ky:ky + TH, kx:kx + W, :].reshape(TH * W, C)
        acc = acc + jnp.dot(tap, w1_ref[idx],
                            preferred_element_type=jnp.float32)

    h = jnp.maximum(acc + b1_ref[...], 0.0)            # bias + ReLU (VPU, f32)

    # Dropout(0.2) is identity in eval mode.
    # 1x1 conv with bias.  Contraction depth is tiny (Cinter); kept as one MXU dot
    # since the kernel is HBM-bound and this pass hides under the input DMA.
    y = jnp.dot(h, w2_ref[...], preferred_element_type=jnp.float32)
    o_ref[0, 0] = y + b2_ref[...]


def _pick_row_tile(H, W):
    """Row tile: a multiple of 8 that divides H, targeting >= 512 pixels per block
    (feeds the pipeline / keeps VMEM small); falls back to the smallest tile / H."""
    cands = [t for t in range(8, H + 1, 8) if H % t == 0]
    if not cands:
        return H
    for t in cands:
        if t * W >= 512:
            return t
    return cands[0]


def fold_bn(w4, gamma, beta, mean, var, eps=1e-5):
    """Fold eval-mode BatchNorm into the (bias-free) 3x3 conv weight + per-ch bias."""
    s = gamma / jnp.sqrt(var + eps)
    wf = w4 * s.reshape(-1, 1, 1, 1)
    bf = beta - mean * s
    return wf.astype(jnp.float32), bf.astype(jnp.float32)


@jax.jit
def fcn_head_forward(x, params):
    """x: (N, Cin, H, W) f32 (NCHW, matching the PyTorch module interface)."""
    N, C, H, W = x.shape
    w1 = params['w1']                     # (9, Cin, Cinter) bf16, BN folded
    b1 = params['b1']                     # (1, Cinter) f32
    w2 = params['w2']                     # (Cinter, Cout) f32
    b2 = params['b2']                     # (1, Cout) f32
    Cinter = w1.shape[2]
    Cout = w2.shape[1]

    TH = _pick_row_tile(H, W)
    HB = H // TH

    # Layout plumbing (a real pipeline would keep NHWC/bf16 end-to-end):
    # channels-last + bf16 halves the dominant HBM read of the kernel.
    xh = x.astype(jnp.bfloat16).transpose(0, 2, 3, 1)          # (N, H, W, C)

    # Halo rows: the row just above / below each row tile (zeros at the border).
    # Tiny side inputs (2/TH of x) so plain BlockSpecs handle the 3x3 halo.
    xp = jnp.pad(xh, ((0, 0), (1, 1), (0, 0), (0, 0)))         # (N, H+2, W, C)
    top = xp[:, 0:H - TH + 1:TH][:, :, None, :, :]             # (N, HB, 1, W, C)
    bot = xp[:, TH + 1:H + 2:TH][:, :, None, :, :]             # (N, HB, 1, W, C)

    out = pl.pallas_call(
        _fcn_head_kernel,
        out_shape=jax.ShapeDtypeStruct((N, HB, TH * W, Cout), jnp.float32),
        grid=(N, HB),
        in_specs=[
            pl.BlockSpec((1, TH, W, C), lambda n, h: (n, h, 0, 0)),
            pl.BlockSpec((1, 1, 1, W, C), lambda n, h: (n, h, 0, 0, 0)),
            pl.BlockSpec((1, 1, 1, W, C), lambda n, h: (n, h, 0, 0, 0)),
            pl.BlockSpec((9, C, Cinter), lambda n, h: (0, 0, 0)),
            pl.BlockSpec((1, Cinter), lambda n, h: (0, 0)),
            pl.BlockSpec((Cinter, Cout), lambda n, h: (0, 0)),
            pl.BlockSpec((1, Cout), lambda n, h: (0, 0)),
        ],
        out_specs=pl.BlockSpec((1, 1, TH * W, Cout), lambda n, h: (n, h, 0, 0)),
        scratch_shapes=[pltpu.VMEM((TH + 2, W + 2, C), jnp.bfloat16)],
        compiler_params=pltpu.CompilerParams(
            dimension_semantics=("parallel", "parallel"),
            vmem_limit_bytes=32 * 1024 * 1024),
    )(xh, top, bot, w1, b1, w2, b2)

    # (N, HB, TH*W, Cout) -> (N, Cout, H, W)   (layout plumbing in the wrapper)
    out = out.reshape(N, HB, TH, W, Cout).transpose(0, 4, 1, 2, 3)
    return out.reshape(N, Cout, H, W)


# ------------------------- pure-JAX reference --------------------------------
def ref_forward(x, w1_4d, b1, w2, b2):
    """Reference. The 3x3 conv operands are cast to bf16 (then back to f32) to match
    the kernel's MXU operand dtype; accumulation stays f32."""
    dn = ('NCHW', 'OIHW', 'NCHW')
    xr = x.astype(jnp.bfloat16).astype(jnp.float32)
    wr = w1_4d.astype(jnp.bfloat16).astype(jnp.float32)
    y = lax.conv_general_dilated(xr, wr, (1, 1), [(1, 1), (1, 1)],
                                 dimension_numbers=dn,
                                 precision=lax.Precision.HIGHEST)
    y = jnp.maximum(y + b1.reshape(1, -1, 1, 1), 0.0)
    y = lax.conv_general_dilated(y, w2[:, :, None, None], (1, 1),
                                 [(0, 0), (0, 0)], dimension_numbers=dn,
                                 precision=lax.Precision.HIGHEST)
    return y + b2.reshape(1, -1, 1, 1)


if __name__ == "__main__":
    key = jax.random.PRNGKey(0)
    N, Cin, H, W = 2, 16, 16, 16          # in_channels=16 -> inter_channels=4
    Cout = 4
    Cinter = Cin // 4

    ks = jax.random.split(key, 8)
    x = jax.random.normal(ks[0], (N, Cin, H, W), jnp.float32)

    w1_raw = jax.random.normal(ks[1], (Cinter, Cin, 3, 3), jnp.float32) * 0.2
    gamma = jax.random.uniform(ks[2], (Cinter,), jnp.float32, 0.5, 1.5)
    beta = jax.random.normal(ks[3], (Cinter,), jnp.float32) * 0.1
    mean = jax.random.normal(ks[4], (Cinter,), jnp.float32) * 0.1
    var = jax.random.uniform(ks[5], (Cinter,), jnp.float32, 0.5, 1.5)
    w2_raw = jax.random.normal(ks[6], (Cout, Cinter), jnp.float32) * 0.2
    b2_raw = jax.random.normal(ks[7], (Cout,), jnp.float32) * 0.1

    w1_folded, b1_folded = fold_bn(w1_raw, gamma, beta, mean, var)

    params = {
        # tap-major (ky*3+kx, Cin, Cinter): each tap is one (C, Cinter) matmul rhs.
        'w1': (w1_folded.transpose(2, 3, 1, 0)
               .reshape(9, Cin, Cinter).astype(jnp.bfloat16)),
        'b1': b1_folded.reshape(1, Cinter),
        'w2': w2_raw.T.astype(jnp.float32),            # (Cinter, Cout)
        'b2': b2_raw.reshape(1, Cout),
    }

    out = jax.block_until_ready(fcn_head_forward(x, params))
    ref = jax.block_until_ready(ref_forward(x, w1_folded, b1_folded,
                                            w2_raw, b2_raw))

    assert out.shape == (N, Cout, H, W), out.shape
    err = float(jnp.max(jnp.abs(out - ref)))
    assert jnp.allclose(out, ref, atol=2e-3, rtol=2e-3), err
    print("KERNEL_OK")
</pallas_src>

<mosaic_0001>
module attributes {stable_mosaic.version = 11 : i64} {
  func.func @_fcn_head_kernel(%arg0: i32, %arg1: i32, %arg2: memref<1x8x16x16xbf16, #tpu.memory_space<vmem>>, %arg3: memref<1x1x1x16x16xbf16, #tpu.memory_space<vmem>>, %arg4: memref<1x1x1x16x16xbf16, #tpu.memory_space<vmem>>, %arg5: memref<9x16x4xbf16, #tpu.memory_space<vmem>>, %arg6: memref<1x4xf32, #tpu.memory_space<vmem>>, %arg7: memref<4x4xf32, #tpu.memory_space<vmem>>, %arg8: memref<1x4xf32, #tpu.memory_space<vmem>>, %arg9: memref<1x1x128x4xf32, #tpu.memory_space<vmem>>, %arg10: memref<10x18x16xbf16, #tpu.memory_space<vmem>>) attributes {dimension_semantics = [#tpu.dimension_semantics<parallel>, #tpu.dimension_semantics<parallel>], iteration_bounds = array<i64: 2, 2>, scalar_prefetch = 0 : i64, scratch_operands = 1 : i64, tpu.core_type = #tpu.core_type<tc>, window_params = [{transform_indices = @transform_0, window_bounds = array<i64: 1, 8, 16, 16>}, {transform_indices = @transform_1, window_bounds = array<i64: 1, 1, 1, 16, 16>}, {transform_indices = @transform_2, window_bounds = array<i64: 1, 1, 1, 16, 16>}, {pipeline_mode = #tpu.pipeline_mode<synchronous>, transform_indices = @transform_3, window_bounds = array<i64: 9, 16, 4>}, {pipeline_mode = #tpu.pipeline_mode<synchronous>, transform_indices = @transform_4, window_bounds = array<i64: 1, 4>}, {pipeline_mode = #tpu.pipeline_mode<synchronous>, transform_indices = @transform_5, window_bounds = array<i64: 4, 4>}, {pipeline_mode = #tpu.pipeline_mode<synchronous>, transform_indices = @transform_6, window_bounds = array<i64: 1, 4>}, {transform_indices = @transform_7, window_bounds = array<i64: 1, 1, 128, 4>}]} {
    %cst = arith.constant 0.000000e+00 : bf16
    %0 = vector.broadcast %cst : bf16 to vector<10x1x16xbf16>
    %c0 = arith.constant 0 : index
    %c0_0 = arith.constant 0 : index
    %c0_1 = arith.constant 0 : index
    %1 = vector.load %arg10[%c0, %c0_0, %c0_1] : memref<10x18x16xbf16, #tpu.memory_space<vmem>>, vector<10x1x16xbf16>
    tpu.vector_store %arg10[%c0, %c0_0, %c0_1], %0 {strides = array<i32>} : memref<10x18x16xbf16, #tpu.memory_space<vmem>>, vector<10x1x16xbf16>,
    %c0_2 = arith.constant 0 : index
    %c17 = arith.constant 17 : index
    %c0_3 = arith.constant 0 : index
    %2 = vector.load %arg10[%c0_2, %c17, %c0_3] : memref<10x18x16xbf16, #tpu.memory_space<vmem>>, vector<10x1x16xbf16>
    tpu.vector_store %arg10[%c0_2, %c17, %c0_3], %0 {strides = array<i32>} : memref<10x18x16xbf16, #tpu.memory_space<vmem>>, vector<10x1x16xbf16>,
    %c0_4 = arith.constant 0 : index
    %c0_5 = arith.constant 0 : index
    %c0_6 = arith.constant 0 : index
    %c0_7 = arith.constant 0 : index
    %3 = vector.load %arg2[%c0_4, %c0_5, %c0_6, %c0_7] : memref<1x8x16x16xbf16, #tpu.memory_space<vmem>>, vector<1x8x16x16xbf16>
    %4 = vector.shape_cast %3 : vector<1x8x16x16xbf16> to vector<8x16x16xbf16>
    %c1 = arith.constant 1 : index
    %c1_8 = arith.constant 1 : index
    %c0_9 = arith.constant 0 : index
    %5 = vector.load %arg10[%c1, %c1_8, %c0_9] : memref<10x18x16xbf16, #tpu.memory_space<vmem>>, vector<8x16x16xbf16>
    tpu.vector_store %arg10[%c1, %c1_8, %c0_9], %4 {strides = array<i32>} : memref<10x18x16xbf16, #tpu.memory_space<vmem>>, vector<8x16x16xbf16>,
    %c0_10 = arith.constant 0 : index
    %c0_11 = arith.constant 0 : index
    %c0_12 = arith.constant 0 : index
    %c0_13 = arith.constant 0 : index
    %c0_14 = arith.constant 0 : index
    %6 = vector.load %arg3[%c0_10, %c0_11, %c0_12, %c0_13, %c0_14] : memref<1x1x1x16x16xbf16, #tpu.memory_space<vmem>>, vector<1x1x1x16x16xbf16>
    %7 = vector.shape_cast %6 : vector<1x1x1x16x16xbf16> to vector<1x16x16xbf16>
    %c0_15 = arith.constant 0 : index
    %c1_16 = arith.constant 1 : index
    %c0_17 = arith.constant 0 : index
    %8 = vector.load %arg10[%c0_15, %c1_16, %c0_17] : memref<10x18x16xbf16, #tpu.memory_space<vmem>>, vector<1x16x16xbf16>
    tpu.vector_store %arg10[%c0_15, %c1_16, %c0_17], %7 {strides = array<i32>} : memref<10x18x16xbf16, #tpu.memory_space<vmem>>, vector<1x16x16xbf16>,
    %c0_18 = arith.constant 0 : index
    %c0_19 = arith.constant 0 : index
    %c0_20 = arith.constant 0 : index
    %c0_21 = arith.constant 0 : index
    %c0_22 = arith.constant 0 : index
    %9 = vector.load %arg4[%c0_18, %c0_19, %c0_20, %c0_21, %c0_22] : memref<1x1x1x16x16xbf16, #tpu.memory_space<vmem>>, vector<1x1x1x16x16xbf16>
    %10 = vector.shape_cast %9 : vector<1x1x1x16x16xbf16> to vector<1x16x16xbf16>
    %c9 = arith.constant 9 : index
    %c1_23 = arith.constant 1 : index
    %c0_24 = arith.constant 0 : index
    %11 = vector.load %arg10[%c9, %c1_23, %c0_24] : memref<10x18x16xbf16, #tpu.memory_space<vmem>>, vector<1x16x16xbf16>
    tpu.vector_store %arg10[%c9, %c1_23, %c0_24], %10 {strides = array<i32>} : memref<10x18x16xbf16, #tpu.memory_space<vmem>>, vector<1x16x16xbf16>,
    %cst_25 = arith.constant 0.000000e+00 : f32
    %12 = vector.broadcast %cst_25 : f32 to vector<128x4xf32>
    %c0_26 = arith.constant 0 : index
    %c0_27 = arith.constant 0 : index
    %c0_28 = arith.constant 0 : index
    %13 = vector.load %arg10[%c0_26, %c0_27, %c0_28] : memref<10x18x16xbf16, #tpu.memory_space<vmem>>, vector<8x16x16xbf16>
    %14 = vector.shape_cast %13 : vector<8x16x16xbf16> to vector<128x16xbf16>
    %c0_29 = arith.constant 0 : index
    %c0_30 = arith.constant 0 : index
    %c0_31 = arith.constant 0 : index
    %15 = vector.load %arg5[%c0_29, %c0_30, %c0_31] : memref<9x16x4xbf16, #tpu.memory_space<vmem>>, vector<1x16x4xbf16>
    %16 = vector.shape_cast %15 : vector<1x16x4xbf16> to vector<16x4xbf16>
    %cst_32 = arith.constant dense<0.000000e+00> : vector<128x4xf32>
    %17 = tpu.matmul %14, %16, %cst_32 {dimension_numbers = #tpu.dot_dimension_numbers<[1], [0], [0], [1], [0, 0, 1, 1], [], []>} : vector<128x16xbf16>, vector<16x4xbf16>, vector<128x4xf32> -> vector<128x4xf32>
    %18 = arith.addf %12, %17 : vector<128x4xf32>
    %c0_33 = arith.constant 0 : index
    %c1_34 = arith.constant 1 : index
    %c0_35 = arith.constant 0 : index
    %19 = vector.load %arg10[%c0_33, %c1_34, %c0_35] : memref<10x18x16xbf16, #tpu.memory_space<vmem>>, vector<8x16x16xbf16>
    %20 = vector.shape_cast %19 : vector<8x16x16xbf16> to vector<128x16xbf16>
    %c1_36 = arith.constant 1 : index
    %c0_37 = arith.constant 0 : index
    %c0_38 = arith.constant 0 : index
    %21 = vector.load %arg5[%c1_36, %c0_37, %c0_38] : memref<9x16x4xbf16, #tpu.memory_space<vmem>>, vector<1x16x4xbf16>
    %22 = vector.shape_cast %21 : vector<1x16x4xbf16> to vector<16x4xbf16>
    %cst_39 = arith.constant dense<0.000000e+00> : vector<128x4xf32>
    %23 = tpu.matmul %20, %22, %cst_39 {dimension_numbers = #tpu.dot_dimension_numbers<[1], [0], [0], [1], [0, 0, 1, 1], [], []>} : vector<128x16xbf16>, vector<16x4xbf16>, vector<128x4xf32> -> vector<128x4xf32>
    %24 = arith.addf %18, %23 : vector<128x4xf32>
    %c0_40 = arith.constant 0 : index
    %c2 = arith.constant 2 : index
    %c0_41 = arith.constant 0 : index
    %25 = vector.load %arg10[%c0_40, %c2, %c0_41] : memref<10x18x16xbf16, #tpu.memory_space<vmem>>, vector<8x16x16xbf16>
    %26 = vector.shape_cast %25 : vector<8x16x16xbf16> to vector<128x16xbf16>
    %c2_42 = arith.constant 2 : index
    %c0_43 = arith.constant 0 : index
    %c0_44 = arith.constant 0 : index
    %27 = vector.load %arg5[%c2_42, %c0_43, %c0_44] : memref<9x16x4xbf16, #tpu.memory_space<vmem>>, vector<1x16x4xbf16>
    %28 = vector.shape_cast %27 : vector<1x16x4xbf16> to vector<16x4xbf16>
    %cst_45 = arith.constant dense<0.000000e+00> : vector<128x4xf32>
    %29 = tpu.matmul %26, %28, %cst_45 {dimension_numbers = #tpu.dot_dimension_numbers<[1], [0], [0], [1], [0, 0, 1, 1], [], []>} : vector<128x16xbf16>, vector<16x4xbf16>, vector<128x4xf32> -> vector<128x4xf32>
    %30 = arith.addf %24, %29 : vector<128x4xf32>
    %c1_46 = arith.constant 1 : index
    %c0_47 = arith.constant 0 : index
    %c0_48 = arith.constant 0 : index
    %31 = vector.load %arg10[%c1_46, %c0_47, %c0_48] : memref<10x18x16xbf16, #tpu.memory_space<vmem>>, vector<8x16x16xbf16>
    %32 = vector.shape_cast %31 : vector<8x16x16xbf16> to vector<128x16xbf16>
    %c3 = arith.constant 3 : index
    %c0_49 = arith.constant 0 : index
    %c0_50 = arith.constant 0 : index
    %33 = vector.load %arg5[%c3, %c0_49, %c0_50] : memref<9x16x4xbf16, #tpu.memory_space<vmem>>, vector<1x16x4xbf16>
    %34 = vector.shape_cast %33 : vector<1x16x4xbf16> to vector<16x4xbf16>
    %cst_51 = arith.constant dense<0.000000e+00> : vector<128x4xf32>
    %35 = tpu.matmul %32, %34, %cst_51 {dimension_numbers = #tpu.dot_dimension_numbers<[1], [0], [0], [1], [0, 0, 1, 1], [], []>} : vector<128x16xbf16>, vector<16x4xbf16>, vector<128x4xf32> -> vector<128x4xf32>
    %36 = arith.addf %30, %35 : vector<128x4xf32>
    %c1_52 = arith.constant 1 : index
    %c1_53 = arith.constant 1 : index
    %c0_54 = arith.constant 0 : index
    %37 = vector.load %arg10[%c1_52, %c1_53, %c0_54] : memref<10x18x16xbf16, #tpu.memory_space<vmem>>, vector<8x16x16xbf16>
    %38 = vector.shape_cast %37 : vector<8x16x16xbf16> to vector<128x16xbf16>
    %c4 = arith.constant 4 : index
    %c0_55 = arith.constant 0 : index
    %c0_56 = arith.constant 0 : index
    %39 = vector.load %arg5[%c4, %c0_55, %c0_56] : memref<9x16x4xbf16, #tpu.memory_space<vmem>>, vector<1x16x4xbf16>
    %40 = vector.shape_cast %39 : vector<1x16x4xbf16> to vector<16x4xbf16>
    %cst_57 = arith.constant dense<0.000000e+00> : vector<128x4xf32>
    %41 = tpu.matmul %38, %40, %cst_57 {dimension_numbers = #tpu.dot_dimension_numbers<[1], [0], [0], [1], [0, 0, 1, 1], [], []>} : vector<128x16xbf16>, vector<16x4xbf16>, vector<128x4xf32> -> vector<128x4xf32>
    %42 = arith.addf %36, %41 : vector<128x4xf32>
    %c1_58 = arith.constant 1 : index
    %c2_59 = arith.constant 2 : index
    %c0_60 = arith.constant 0 : index
    %43 = vector.load %arg10[%c1_58, %c2_59, %c0_60] : memref<10x18x16xbf16, #tpu.memory_space<vmem>>, vector<8x16x16xbf16>
    %44 = vector.shape_cast %43 : vector<8x16x16xbf16> to vector<128x16xbf16>
    %c5 = arith.constant 5 : index
    %c0_61 = arith.constant 0 : index
    %c0_62 = arith.constant 0 : index
    %45 = vector.load %arg5[%c5, %c0_61, %c0_62] : memref<9x16x4xbf16, #tpu.memory_space<vmem>>, vector<1x16x4xbf16>
    %46 = vector.shape_cast %45 : vector<1x16x4xbf16> to vector<16x4xbf16>
    %cst_63 = arith.constant dense<0.000000e+00> : vector<128x4xf32>
    %47 = tpu.matmul %44, %46, %cst_63 {dimension_numbers = #tpu.dot_dimension_numbers<[1], [0], [0], [1], [0, 0, 1, 1], [], []>} : vector<128x16xbf16>, vector<16x4xbf16>, vector<128x4xf32> -> vector<128x4xf32>
    %48 = arith.addf %42, %47 : vector<128x4xf32>
    %c2_64 = arith.constant 2 : index
    %c0_65 = arith.constant 0 : index
    %c0_66 = arith.constant 0 : index
    %49 = vector.load %arg10[%c2_64, %c0_65, %c0_66] : memref<10x18x16xbf16, #tpu.memory_space<vmem>>, vector<8x16x16xbf16>
    %50 = vector.shape_cast %49 : vector<8x16x16xbf16> to vector<128x16xbf16>
    %c6 = arith.constant 6 : index
    %c0_67 = arith.constant 0 : index
    %c0_68 = arith.constant 0 : index
    %51 = vector.load %arg5[%c6, %c0_67, %c0_68] : memref<9x16x4xbf16, #tpu.memory_space<vmem>>, vector<1x16x4xbf16>
    %52 = vector.shape_cast %51 : vector<1x16x4xbf16> to vector<16x4xbf16>
    %cst_69 = arith.constant dense<0.000000e+00> : vector<128x4xf32>
    %53 = tpu.matmul %50, %52, %cst_69 {dimension_numbers = #tpu.dot_dimension_numbers<[1], [0], [0], [1], [0, 0, 1, 1], [], []>} : vector<128x16xbf16>, vector<16x4xbf16>, vector<128x4xf32> -> vector<128x4xf32>
    %54 = arith.addf %48, %53 : vector<128x4xf32>
    %c2_70 = arith.constant 2 : index
    %c1_71 = arith.constant 1 : index
    %c0_72 = arith.constant 0 : index
    %55 = vector.load %arg10[%c2_70, %c1_71, %c0_72] : memref<10x18x16xbf16, #tpu.memory_space<vmem>>, vector<8x16x16xbf16>
    %56 = vector.shape_cast %55 : vector<8x16x16xbf16> to vector<128x16xbf16>
    %c7 = arith.constant 7 : index
    %c0_73 = arith.constant 0 : index
    %c0_74 = arith.constant 0 : index
    %57 = vector.load %arg5[%c7, %c0_73, %c0_74] : memref<9x16x4xbf16, #tpu.memory_space<vmem>>, vector<1x16x4xbf16>
    %58 = vector.shape_cast %57 : vector<1x16x4xbf16> to vector<16x4xbf16>
    %cst_75 = arith.constant dense<0.000000e+00> : vector<128x4xf32>
    %59 = tpu.matmul %56, %58, %cst_75 {dimension_numbers = #tpu.dot_dimension_numbers<[1], [0], [0], [1], [0, 0, 1, 1], [], []>} : vector<128x16xbf16>, vector<16x4xbf16>, vector<128x4xf32> -> vector<128x4xf32>
    %60 = arith.addf %54, %59 : vector<128x4xf32>
    %c2_76 = arith.constant 2 : index
    %c2_77 = arith.constant 2 : index
    %c0_78 = arith.constant 0 : index
    %61 = vector.load %arg10[%c2_76, %c2_77, %c0_78] : memref<10x18x16xbf16, #tpu.memory_space<vmem>>, vector<8x16x16xbf16>
    %62 = vector.shape_cast %61 : vector<8x16x16xbf16> to vector<128x16xbf16>
    %c8 = arith.constant 8 : index
    %c0_79 = arith.constant 0 : index
    %c0_80 = arith.constant 0 : index
    %63 = vector.load %arg5[%c8, %c0_79, %c0_80] : memref<9x16x4xbf16, #tpu.memory_space<vmem>>, vector<1x16x4xbf16>
    %64 = vector.shape_cast %63 : vector<1x16x4xbf16> to vector<16x4xbf16>
    %cst_81 = arith.constant dense<0.000000e+00> : vector<128x4xf32>
    %65 = tpu.matmul %62, %64, %cst_81 {dimension_numbers = #tpu.dot_dimension_numbers<[1], [0], [0], [1], [0, 0, 1, 1], [], []>} : vector<128x16xbf16>, vector<16x4xbf16>, vector<128x4xf32> -> vector<128x4xf32>
    %66 = arith.addf %60, %65 : vector<128x4xf32>
    %c0_82 = arith.constant 0 : index
    %c0_83 = arith.constant 0 : index
    %67 = vector.load %arg6[%c0_82, %c0_83] : memref<1x4xf32, #tpu.memory_space<vmem>>, vector<1x4xf32>
    %68 = vector.broadcast %67 : vector<1x4xf32> to vector<128x4xf32>
    %69 = arith.addf %66, %68 : vector<128x4xf32>
    %cst_84 = arith.constant 0.000000e+00 : f32
    %70 = vector.broadcast %cst_84 : f32 to vector<128x4xf32>
    %71 = arith.maximumf %69, %70 : vector<128x4xf32>
    %c0_85 = arith.constant 0 : index
    %c0_86 = arith.constant 0 : index
    %72 = vector.load %arg7[%c0_85, %c0_86] : memref<4x4xf32, #tpu.memory_space<vmem>>, vector<4x4xf32>
    %cst_87 = arith.constant dense<0.000000e+00> : vector<128x4xf32>
    %73 = tpu.matmul %71, %72, %cst_87 {dimension_numbers = #tpu.dot_dimension_numbers<[1], [0], [0], [1], [0, 0, 1, 1], [], []>} : vector<128x4xf32>, vector<4x4xf32>, vector<128x4xf32> -> vector<128x4xf32>
    %c0_88 = arith.constant 0 : index
    %c0_89 = arith.constant 0 : index
    %74 = vector.load %arg8[%c0_88, %c0_89] : memref<1x4xf32, #tpu.memory_space<vmem>>, vector<1x4xf32>
    %75 = vector.broadcast %74 : vector<1x4xf32> to vector<128x4xf32>
    %76 = arith.addf %73, %75 : vector<128x4xf32>
    %c0_90 = arith.constant 0 : index
    %c0_91 = arith.constant 0 : index
    %c0_92 = arith.constant 0 : index
    %c0_93 = arith.constant 0 : index
    %77 = vector.load %arg9[%c0_90, %c0_91, %c0_92, %c0_93] : memref<1x1x128x4xf32, #tpu.memory_space<vmem>>, vector<1x1x128x4xf32>
    %78 = vector.shape_cast %77 : vector<1x1x128x4xf32> to vector<128x4xf32>
    %79 = vector.shape_cast %76 : vector<128x4xf32> to vector<1x1x128x4xf32>
    tpu.vector_store %arg9[%c0_90, %c0_91, %c0_92, %c0_93], %79 {strides = array<i32>} : memref<1x1x128x4xf32, #tpu.memory_space<vmem>>, vector<1x1x128x4xf32>,
    return
  }
  func.func @transform_0(%arg0: i32, %arg1: i32) -> (i32, i32, i32, i32) {
    %c0_i32 = arith.constant 0 : i32
    %c0_i32_0 = arith.constant 0 : i32
    %c0_i32_1 = arith.constant 0 : i32
    return %arg0, %arg1, %c0_i32, %c0_i32_0 : i32, i32, i32, i32
  }
  func.func @transform_1(%arg0: i32, %arg1: i32) -> (i32, i32, i32, i32, i32) {
    %c0_i32 = arith.constant 0 : i32
    %c0_i32_0 = arith.constant 0 : i32
    %c0_i32_1 = arith.constant 0 : i32
    %c0_i32_2 = arith.constant 0 : i32
    return %arg0, %arg1, %c0_i32, %c0_i32_0, %c0_i32_1 : i32, i32, i32, i32, i32
  }
  func.func @transform_2(%arg0: i32, %arg1: i32) -> (i32, i32, i32, i32, i32) {
    %c0_i32 = arith.constant 0 : i32
    %c0_i32_0 = arith.constant 0 : i32
    %c0_i32_1 = arith.constant 0 : i32
    %c0_i32_2 = arith.constant 0 : i32
    return %arg0, %arg1, %c0_i32, %c0_i32_0, %c0_i32_1 : i32, i32, i32, i32, i32
  }
  func.func @transform_3(%arg0: i32, %arg1: i32) -> (i32, i32, i32) {
    %c0_i32 = arith.constant 0 : i32
    %c0_i32_0 = arith.constant 0 : i32
    %c0_i32_1 = arith.constant 0 : i32
    %c0_i32_2 = arith.constant 0 : i32
    return %c0_i32, %c0_i32_0, %c0_i32_1 : i32, i32, i32
  }
  func.func @transform_4(%arg0: i32, %arg1: i32) -> (i32, i32) {
    %c0_i32 = arith.constant 0 : i32
    %c0_i32_0 = arith.constant 0 : i32
    %c0_i32_1 = arith.constant 0 : i32
    return %c0_i32, %c0_i32_0 : i32, i32
  }
  func.func @transform_5(%arg0: i32, %arg1: i32) -> (i32, i32) {
    %c0_i32 = arith.constant 0 : i32
    %c0_i32_0 = arith.constant 0 : i32
    %c0_i32_1 = arith.constant 0 : i32
    return %c0_i32, %c0_i32_0 : i32, i32
  }
  func.func @transform_6(%arg0: i32, %arg1: i32) -> (i32, i32) {
    %c0_i32 = arith.constant 0 : i32
    %c0_i32_0 = arith.constant 0 : i32
    %c0_i32_1 = arith.constant 0 : i32
    return %c0_i32, %c0_i32_0 : i32, i32
  }
  func.func @transform_7(%arg0: i32, %arg1: i32) -> (i32, i32, i32, i32) {
    %c0_i32 = arith.constant 0 : i32
    %c0_i32_0 = arith.constant 0 : i32
    %c0_i32_1 = arith.constant 0 : i32
    return %arg0, %arg1, %c0_i32, %c0_i32_0 : i32, i32, i32, i32
  }
}

</mosaic_0001>

<llo_original>
// kernel: fcn_head_forward.1
$region0: #{fcn_head_forward.1}
  #allocation0 [shape = 'u32[]', space=smem, size = 0x4, offset = 0x4, fixed_abs, tag = 'smem constant byte address 0x4 - core index']
  #allocation1 [shape = 'u32[144,128]{1,0:T(1,128)}', space=vmem, size = 0x12000, scoped, tag = 'internal scratch']
  #allocation2 [shape = 'bf16[10,18,16]{2,1,0:T(8,128)(2,1)}', space=vmem, size = 0xf000, scoped, tag = 'scratch operand']
  %s0 = inlined_call_operand.vmem [shape: bf16[2,16,16,16], index: 0, kind: input, shape index: {}]
  %s1 = inlined_call_operand.vmem [shape: bf16[2,2,1,16,16], index: 1, kind: input, shape index: {}]
  %s2 = inlined_call_operand.vmem [shape: bf16[2,2,1,16,16], index: 2, kind: input, shape index: {}]
  %s3 = inlined_call_operand.vmem [shape: bf16[9,16,4], index: 3, kind: input, shape index: {}]
  %s4 = inlined_call_operand.vmem [shape: f32[1,4], index: 4, kind: input, shape index: {}]
  %s5 = inlined_call_operand.vmem [shape: f32[4,4], index: 5, kind: input, shape index: {}]
  %s6 = inlined_call_operand.vmem [shape: f32[1,4], index: 6, kind: input, shape index: {}]
  %s7 = inlined_call_operand.vmem [shape: f32[2,2,128,4], index: 7, kind: output, shape index: {}]
  %s8 = sld [smem:[#allocation0]]
  $region61: #{fcn_head_forward.1} parent=0
    _
  %s10 = ssub.s32 1, %s8
  %s11 = scalar_select 0, %s10, %s8
  loop: start=0, step=1, limit=6
  $region2: #{fcn_head_forward.1} parent=0 // loop_pre_header
    _
  $region3: #{fcn_head_forward.1} parent=0 // loop_header
    %s13 = sphi 0, %s17
    %p14 = scmp.ge.s32.totalorder %s13, 6
    %s20 = sphi 0, %s32
    %s21 = sphi 0, %s28
    %s22 = sphi 0, %s20
    %s23 = sphi 0, %s21
    %s24 = sphi 0, %s22
    %s25 = sphi 0, %s23
    %s37 = sphi 0, %s39
    %s40 = sphi 0, %s37
    %s41 = sphi 0, %s40
    %s57 = sphi 0, %s41
    %s65 = sphi 0, %s67
    %s68 = sphi 0, %s65
    %s69 = sphi 0, %s68
    %s85 = sphi 0, %s69
    %s93 = sphi 0, %s95
    %s96 = sphi 0, %s93
    %s97 = sphi 0, %s96
    %s113 = sphi 0, %s97
    %s117 = sphi 0, %s117
    %s119 = sphi 0, %s117
    %s120 = sphi 0, %s119
    %s134 = sphi 0, %s120
    %s138 = sphi 0, %s138
    %s140 = sphi 0, %s138
    %s141 = sphi 0, %s140
    %s155 = sphi 0, %s141
    %s159 = sphi 0, %s159
    %s161 = sphi 0, %s159
    %s162 = sphi 0, %s161
    %s176 = sphi 0, %s162
    %s180 = sphi 0, %s180
    %s182 = sphi 0, %s180
    %s183 = sphi 0, %s182
    %s197 = sphi 0, %s183
    %s205 = sphi 0, %s207
    %s208 = sphi 0, %s205
    %s209 = sphi 0, %s208
    %s225 = sphi 0, %s209
  $region4: #{fcn_head_forward.1} parent=0 // loop_header_branch
    %16 = sbr.rel (%p14) target = $region8
  $region5: #{fcn_head_forward.1} parent=0 // loop_body
    %s18 = ssub.s32 %s13, 1
    %s19 = ssub.s32 %s13, 2
    %s26 = sadd.s32 1, %s21
    %p27 = scmp.ge.s32.totalorder %s26, 2
    %s28 = scalar_select %p27, 0, %s26
    %s29 = sadd.s32 1, %s20
    %s30 = scalar_select %p27, %s29, %s20
    %p31 = scmp.ge.s32.totalorder %s30, 2
    %s32 = scalar_select %p31, 0, %s30
    %s33 = ssub.s32 %s20, %s32
    %s34 = ssub.s32 %s21, %s28
    %s35 = sor.u32 %s33, %s34
    %p36 = scmp.eq.s32.totalorder %s35, 0
    %s38 = sadd.s32 %s37, 1
    %s39 = scalar_select %p36, %s37, %s38
    %p42 = pneg %p36
    %p43 = scmp.eq.s32.totalorder %s13, 3
    %p44 = por %p42, %p43
    %p45 = scmp.ne.s32.totalorder %s37, %s40
    %p46 = scmp.eq.s32.totalorder %s13, 0
    %p47 = por %p45, %p46
    %p48 = scmp.ne.s32.totalorder %s37, %s40
    %p49 = scmp.eq.s32.totalorder %s18, 3
    %p50 = por %p48, %p49
    %p51 = scmp.ne.s32.totalorder %s40, %s41
    %p52 = scmp.eq.s32.totalorder %s18, 0
    %p53 = por %p51, %p52
    %p54 = scmp.ne.s32.totalorder %s40, %s41
    %p55 = scmp.eq.s32.totalorder %s19, 3
    %p56 = por %p54, %p55
    %p58 = scmp.ne.s32.totalorder %s41, %s57
    %p59 = scmp.eq.s32.totalorder %s19, 0
    %p60 = por %p58, %p59
    %s61 = ssub.s32 %s20, %s32
    %s62 = ssub.s32 %s21, %s28
    %s63 = sor.u32 %s61, %s62
    %p64 = scmp.eq.s32.totalorder %s63, 0
    %s66 = sadd.s32 %s65, 1
    %s67 = scalar_select %p64, %s65, %s66
    %p70 = pneg %p64
    %p71 = scmp.eq.s32.totalorder %s13, 3
    %p72 = por %p70, %p71
    %p73 = scmp.ne.s32.totalorder %s65, %s68
    %p74 = scmp.eq.s32.totalorder %s13, 0
    %p75 = por %p73, %p74
    %p76 = scmp.ne.s32.totalorder %s65, %s68
    %p77 = scmp.eq.s32.totalorder %s18, 3
    %p78 = por %p76, %p77
    %p79 = scmp.ne.s32.totalorder %s68, %s69
    %p80 = scmp.eq.s32.totalorder %s18, 0
    %p81 = por %p79, %p80
    %p82 = scmp.ne.s32.totalorder %s68, %s69
    %p83 = scmp.eq.s32.totalorder %s19, 3
    %p84 = por %p82, %p83
    %p86 = scmp.ne.s32.totalorder %s69, %s85
    %p87 = scmp.eq.s32.totalorder %s19, 0
    %p88 = por %p86, %p87
    %s89 = ssub.s32 %s20, %s32
    %s90 = ssub.s32 %s21, %s28
    %s91 = sor.u32 %s89, %s90
    %p92 = scmp.eq.s32.totalorder %s91, 0
    %s94 = sadd.s32 %s93, 1
    %s95 = scalar_select %p92, %s93, %s94
    %p98 = pneg %p92
    %p99 = scmp.eq.s32.totalorder %s13, 3
    %p100 = por %p98, %p99
    %p101 = scmp.ne.s32.totalorder %s93, %s96
    %p102 = scmp.eq.s32.totalorder %s13, 0
    %p103 = por %p101, %p102
    %p104 = scmp.ne.s32.totalorder %s93, %s96
    %p105 = scmp.eq.s32.totalorder %s18, 3
    %p106 = por %p104, %p105
    %p107 = scmp.ne.s32.totalorder %s96, %s97
    %p108 = scmp.eq.s32.totalorder %s18, 0
    %p109 = por %p107, %p108
    %p110 = scmp.ne.s32.totalorder %s96, %s97
    %p111 = scmp.eq.s32.totalorder %s19, 3
    %p112 = por %p110, %p111
    %p114 = scmp.ne.s32.totalorder %s97, %s113
    %p115 = scmp.eq.s32.totalorder %s19, 0
    %p116 = por %p114, %p115
    %s118 = sadd.s32 %s117, 1
    %p121 = scmp.eq.s32.totalorder %s13, 3
    %p122 = scmp.ne.s32.totalorder %s117, %s119
    %p123 = scmp.eq.s32.totalorder %s13, 0
    %p124 = por %p122, %p123
    %p125 = scmp.ne.s32.totalorder %s117, %s119
    %p126 = scmp.eq.s32.totalorder %s18, 3
    %p127 = por %p125, %p126
    %p128 = scmp.ne.s32.totalorder %s119, %s120
    %p129 = scmp.eq.s32.totalorder %s18, 0
    %p130 = por %p128, %p129
    %p131 = scmp.ne.s32.totalorder %s119, %s120
    %p132 = scmp.eq.s32.totalorder %s19, 3
    %p133 = por %p131, %p132
    %p135 = scmp.ne.s32.totalorder %s120, %s134
    %p136 = scmp.eq.s32.totalorder %s19, 0
    %p137 = por %p135, %p136
    %s139 = sadd.s32 %s138, 1
    %p142 = scmp.eq.s32.totalorder %s13, 3
    %p143 = scmp.ne.s32.totalorder %s138, %s140
    %p144 = scmp.eq.s32.totalorder %s13, 0
    %p145 = por %p143, %p144
    %p146 = scmp.ne.s32.totalorder %s138, %s140
    %p147 = scmp.eq.s32.totalorder %s18, 3
    %p148 = por %p146, %p147
    %p149 = scmp.ne.s32.totalorder %s140, %s141
    %p150 = scmp.eq.s32.totalorder %s18, 0
    %p151 = por %p149, %p150
    %p152 = scmp.ne.s32.totalorder %s140, %s141
    %p153 = scmp.eq.s32.totalorder %s19, 3
    %p154 = por %p152, %p153
    %p156 = scmp.ne.s32.totalorder %s141, %s155
    %p157 = scmp.eq.s32.totalorder %s19, 0
    %p158 = por %p156, %p157
    %s160 = sadd.s32 %s159, 1
    %p163 = scmp.eq.s32.totalorder %s13, 3
    %p164 = scmp.ne.s32.totalorder %s159, %s161
    %p165 = scmp.eq.s32.totalorder %s13, 0
    %p166 = por %p164, %p165
    %p167 = scmp.ne.s32.totalorder %s159, %s161
    %p168 = scmp.eq.s32.totalorder %s18, 3
    %p169 = por %p167, %p168
    %p170 = scmp.ne.s32.totalorder %s161, %s162
    %p171 = scmp.eq.s32.totalorder %s18, 0
    %p172 = por %p170, %p171
    %p173 = scmp.ne.s32.totalorder %s161, %s162
    %p174 = scmp.eq.s32.totalorder %s19, 3
    %p175 = por %p173, %p174
    %p177 = scmp.ne.s32.totalorder %s162, %s176
    %p178 = scmp.eq.s32.totalorder %s19, 0
    %p179 = por %p177, %p178
    %s181 = sadd.s32 %s180, 1
    %p184 = scmp.eq.s32.totalorder %s13, 3
    %p185 = scmp.ne.s32.totalorder %s180, %s182
    %p186 = scmp.eq.s32.totalorder %s13, 0
    %p187 = por %p185, %p186
    %p188 = scmp.ne.s32.totalorder %s180, %s182
    %p189 = scmp.eq.s32.totalorder %s18, 3
    %p190 = por %p188, %p189
    %p191 = scmp.ne.s32.totalorder %s182, %s183
    %p192 = scmp.eq.s32.totalorder %s18, 0
    %p193 = por %p191, %p192
    %p194 = scmp.ne.s32.totalorder %s182, %s183
    %p195 = scmp.eq.s32.totalorder %s19, 3
    %p196 = por %p194, %p195
    %p198 = scmp.ne.s32.totalorder %s183, %s197
    %p199 = scmp.eq.s32.totalorder %s19, 0
    %p200 = por %p198, %p199
    %s201 = ssub.s32 %s20, %s32
    %s202 = ssub.s32 %s21, %s28
    %s203 = sor.u32 %s201, %s202
    %p204 = scmp.eq.s32.totalorder %s203, 0
    %s206 = sadd.s32 %s205, 1
    %s207 = scalar_select %p204, %s205, %s206
    %p210 = pneg %p204
    %p211 = scmp.eq.s32.totalorder %s13, 3
    %p212 = por %p210, %p211
    %p213 = scmp.ne.s32.totalorder %s205, %s208
    %p214 = scmp.eq.s32.totalorder %s13, 0
    %p215 = por %p213, %p214
    %p216 = scmp.ne.s32.totalorder %s205, %s208
    %p217 = scmp.eq.s32.totalorder %s18, 3
    %p218 = por %p216, %p217
    %p219 = scmp.ne.s32.totalorder %s208, %s209
    %p220 = scmp.eq.s32.totalorder %s18, 0
    %p221 = por %p219, %p220
    %p222 = scmp.ne.s32.totalorder %s208, %s209
    %p223 = scmp.eq.s32.totalorder %s19, 3
    %p224 = por %p222, %p223
    %p226 = scmp.ne.s32.totalorder %s209, %s225
    %p227 = scmp.eq.s32.totalorder %s19, 0
    %p228 = por %p226, %p227
    %p229 = scmp.le.s32.totalorder 1, %s13
    %p230 = scmp.lt.s32.totalorder %s13, 5
    %p231 = pnand %p229, %p230
    %p232 = pneg %p231
    // Predicated region
    $region9: #{fcn_head_forward.1} parent=5 // pred_check
      _
    $region10: #{fcn_head_forward.1} parent=5 // pred_check_branch
      %234 = sbr.rel (%p231) target = $region12
    $region11: #{fcn_head_forward.1} parent=5 // pred_region
      %s235 = ssub.s32 %s13, 1
      // Predicated region
      $region13: #{fcn_head_forward.1} parent=11 // pred_check
        %p236 = pneg %p130
      $region14: #{fcn_head_forward.1} parent=11 // pred_check_branch
        %238 = sbr.rel (%p236) target = $region16
      $region15: #{fcn_head_forward.1} parent=11 // pred_region
        _
      $region16: #{fcn_head_forward.1} parent=11 // pred_fallthru
        _
      // Predicated region
      $region17: #{fcn_head_forward.1} parent=11 // pred_check
        %p239 = pneg %p151
      $region18: #{fcn_head_forward.1} parent=11 // pred_check_branch
        %241 = sbr.rel (%p239) target = $region20
      $region19: #{fcn_head_forward.1} parent=11 // pred_region
        _
      $region20: #{fcn_head_forward.1} parent=11 // pred_fallthru
        _
      // Predicated region
      $region21: #{fcn_head_forward.1} parent=11 // pred_check
        %p242 = pneg %p172
      $region22: #{fcn_head_forward.1} parent=11 // pred_check_branch
        %244 = sbr.rel (%p242) target = $region24
      $region23: #{fcn_head_forward.1} parent=11 // pred_region
        _
      $region24: #{fcn_head_forward.1} parent=11 // pred_fallthru
        _
      // Predicated region
      $region25: #{fcn_head_forward.1} parent=11 // pred_check
        %p245 = pneg %p193
      $region26: #{fcn_head_forward.1} parent=11 // pred_check_branch
        %247 = sbr.rel (%p245) target = $region28
      $region27: #{fcn_head_forward.1} parent=11 // pred_region
        _
      $region28: #{fcn_head_forward.1} parent=11 // pred_fallthru
        _
    $region12: #{fcn_head_forward.1} parent=5 // pred_fallthru
      _
    %p248 = scmp.lt.s32.totalorder %s13, 4
    // Predicated region
    $region29: #{fcn_head_forward.1} parent=5 // pred_check
      %p249 = pneg %p248
    $region30: #{fcn_head_forward.1} parent=5 // pred_check_branch
      %251 = sbr.rel (%p249) target = $region32
    $region31: #{fcn_head_forward.1} parent=5 // pred_region
      // Predicated region
      $region33: #{fcn_head_forward.1} parent=31 // pred_check
        %p252 = pneg %p47
      $region34: #{fcn_head_forward.1} parent=31 // pred_check_branch
        %254 = sbr.rel (%p252) target = $region36
      $region35: #{fcn_head_forward.1} parent=31 // pred_region
        %s255 = smul.u32 8, %s21
        %p256 = scmp.lt.s32.totalorder %s20, 1
        %s257 = scalar_select %p256, %s20, 1
        %p258 = scmp.lt.s32.totalorder %s255, 15
        %s259 = scalar_select %p258, %s255, 15
        %s260 = smul.addr %s259, 2
        %s261 = smul.addr %s257, 32
        %s262 = sadd.s32 %s260, %s261
        %s263 = smul.addr %s262, 4
        %s264 = scalar_lea.vmem %s0, %s263
        %s265 = smul.u32 8, %s21
      $region36: #{fcn_head_forward.1} parent=31 // pred_fallthru
        _
      // Predicated region
      $region37: #{fcn_head_forward.1} parent=31 // pred_check
        %p266 = pneg %p75
      $region38: #{fcn_head_forward.1} parent=31 // pred_check_branch
        %268 = sbr.rel (%p266) target = $region40
      $region39: #{fcn_head_forward.1} parent=31 // pred_region
        %p269 = scmp.lt.s32.totalorder %s20, 1
        %s270 = scalar_select %p269, %s20, 1
        %p271 = scmp.lt.s32.totalorder %s21, 1
        %s272 = scalar_select %p271, %s21, 1
        %s273 = smul.addr %s272, 2
        %s274 = smul.addr %s270, 4
        %s275 = sadd.s32 %s273, %s274
        %s276 = smul.addr %s275, 4
        %s277 = scalar_lea.vmem %s1, %s276
      $region40: #{fcn_head_forward.1} parent=31 // pred_fallthru
        _
      // Predicated region
      $region41: #{fcn_head_forward.1} parent=31 // pred_check
        %p278 = pneg %p103
      $region42: #{fcn_head_forward.1} parent=31 // pred_check_branch
        %280 = sbr.rel (%p278) target = $region44
      $region43: #{fcn_head_forward.1} parent=31 // pred_region
        %p281 = scmp.lt.s32.totalorder %s20, 1
        %s282 = scalar_select %p281, %s20, 1
        %p283 = scmp.lt.s32.totalorder %s21, 1
        %s284 = scalar_select %p283, %s21, 1
        %s285 = smul.addr %s284, 2
        %s286 = smul.addr %s282, 4
        %s287 = sadd.s32 %s285, %s286
        %s288 = smul.addr %s287, 4
        %s289 = scalar_lea.vmem %s2, %s288
      $region44: #{fcn_head_forward.1} parent=31 // pred_fallthru
        _
    $region32: #{fcn_head_forward.1} parent=5 // pred_fallthru
      _
    %p290 = scmp.le.s32.totalorder 1, %s13
    %p291 = scmp.lt.s32.totalorder %s13, 5
    %p292 = pnand %p290, %p291
    %p293 = pneg %p292
    // Predicated region
    $region45: #{fcn_head_forward.1} parent=5 // pred_check
      _
    $region46: #{fcn_head_forward.1} parent=5 // pred_check_branch
      %295 = sbr.rel (%p292) target = $region48
    $region47: #{fcn_head_forward.1} parent=5 // pred_region
      %s296 = ssub.s32 %s13, 1
      %s297 = smul.u32 8, %s23
      %p298 = scmp.lt.s32.totalorder %s22, 1
      %s299 = scalar_select %p298, %s22, 1
      %p300 = scmp.lt.s32.totalorder %s297, 15
      %s301 = scalar_select %p300, %s297, 15
      %s302 = smul.addr %s301, 2
      %s303 = smul.addr %s299, 32
      %s304 = sadd.s32 %s302, %s303
      %s305 = smul.addr %s304, 4
      %s306 = scalar_lea.vmem %s0, %s305
      %p307 = pneg %p53
      %p308 = pneg %p50
      %p309 = scmp.lt.s32.totalorder %s22, 1
      %s310 = scalar_select %p309, %s22, 1
      %p311 = scmp.lt.s32.totalorder %s23, 1
      %s312 = scalar_select %p311, %s23, 1
      %s313 = smul.addr %s312, 2
      %s314 = smul.addr %s310, 4
      %s315 = sadd.s32 %s313, %s314
      %s316 = smul.addr %s315, 4
      %s317 = scalar_lea.vmem %s1, %s316
      %p318 = pneg %p81
      %p319 = pneg %p78
      %p320 = scmp.lt.s32.totalorder %s22, 1
      %s321 = scalar_select %p320, %s22, 1
      %p322 = scmp.lt.s32.totalorder %s23, 1
      %s323 = scalar_select %p322, %s23, 1
      %s324 = smul.addr %s323, 2
      %s325 = smul.addr %s321, 4
      %s326 = sadd.s32 %s324, %s325
      %s327 = smul.addr %s326, 4
      %s328 = scalar_lea.vmem %s2, %s327
      %p329 = pneg %p109
      %p330 = pneg %p106
      %p331 = pneg %p130
      %p332 = pneg %p127
      %p333 = pneg %p151
      %p334 = pneg %p148
      %p335 = pneg %p172
      %p336 = pneg %p169
      %p337 = pneg %p193
      %p338 = pneg %p190
      %p339 = pneg %p221
      %p340 = pneg %p218
      %p341 = scmp.lt.s32.totalorder %s22, 1
      %s342 = scalar_select %p341, %s22, 1
      %p343 = scmp.lt.s32.totalorder %s23, 1
      %s344 = scalar_select %p343, %s23, 1
      %s345 = smul.addr %s344, 16
      %s346 = smul.addr %s342, 32
      %s347 = sadd.s32 %s345, %s346
      %s348 = smul.addr %s347, 8
      %s349 = scalar_lea.vmem %s7, %s348
      %s350 = smul.u32 8, %s23
      %p351 = scmp.lt.s32.totalorder %s22, 1
      %s352 = scalar_select %p351, %s22, 1
      %p353 = scmp.lt.s32.totalorder %s350, 15
      %s354 = scalar_select %p353, %s350, 15
      %s355 = smul.addr %s354, 2
      %s356 = smul.addr %s352, 32
      %s357 = sadd.s32 %s355, %s356
      %s358 = smul.addr %s357, 4
      %s359 = scalar_lea.vmem %s0, %s358
      %s360 = smul.u32 8, %s23
      %p361 = scmp.lt.s32.totalorder %s22, 1
      %s362 = scalar_select %p361, %s22, 1
      %p363 = scmp.lt.s32.totalorder %s23, 1
      %s364 = scalar_select %p363, %s23, 1
      %s365 = smul.addr %s364, 2
      %s366 = smul.addr %s362, 4
      %s367 = sadd.s32 %s365, %s366
      %s368 = smul.addr %s367, 4
      %s369 = scalar_lea.vmem %s1, %s368
      %p370 = scmp.lt.s32.totalorder %s22, 1
      %s371 = scalar_select %p370, %s22, 1
      %p372 = scmp.lt.s32.totalorder %s23, 1
      %s373 = scalar_select %p372, %s23, 1
      %s374 = smul.addr %s373, 2
      %s375 = smul.addr %s371, 4
      %s376 = sadd.s32 %s374, %s375
      %s377 = smul.addr %s376, 4
      %s378 = scalar_lea.vmem %s2, %s377
      %p379 = scmp.lt.s32.totalorder %s22, 1
      %s380 = scalar_select %p379, %s22, 1
      %p381 = scmp.lt.s32.totalorder %s23, 1
      %s382 = scalar_select %p381, %s23, 1
      %s383 = smul.addr %s382, 16
      %s384 = smul.addr %s380, 32
      %s385 = sadd.s32 %s383, %s384
      %s386 = smul.addr %s385, 8
      %s387 = scalar_lea.vmem %s7, %s386
      %vm389 = vcmask 122880
      %vm390 = vsmask.f32 256
      %vm391 = vmand %vm389, %vm390
      %v392 = vld [vmem:[#allocation2] sm:$0x1]
      %v393 = vsel %vm391, 0, %v392
      %394 = vst [vmem:[#allocation2] sm:$0x1] %v393
      %v395 = vld [vmem:[#allocation2 + $0xc] sm:$0x1]
      %v396 = vsel %vm391, 0, %v395
      %397 = vst [vmem:[#allocation2 + $0xc] sm:$0x1] %v396
      %v398 = vld [vmem:[#allocation2 + $0x18] sm:$0x1]
      %v399 = vsel %vm391, 0, %v398
      %400 = vst [vmem:[#allocation2 + $0x18] sm:$0x1] %v399
      %v401 = vld [vmem:[#allocation2 + $0x24] sm:$0x1]
      %v402 = vsel %vm391, 0, %v401
      %403 = vst [vmem:[#allocation2 + $0x24] sm:$0x1] %v402
      %v404 = vld [vmem:[#allocation2 + $0x30] sm:$0x1]
      %v405 = vsel %vm391, 0, %v404
      %406 = vst [vmem:[#allocation2 + $0x30] sm:$0x1] %v405
      %v407 = vld [vmem:[#allocation2 + $0x3c] sm:$0x1]
      %v408 = vsel %vm391, 0, %v407
      %409 = vst [vmem:[#allocation2 + $0x3c] sm:$0x1] %v408
      %v410 = vld [vmem:[#allocation2 + $0x48] sm:$0x1]
      %v411 = vsel %vm391, 0, %v410
      %412 = vst [vmem:[#allocation2 + $0x48] sm:$0x1] %v411
      %v413 = vld [vmem:[#allocation2 + $0x54] sm:$0x1]
      %v414 = vsel %vm391, 0, %v413
      %415 = vst [vmem:[#allocation2 + $0x54] sm:$0x1] %v414
      %v416 = vld [vmem:[#allocation2 + $0x60] sm:$0x1]
      %v417 = vsel %vm391, 0, %v416
      %418 = vst [vmem:[#allocation2 + $0x60] sm:$0x1] %v417
      %v419 = vld [vmem:[#allocation2 + $0x6c] sm:$0x1]
      %v420 = vsel %vm391, 0, %v419
      %421 = vst [vmem:[#allocation2 + $0x6c] sm:$0x1] %v420
      %vm422 = vsmask.f32 7938
      %vm423 = vmand %vm389, %vm422
      %v424 = vld [vmem:[#allocation2 + $0x8] sm:$0x1]
      %v425 = vsel %vm423, 0, %v424
      %426 = vst [vmem:[#allocation2 + $0x8] sm:$0x1] %v425
      %v427 = vld [vmem:[#allocation2 + $0x14] sm:$0x1]
      %v428 = vsel %vm423, 0, %v427
      %429 = vst [vmem:[#allocation2 + $0x14] sm:$0x1] %v428
      %v430 = vld [vmem:[#allocation2 + $0x20] sm:$0x1]
      %v431 = vsel %vm423, 0, %v430
      %432 = vst [vmem:[#allocation2 + $0x20] sm:$0x1] %v431
      %v433 = vld [vmem:[#allocation2 + $0x2c] sm:$0x1]
      %v434 = vsel %vm423, 0, %v433
      %435 = vst [vmem:[#allocation2 + $0x2c] sm:$0x1] %v434
      %v436 = vld [vmem:[#allocation2 + $0x38] sm:$0x1]
      %v437 = vsel %vm423, 0, %v436
      %438 = vst [vmem:[#allocation2 + $0x38] sm:$0x1] %v437
      %v439 = vld [vmem:[#allocation2 + $0x44] sm:$0x1]
      %v440 = vsel %vm423, 0, %v439
      %441 = vst [vmem:[#allocation2 + $0x44] sm:$0x1] %v440
      %v442 = vld [vmem:[#allocation2 + $0x50] sm:$0x1]
      %v443 = vsel %vm423, 0, %v442
      %444 = vst [vmem:[#allocation2 + $0x50] sm:$0x1] %v443
      %v445 = vld [vmem:[#allocation2 + $0x5c] sm:$0x1]
      %v446 = vsel %vm423, 0, %v445
      %447 = vst [vmem:[#allocation2 + $0x5c] sm:$0x1] %v446
      %v448 = vld [vmem:[#allocation2 + $0x68] sm:$0x1]
      %v449 = vsel %vm423, 0, %v448
      %450 = vst [vmem:[#allocation2 + $0x68] sm:$0x1] %v449
      %v451 = vld [vmem:[#allocation2 + $0x74] sm:$0x1]
      %v452 = vsel %vm423, 0, %v451
      %453 = vst [vmem:[#allocation2 + $0x74] sm:$0x1] %v452
      %v454 = vld [vmem:[%s359] sm:$0xf]
      %v455 = vld [vmem:[%s359 + $0x4] sm:$0xf]
      %v456 = vld [vmem:[%s359 + $0x8] sm:$0xf]
      %v457 = vld [vmem:[%s359 + $0xc] sm:$0xf]
      %v458 = vld [vmem:[%s359 + $0x10] sm:$0xf]
      %v459 = vld [vmem:[%s359 + $0x14] sm:$0xf]
      %v460 = vld [vmem:[%s359 + $0x18] sm:$0xf]
      %v461 = vld [vmem:[%s359 + $0x1c] sm:$0xf]
      %v462 = vld [vmem:[%s359 + $0x20] sm:$0xf]
      %v463 = vld [vmem:[%s359 + $0x24] sm:$0xf]
      %v464 = vld [vmem:[%s359 + $0x28] sm:$0xf]
      %v465 = vld [vmem:[%s359 + $0x2c] sm:$0xf]
      %v466 = vld [vmem:[%s359 + $0x30] sm:$0xf]
      %v467 = vld [vmem:[%s359 + $0x34] sm:$0xf]
      %v468 = vld [vmem:[%s359 + $0x38] sm:$0xf]
      %v469 = vld [vmem:[%s359 + $0x3c] sm:$0xf]
      %vm470 = vsmask.f32 4368
      %vm471 = vmor %vm390, %vm470
      %v473 = vshrl.u32 %v454, 16
      %v475 = vrot.slane %v473, 7
      %v476 = vshll.u32 %v454, 16
      %v478 = vor.u32 %v475, %v476
      %v479 = vrot.slane %v475, 4
      %v481 = vshrl.u32 %v455, 16
      %v483 = vrot.slane %v481, 7
      %v484 = vshll.u32 %v455, 16
      %v486 = vor.u32 %v483, %v484
      %v487 = vsel %vm471, %v479, %v486
      %v488 = vrot.slane %v483, 4
      %v490 = vshrl.u32 %v456, 16
      %v492 = vrot.slane %v490, 7
      %v493 = vshll.u32 %v456, 16
      %v495 = vor.u32 %v492, %v493
      %v496 = vrot.slane %v492, 4
      %v498 = vshrl.u32 %v457, 16
      %v500 = vrot.slane %v498, 7
      %v501 = vshll.u32 %v457, 16
      %v503 = vor.u32 %v500, %v501
      %v504 = vsel %vm471, %v496, %v503
      %v505 = vrot.slane %v500, 4
      %v507 = vshrl.u32 %v458, 16
      %v509 = vrot.slane %v507, 7
      %v510 = vshll.u32 %v458, 16
      %v512 = vor.u32 %v509, %v510
      %v513 = vrot.slane %v509, 4
      %v515 = vshrl.u32 %v459, 16
      %v517 = vrot.slane %v515, 7
      %v518 = vshll.u32 %v459, 16
      %v520 = vor.u32 %v517, %v518
      %v521 = vsel %vm471, %v513, %v520
      %v522 = vrot.slane %v517, 4
      %v524 = vshrl.u32 %v460, 16
      %v526 = vrot.slane %v524, 7
      %v527 = vshll.u32 %v460, 16
      %v529 = vor.u32 %v526, %v527
      %v530 = vrot.slane %v526, 4
      %v532 = vshrl.u32 %v461, 16
      %v534 = vrot.slane %v532, 7
      %v535 = vshll.u32 %v461, 16
      %v537 = vor.u32 %v534, %v535
      %v538 = vsel %vm471, %v530, %v537
      %v539 = vrot.slane %v534, 4
      %v541 = vshrl.u32 %v462, 16
      %v543 = vrot.slane %v541, 7
      %v544 = vshll.u32 %v462, 16
      %v546 = vor.u32 %v543, %v544
      %v547 = vrot.slane %v543, 4
      %v549 = vshrl.u32 %v463, 16
      %v551 = vrot.slane %v549, 7
      %v552 = vshll.u32 %v463, 16
      %v554 = vor.u32 %v551, %v552
      %v555 = vsel %vm471, %v547, %v554
      %v556 = vrot.slane %v551, 4
      %v558 = vshrl.u32 %v464, 16
      %v560 = vrot.slane %v558, 7
      %v561 = vshll.u32 %v464, 16
      %v563 = vor.u32 %v560, %v561
      %v564 = vrot.slane %v560, 4
      %v566 = vshrl.u32 %v465, 16
      %v568 = vrot.slane %v566, 7
      %v569 = vshll.u32 %v465, 16
      %v571 = vor.u32 %v568, %v569
      %v572 = vsel %vm471, %v564, %v571
      %v573 = vrot.slane %v568, 4
      %v575 = vshrl.u32 %v466, 16
      %v577 = vrot.slane %v575, 7
      %v578 = vshll.u32 %v466, 16
      %v580 = vor.u32 %v577, %v578
      %v581 = vrot.slane %v577, 4
      %v583 = vshrl.u32 %v467, 16
      %v585 = vrot.slane %v583, 7
      %v586 = vshll.u32 %v467, 16
      %v588 = vor.u32 %v585, %v586
      %v589 = vsel %vm471, %v581, %v588
      %v590 = vrot.slane %v585, 4
      %v592 = vshrl.u32 %v468, 16
      %v594 = vrot.slane %v592, 7
      %v595 = vshll.u32 %v468, 16
      %v597 = vor.u32 %v594, %v595
      %v598 = vrot.slane %v594, 4
      %v600 = vshrl.u32 %v469, 16
      %v602 = vrot.slane %v600, 7
      %v603 = vshll.u32 %v469, 16
      %v605 = vor.u32 %v602, %v603
      %v606 = vsel %vm471, %v598, %v605
      %v607 = vrot.slane %v602, 4
      %s632 = scalar_lea.vmem [#allocation2], 12
      %vm633 = vcmask 125952
      %vm634 = vmand %vm633, %vm422
      %v635 = vld [vmem:[%s632] sm:$0xf]
      %v636 = vsel %vm634, %v478, %v635
      %637 = vst [vmem:[%s632] sm:$0xf] %v636
      %vm638 = vcmask 125952
      %639 = vst.msk [vmem:[%s632 + $0x4] sm:$0xf] %vm638, %v487
      %v640 = vld [vmem:[%s632 + $0x8] sm:$0x1]
      %v641 = vsel %vm391, %v488, %v640
      %642 = vst [vmem:[%s632 + $0x8] sm:$0x1] %v641
      %v643 = vld [vmem:[%s632 + $0xc] sm:$0xf]
      %v644 = vsel %vm634, %v495, %v643
      %645 = vst [vmem:[%s632 + $0xc] sm:$0xf] %v644
      %646 = vst.msk [vmem:[%s632 + $0x10] sm:$0xf] %vm638, %v504
      %v647 = vld [vmem:[%s632 + $0x14] sm:$0x1]
      %v648 = vsel %vm391, %v505, %v647
      %649 = vst [vmem:[%s632 + $0x14] sm:$0x1] %v648
      %v650 = vld [vmem:[%s632 + $0x18] sm:$0xf]
      %v651 = vsel %vm634, %v512, %v650
      %652 = vst [vmem:[%s632 + $0x18] sm:$0xf] %v651
      %653 = vst.msk [vmem:[%s632 + $0x1c] sm:$0xf] %vm638, %v521
      %v654 = vld [vmem:[%s632 + $0x20] sm:$0x1]
      %v655 = vsel %vm391, %v522, %v654
      %656 = vst [vmem:[%s632 + $0x20] sm:$0x1] %v655
      %v657 = vld [vmem:[%s632 + $0x24] sm:$0xf]
      %v658 = vsel %vm634, %v529, %v657
      %659 = vst [vmem:[%s632 + $0x24] sm:$0xf] %v658
      %660 = vst.msk [vmem:[%s632 + $0x28] sm:$0xf] %vm638, %v538
      %v661 = vld [vmem:[%s632 + $0x2c] sm:$0x1]
      %v662 = vsel %vm391, %v539, %v661
      %663 = vst [vmem:[%s632 + $0x2c] sm:$0x1] %v662
      %v664 = vld [vmem:[%s632 + $0x30] sm:$0xf]
      %v665 = vsel %vm634, %v546, %v664
      %666 = vst [vmem:[%s632 + $0x30] sm:$0xf] %v665
      %667 = vst.msk [vmem:[%s632 + $0x34] sm:$0xf] %vm638, %v555
      %v668 = vld [vmem:[%s632 + $0x38] sm:$0x1]
      %v669 = vsel %vm391, %v556, %v668
      %670 = vst [vmem:[%s632 + $0x38] sm:$0x1] %v669
      %v671 = vld [vmem:[%s632 + $0x3c] sm:$0xf]
      %v672 = vsel %vm634, %v563, %v671
      %673 = vst [vmem:[%s632 + $0x3c] sm:$0xf] %v672
      %674 = vst.msk [vmem:[%s632 + $0x40] sm:$0xf] %vm638, %v572
      %v675 = vld [vmem:[%s632 + $0x44] sm:$0x1]
      %v676 = vsel %vm391, %v573, %v675
      %677 = vst [vmem:[%s632 + $0x44] sm:$0x1] %v676
      %v678 = vld [vmem:[%s632 + $0x48] sm:$0xf]
      %v679 = vsel %vm634, %v580, %v678
      %680 = vst [vmem:[%s632 + $0x48] sm:$0xf] %v679
      %681 = vst.msk [vmem:[%s632 + $0x4c] sm:$0xf] %vm638, %v589
      %v682 = vld [vmem:[%s632 + $0x50] sm:$0x1]
      %v683 = vsel %vm391, %v590, %v682
      %684 = vst [vmem:[%s632 + $0x50] sm:$0x1] %v683
      %v685 = vld [vmem:[%s632 + $0x54] sm:$0xf]
      %v686 = vsel %vm634, %v597, %v685
      %687 = vst [vmem:[%s632 + $0x54] sm:$0xf] %v686
      %688 = vst.msk [vmem:[%s632 + $0x58] sm:$0xf] %vm638, %v606
      %v689 = vld [vmem:[%s632 + $0x5c] sm:$0x1]
      %v690 = vsel %vm391, %v607, %v689
      %691 = vst [vmem:[%s632 + $0x5c] sm:$0x1] %v690
      %v692 = vld [vmem:[%s369] sm:$0xf]
      %v693 = vld [vmem:[%s369 + $0x4] sm:$0xf]
      %v695 = vshrl.u32 %v692, 16
      %v697 = vrot.slane %v695, 7
      %v698 = vshll.u32 %v692, 16
      %v700 = vor.u32 %v697, %v698
      %v701 = vrot.slane %v697, 4
      %v703 = vshrl.u32 %v693, 16
      %v705 = vrot.slane %v703, 7
      %v706 = vshll.u32 %v693, 16
      %v708 = vor.u32 %v705, %v706
      %v709 = vsel %vm471, %v701, %v708
      %v710 = vrot.slane %v705, 4
      %v714 = vld [vmem:[#allocation2] sm:$0xf]
      %v715 = vsel %vm634, %v700, %v714
      %716 = vst [vmem:[#allocation2] sm:$0xf] %v715
      %717 = vst.msk [vmem:[#allocation2 + $0x4] sm:$0xf] %vm638, %v709
      %v718 = vld [vmem:[#allocation2 + $0x8] sm:$0x1]
      %v719 = vsel %vm391, %v710, %v718
      %720 = vst [vmem:[#allocation2 + $0x8] sm:$0x1] %v719
      %v721 = vld [vmem:[%s378] sm:$0xf]
      %v722 = vld [vmem:[%s378 + $0x4] sm:$0xf]
      %v724 = vshrl.u32 %v721, 16
      %v726 = vrot.slane %v724, 7
      %v727 = vshll.u32 %v721, 16
      %v729 = vor.u32 %v726, %v727
      %v730 = vrot.slane %v726, 4
      %v732 = vshrl.u32 %v722, 16
      %v734 = vrot.slane %v732, 7
      %v735 = vshll.u32 %v722, 16
      %v737 = vor.u32 %v734, %v735
      %v738 = vsel %vm471, %v730, %v737
      %v739 = vrot.slane %v734, 4
      %s743 = scalar_lea.vmem [#allocation2], 108
      %v744 = vld [vmem:[%s743] sm:$0xf]
      %v745 = vsel %vm634, %v729, %v744
      %746 = vst [vmem:[%s743] sm:$0xf] %v745
      %747 = vst.msk [vmem:[%s743 + $0x4] sm:$0xf] %vm638, %v738
      %v748 = vld [vmem:[%s743 + $0x8] sm:$0x1]
      %v749 = vsel %vm391, %v739, %v748
      %750 = vst [vmem:[%s743 + $0x8] sm:$0x1] %v749
      %v751 = vld [vmem:[#allocation2] sm:$0xf]
      %v752 = vld [vmem:[#allocation2 + $0x4] sm:$0xf]
      %v753 = vld [vmem:[#allocation2 + $0xc] sm:$0xf]
      %v754 = vld [vmem:[#allocation2 + $0x10] sm:$0xf]
      %v755 = vld [vmem:[#allocation2 + $0x18] sm:$0xf]
      %v756 = vld [vmem:[#allocation2 + $0x1c] sm:$0xf]
      %v757 = vld [vmem:[#allocation2 + $0x24] sm:$0xf]
      %v758 = vld [vmem:[#allocation2 + $0x28] sm:$0xf]
      %v759 = vld [vmem:[#allocation2 + $0x30] sm:$0xf]
      %v760 = vld [vmem:[#allocation2 + $0x34] sm:$0xf]
      %v761 = vld [vmem:[#allocation2 + $0x3c] sm:$0xf]
      %v762 = vld [vmem:[#allocation2 + $0x40] sm:$0xf]
      %v763 = vld [vmem:[#allocation2 + $0x48] sm:$0xf]
      %v764 = vld [vmem:[#allocation2 + $0x4c] sm:$0xf]
      %v765 = vld [vmem:[#allocation2 + $0x54] sm:$0xf]
      %v766 = vld [vmem:[#allocation2 + $0x58] sm:$0xf]
      %v767 = vld [vmem:[%s3] sm:$0xf]
      %v768 = vld [vmem:[%s3 + $0x4] sm:$0xf]
      %v769 = vld [vmem:[#allocation2 + $0x8] sm:$0x1]
      %v770 = vld [vmem:[#allocation2 + $0x14] sm:$0x1]
      %v771 = vld [vmem:[#allocation2 + $0x20] sm:$0x1]
      %v772 = vld [vmem:[#allocation2 + $0x2c] sm:$0x1]
      %v773 = vld [vmem:[#allocation2 + $0x38] sm:$0x1]
      %v774 = vld [vmem:[#allocation2 + $0x44] sm:$0x1]
      %v775 = vld [vmem:[#allocation2 + $0x50] sm:$0x1]
      %v776 = vld [vmem:[#allocation2 + $0x5c] sm:$0x1]
      %vm777 = vsmask.f32 3328
      %vm778 = vsmask.f32 7440
      %vm779 = vmor %vm777, %vm778
      %v781 = vshrl.u32 %v751, 16
      %v783 = vrot.slane %v781, 4
      %v784 = vshll.u32 %v751, 16
      %v786 = vrot.slane %v784, 5
      %v787 = vor.u32 %v783, %v786
      %v788 = vrot.slane %v787, 4
      %v790 = vshll.u32 %v752, 16
      %v792 = vrot.slane %v790, 5
      %v793 = vsel %vm779, %v788, %v792
      %v794 = vshrl.u32 %v752, 16
      %v796 = vrot.slane %v794, 4
      %v797 = vor.u32 %v796, %v792
      %v798 = vrot.slane %v797, 4
      %v800 = vshll.u32 %v769, 16
      %v802 = vrot.slane %v800, 5
      %v803 = vsel %vm779, %v798, %v802
      %v805 = vshrl.u32 %v753, 16
      %v807 = vrot.slane %v805, 4
      %v808 = vshll.u32 %v753, 16
      %v810 = vrot.slane %v808, 5
      %v811 = vor.u32 %v807, %v810
      %v812 = vrot.slane %v811, 4
      %v814 = vshll.u32 %v754, 16
      %v816 = vrot.slane %v814, 5
      %v817 = vsel %vm779, %v812, %v816
      %v818 = vshrl.u32 %v754, 16
      %v820 = vrot.slane %v818, 4
      %v821 = vor.u32 %v820, %v816
      %v822 = vrot.slane %v821, 4
      %v824 = vshll.u32 %v770, 16
      %v826 = vrot.slane %v824, 5
      %v827 = vsel %vm779, %v822, %v826
      %v829 = vshrl.u32 %v755, 16
      %v831 = vrot.slane %v829, 4
      %v832 = vshll.u32 %v755, 16
      %v834 = vrot.slane %v832, 5
      %v835 = vor.u32 %v831, %v834
      %v836 = vrot.slane %v835, 4
      %v838 = vshll.u32 %v756, 16
      %v840 = vrot.slane %v838, 5
      %v841 = vsel %vm779, %v836, %v840
      %v842 = vshrl.u32 %v756, 16
      %v844 = vrot.slane %v842, 4
      %v845 = vor.u32 %v844, %v840
      %v846 = vrot.slane %v845, 4
      %v848 = vshll.u32 %v771, 16
      %v850 = vrot.slane %v848, 5
      %v851 = vsel %vm779, %v846, %v850
      %v853 = vshrl.u32 %v757, 16
      %v855 = vrot.slane %v853, 4
      %v856 = vshll.u32 %v757, 16
      %v858 = vrot.slane %v856, 5
      %v859 = vor.u32 %v855, %v858
      %v860 = vrot.slane %v859, 4
      %v862 = vshll.u32 %v758, 16
      %v864 = vrot.slane %v862, 5
      %v865 = vsel %vm779, %v860, %v864
      %v866 = vshrl.u32 %v758, 16
      %v868 = vrot.slane %v866, 4
      %v869 = vor.u32 %v868, %v864
      %v870 = vrot.slane %v869, 4
      %v872 = vshll.u32 %v772, 16
      %v874 = vrot.slane %v872, 5
      %v875 = vsel %vm779, %v870, %v874
      %v877 = vshrl.u32 %v759, 16
      %v879 = vrot.slane %v877, 4
      %v880 = vshll.u32 %v759, 16
      %v882 = vrot.slane %v880, 5
      %v883 = vor.u32 %v879, %v882
      %v884 = vrot.slane %v883, 4
      %v886 = vshll.u32 %v760, 16
      %v888 = vrot.slane %v886, 5
      %v889 = vsel %vm779, %v884, %v888
      %v890 = vshrl.u32 %v760, 16
      %v892 = vrot.slane %v890, 4
      %v893 = vor.u32 %v892, %v888
      %v894 = vrot.slane %v893, 4
      %v896 = vshll.u32 %v773, 16
      %v898 = vrot.slane %v896, 5
      %v899 = vsel %vm779, %v894, %v898
      %v901 = vshrl.u32 %v761, 16
      %v903 = vrot.slane %v901, 4
      %v904 = vshll.u32 %v761, 16
      %v906 = vrot.slane %v904, 5
      %v907 = vor.u32 %v903, %v906
      %v908 = vrot.slane %v907, 4
      %v910 = vshll.u32 %v762, 16
      %v912 = vrot.slane %v910, 5
      %v913 = vsel %vm779, %v908, %v912
      %v914 = vshrl.u32 %v762, 16
      %v916 = vrot.slane %v914, 4
      %v917 = vor.u32 %v916, %v912
      %v918 = vrot.slane %v917, 4
      %v920 = vshll.u32 %v774, 16
      %v922 = vrot.slane %v920, 5
      %v923 = vsel %vm779, %v918, %v922
      %v925 = vshrl.u32 %v763, 16
      %v927 = vrot.slane %v925, 4
      %v928 = vshll.u32 %v763, 16
      %v930 = vrot.slane %v928, 5
      %v931 = vor.u32 %v927, %v930
      %v932 = vrot.slane %v931, 4
      %v934 = vshll.u32 %v764, 16
      %v936 = vrot.slane %v934, 5
      %v937 = vsel %vm779, %v932, %v936
      %v938 = vshrl.u32 %v764, 16
      %v940 = vrot.slane %v938, 4
      %v941 = vor.u32 %v940, %v936
      %v942 = vrot.slane %v941, 4
      %v944 = vshll.u32 %v775, 16
      %v946 = vrot.slane %v944, 5
      %v947 = vsel %vm779, %v942, %v946
      %v949 = vshrl.u32 %v765, 16
      %v951 = vrot.slane %v949, 4
      %v952 = vshll.u32 %v765, 16
      %v954 = vrot.slane %v952, 5
      %v955 = vor.u32 %v951, %v954
      %v956 = vrot.slane %v955, 4
      %v958 = vshll.u32 %v766, 16
      %v960 = vrot.slane %v958, 5
      %v961 = vsel %vm779, %v956, %v960
      %v962 = vshrl.u32 %v766, 16
      %v964 = vrot.slane %v962, 4
      %v965 = vor.u32 %v964, %v960
      %v966 = vrot.slane %v965, 4
      %v968 = vshll.u32 %v776, 16
      %v970 = vrot.slane %v968, 5
      %v971 = vsel %vm779, %v966, %v970
      %s972 = scalar_lea.vmem %s3, 8
      %v973 = vld [vmem:[%s972] sm:$0xf]
      %v974 = vld [vmem:[%s972 + $0x4] sm:$0xf]
      %v975 = vunpack.c.l.b16 %v793
      %v976 = vunpack.c.l.b16 %v803
      %v977 = vunpack.c.l.b16 %v817
      %v978 = vunpack.c.l.b16 %v827
      %v979 = vunpack.c.l.b16 %v841
      %v980 = vunpack.c.l.b16 %v851
      %v981 = vunpack.c.l.b16 %v865
      %v982 = vunpack.c.l.b16 %v875
      %v983 = vunpack.c.l.b16 %v889
      %v984 = vunpack.c.l.b16 %v899
      %v985 = vunpack.c.l.b16 %v913
      %v986 = vunpack.c.l.b16 %v923
      %v987 = vunpack.c.l.b16 %v937
      %v988 = vunpack.c.l.b16 %v947
      %v989 = vunpack.c.l.b16 %v961
      %v990 = vunpack.c.l.b16 %v971
      %v991 = vpack.c.b16 %v976, %v975
      %v992 = vpack.c.b16 %v978, %v977
      %v993 = vpack.c.b16 %v980, %v979
      %v994 = vpack.c.b16 %v982, %v981
      %v995 = vpack.c.b16 %v984, %v983
      %v996 = vpack.c.b16 %v986, %v985
      %v997 = vpack.c.b16 %v988, %v987
      %v998 = vpack.c.b16 %v990, %v989
      %v1001 = vunpack.c.l.b16 %v973
      %v1002 = vunpack.c.l.b16 %v974
      %v1003 = vpack.c.b16 %v1002, %v1001
      %vm1005 = vcmask 130048
      %v1007 = vsel %vm1005, %v991, 0
      %v1010 = vsel %vm1005, %v992, 0
      %v1013 = vsel %vm1005, %v993, 0
      %v1016 = vsel %vm1005, %v994, 0
      %v1019 = vsel %vm1005, %v995, 0
      %v1022 = vsel %vm1005, %v996, 0
      %v1025 = vsel %vm1005, %v997, 0
      %v1028 = vsel %vm1005, %v998, 0
      %1030 = vmatprep.subr.bf16.mxu0 0
      %1031 = vmatpush1.bf16.msra.mxu0 0
      %1032 = vmatprep.subr.bf16.mxu0 0
      %1033 = vmatpush1.bf16.msra.mxu0 0
      %1034 = vmatprep.subr.bf16.mxu0 0
      %1035 = vmatpush1.bf16.msra.mxu0 0
      %1036 = vmatprep.subr.bf16.mxu0 0
      %1037 = vmatpush1.bf16.msra.mxu0 0
      %1038 = vmatprep.subr.bf16.mxu0 0
      %1039 = vmatpush1.bf16.msra.mxu0 0
      %1040 = vmatprep.subr.bf16.mxu0 0
      %1041 = vmatpush1.bf16.msra.mxu0 0
      %1042 = vmatprep.subr.bf16.mxu0 0
      %1043 = vmatpush1.bf16.msra.mxu0 0
      %1044 = vmatprep.subr.bf16.mxu0 0
      %1045 = vmatpush1.bf16.msra.mxu0 %v1003
      %1046 = vmatprep.subr.bf16.mxu0 0
      %1047 = vmatpush2.bf16.msra.mxu0 0
      %1048 = vmatprep.subr.bf16.mxu0 0
      %1049 = vmatpush2.bf16.msra.mxu0 0
      %1050 = vmatprep.subr.bf16.mxu0 0
      %1051 = vmatpush2.bf16.msra.mxu0 0
      %1052 = vmatprep.subr.bf16.mxu0 0
      %1053 = vmatpush2.bf16.msra.mxu0 0
      %1054 = vmatprep.subr.bf16.mxu0 0
      %1055 = vmatpush2.bf16.msra.mxu0 0
      %1056 = vmatprep.subr.bf16.mxu0 0
      %1057 = vmatpush2.bf16.msra.mxu0 0
      %1058 = vmatprep.subr.bf16.mxu0 0
      %1059 = vmatpush2.bf16.msra.mxu0 0
      %1060 = vmatprep.subr.bf16.mxu0 0
      %1061 = vmatpush2.bf16.msra.mxu0 0
      %1062 = vmatprep.mubr.bf16.mxu0 0
      %1063 = vmatmul.mubr.bf16.gmra.mxu0 %v1007
      %v1064 = vpop.f32.mrf.mxu0
      %v1065 = vadd.f32 0.0, %v1064
      %v1066 = vpop.f32.mrf.mxu0
      %v1067 = vpop.f32.mrf.mxu0
      %v1068 = vadd.f32 0.0, %v1067
      %v1069 = vpop.f32.mrf.mxu0
      %1070 = vmatprep.mubr.bf16.mxu0 0
      %1071 = vmatmul.mubr.bf16.gmra.mxu0 %v1010
      %v1072 = vpop.f32.mrf.mxu0
      %v1073 = vadd.f32 0.0, %v1072
      %v1074 = vpop.f32.mrf.mxu0
      %v1075 = vpop.f32.mrf.mxu0
      %v1076 = vadd.f32 0.0, %v1075
      %v1077 = vpop.f32.mrf.mxu0
      %1078 = vmatprep.mubr.bf16.mxu0 0
      %1079 = vmatmul.mubr.bf16.gmra.mxu0 %v1013
      %v1080 = vpop.f32.mrf.mxu0
      %v1081 = vadd.f32 0.0, %v1080
      %v1082 = vpop.f32.mrf.mxu0
      %v1083 = vpop.f32.mrf.mxu0
      %v1084 = vadd.f32 0.0, %v1083
      %v1085 = vpop.f32.mrf.mxu0
      %1086 = vmatprep.mubr.bf16.mxu0 0
      %1087 = vmatmul.mubr.bf16.gmra.mxu0 %v1016
      %v1088 = vpop.f32.mrf.mxu0
      %v1089 = vadd.f32 0.0, %v1088
      %v1090 = vpop.f32.mrf.mxu0
      %v1091 = vpop.f32.mrf.mxu0
      %v1092 = vadd.f32 0.0, %v1091
      %v1093 = vpop.f32.mrf.mxu0
      %1094 = vmatprep.mubr.bf16.mxu0 0
      %1095 = vmatmul.mubr.bf16.gmra.mxu0 %v1019
      %v1096 = vpop.f32.mrf.mxu0
      %v1097 = vadd.f32 0.0, %v1096
      %v1098 = vpop.f32.mrf.mxu0
      %v1099 = vpop.f32.mrf.mxu0
      %v1100 = vadd.f32 0.0, %v1099
      %v1101 = vpop.f32.mrf.mxu0
      %1102 = vmatprep.mubr.bf16.mxu0 0
      %1103 = vmatmul.mubr.bf16.gmra.mxu0 %v1022
      %v1104 = vpop.f32.mrf.mxu0
      %v1105 = vadd.f32 0.0, %v1104
      %v1106 = vpop.f32.mrf.mxu0
      %v1107 = vpop.f32.mrf.mxu0
      %v1108 = vadd.f32 0.0, %v1107
      %v1109 = vpop.f32.mrf.mxu0
      %1110 = vmatprep.mubr.bf16.mxu0 0
      %1111 = vmatmul.mubr.bf16.gmra.mxu0 %v1025
      %v1112 = vpop.f32.mrf.mxu0
      %v1113 = vadd.f32 0.0, %v1112
      %v1114 = vpop.f32.mrf.mxu0
      %v1115 = vpop.f32.mrf.mxu0
      %v1116 = vadd.f32 0.0, %v1115
      %v1117 = vpop.f32.mrf.mxu0
      %1118 = vmatprep.mubr.bf16.mxu0 0
      %1119 = vmatmul.mubr.bf16.gmra.mxu0 %v1028
      %v1120 = vpop.f32.mrf.mxu0
      %v1121 = vadd.f32 0.0, %v1120
      %v1122 = vpop.f32.mrf.mxu0
      %v1123 = vpop.f32.mrf.mxu0
      %v1124 = vadd.f32 0.0, %v1123
      %v1125 = vpop.f32.mrf.mxu0
      %1126 = vdwg.mxu0
      %v1143 = vunpack.c.l.b16 %v751
      %v1144 = vunpack.c.l.b16 %v752
      %v1145 = vunpack.c.l.b16 %v753
      %v1146 = vunpack.c.l.b16 %v754
      %v1147 = vunpack.c.l.b16 %v755
      %v1148 = vunpack.c.l.b16 %v756
      %v1149 = vunpack.c.l.b16 %v757
      %v1150 = vunpack.c.l.b16 %v758
      %v1151 = vunpack.c.l.b16 %v759
      %v1152 = vunpack.c.l.b16 %v760
      %v1153 = vunpack.c.l.b16 %v761
      %v1154 = vunpack.c.l.b16 %v762
      %v1155 = vunpack.c.l.b16 %v763
      %v1156 = vunpack.c.l.b16 %v764
      %v1157 = vunpack.c.l.b16 %v765
      %v1158 = vunpack.c.l.b16 %v766
      %v1159 = vpack.c.b16 %v1144, %v1143
      %v1160 = vpack.c.b16 %v1146, %v1145
      %v1161 = vpack.c.b16 %v1148, %v1147
      %v1162 = vpack.c.b16 %v1150, %v1149
      %v1163 = vpack.c.b16 %v1152, %v1151
      %v1164 = vpack.c.b16 %v1154, %v1153
      %v1165 = vpack.c.b16 %v1156, %v1155
      %v1166 = vpack.c.b16 %v1158, %v1157
      %v1169 = vunpack.c.l.b16 %v767
      %v1170 = vunpack.c.l.b16 %v768
      %v1171 = vpack.c.b16 %v1170, %v1169
      %v1174 = vsel %vm1005, %v1159, 0
      %v1177 = vsel %vm1005, %v1160, 0
      %v1180 = vsel %vm1005, %v1161, 0
      %v1183 = vsel %vm1005, %v1162, 0
      %v1186 = vsel %vm1005, %v1163, 0
      %v1189 = vsel %vm1005, %v1164, 0
      %v1192 = vsel %vm1005, %v1165, 0
      %v1195 = vsel %vm1005, %v1166, 0
      %1197 = vmatprep.subr.bf16.mxu0 0
      %1198 = vmatpush1.bf16.msra.mxu0 0
      %1199 = vmatprep.subr.bf16.mxu0 0
      %1200 = vmatpush1.bf16.msra.mxu0 0
      %1201 = vmatprep.subr.bf16.mxu0 0
      %1202 = vmatpush1.bf16.msra.mxu0 0
      %1203 = vmatprep.subr.bf16.mxu0 0
      %1204 = vmatpush1.bf16.msra.mxu0 0
      %1205 = vmatprep.subr.bf16.mxu0 0
      %1206 = vmatpush1.bf16.msra.mxu0 0
      %1207 = vmatprep.subr.bf16.mxu0 0
      %1208 = vmatpush1.bf16.msra.mxu0 0
      %1209 = vmatprep.subr.bf16.mxu0 0
      %1210 = vmatpush1.bf16.msra.mxu0 0
      %1211 = vmatprep.subr.bf16.mxu0 0
      %1212 = vmatpush1.bf16.msra.mxu0 %v1171
      %1213 = vmatprep.subr.bf16.mxu0 0
      %1214 = vmatpush2.bf16.msra.mxu0 0
      %1215 = vmatprep.subr.bf16.mxu0 0
      %1216 = vmatpush2.bf16.msra.mxu0 0
      %1217 = vmatprep.subr.bf16.mxu0 0
      %1218 = vmatpush2.bf16.msra.mxu0 0
      %1219 = vmatprep.subr.bf16.mxu0 0
      %1220 = vmatpush2.bf16.msra.mxu0 0
      %1221 = vmatprep.subr.bf16.mxu0 0
      %1222 = vmatpush2.bf16.msra.mxu0 0
      %1223 = vmatprep.subr.bf16.mxu0 0
      %1224 = vmatpush2.bf16.msra.mxu0 0
      %1225 = vmatprep.subr.bf16.mxu0 0
      %1226 = vmatpush2.bf16.msra.mxu0 0
      %1227 = vmatprep.subr.bf16.mxu0 0
      %1228 = vmatpush2.bf16.msra.mxu0 0
      %1229 = vmatprep.mubr.bf16.mxu0 0
      %1230 = vmatmul.mubr.bf16.gmra.mxu0 %v1174
      %v1231 = vpop.f32.mrf.mxu0
      %v1232 = vadd.f32 %v1065, %v1231
      %v1233 = vpop.f32.mrf.mxu0
      %v1234 = vpop.f32.mrf.mxu0
      %v1235 = vadd.f32 %v1068, %v1234
      %v1236 = vpop.f32.mrf.mxu0
      %1237 = vmatprep.mubr.bf16.mxu0 0
      %1238 = vmatmul.mubr.bf16.gmra.mxu0 %v1177
      %v1239 = vpop.f32.mrf.mxu0
      %v1240 = vadd.f32 %v1073, %v1239
      %v1241 = vpop.f32.mrf.mxu0
      %v1242 = vpop.f32.mrf.mxu0
      %v1243 = vadd.f32 %v1076, %v1242
      %v1244 = vpop.f32.mrf.mxu0
      %1245 = vmatprep.mubr.bf16.mxu0 0
      %1246 = vmatmul.mubr.bf16.gmra.mxu0 %v1180
      %v1247 = vpop.f32.mrf.mxu0
      %v1248 = vadd.f32 %v1081, %v1247
      %v1249 = vpop.f32.mrf.mxu0
      %v1250 = vpop.f32.mrf.mxu0
      %v1251 = vadd.f32 %v1084, %v1250
      %v1252 = vpop.f32.mrf.mxu0
      %1253 = vmatprep.mubr.bf16.mxu0 0
      %1254 = vmatmul.mubr.bf16.gmra.mxu0 %v1183
      %v1255 = vpop.f32.mrf.mxu0
      %v1256 = vadd.f32 %v1089, %v1255
      %v1257 = vpop.f32.mrf.mxu0
      %v1258 = vpop.f32.mrf.mxu0
      %v1259 = vadd.f32 %v1092, %v1258
      %v1260 = vpop.f32.mrf.mxu0
      %1261 = vmatprep.mubr.bf16.mxu0 0
      %1262 = vmatmul.mubr.bf16.gmra.mxu0 %v1186
      %v1263 = vpop.f32.mrf.mxu0
      %v1264 = vadd.f32 %v1097, %v1263
      %v1265 = vpop.f32.mrf.mxu0
      %v1266 = vpop.f32.mrf.mxu0
      %v1267 = vadd.f32 %v1100, %v1266
      %v1268 = vpop.f32.mrf.mxu0
      %1269 = vmatprep.mubr.bf16.mxu0 0
      %1270 = vmatmul.mubr.bf16.gmra.mxu0 %v1189
      %v1271 = vpop.f32.mrf.mxu0
      %v1272 = vadd.f32 %v1105, %v1271
      %v1273 = vpop.f32.mrf.mxu0
      %v1274 = vpop.f32.mrf.mxu0
      %v1275 = vadd.f32 %v1108, %v1274
      %v1276 = vpop.f32.mrf.mxu0
      %1277 = vmatprep.mubr.bf16.mxu0 0
      %1278 = vmatmul.mubr.bf16.gmra.mxu0 %v1192
      %v1279 = vpop.f32.mrf.mxu0
      %v1280 = vadd.f32 %v1113, %v1279
      %v1281 = vpop.f32.mrf.mxu0
      %v1282 = vpop.f32.mrf.mxu0
      %v1283 = vadd.f32 %v1116, %v1282
      %v1284 = vpop.f32.mrf.mxu0
      %1285 = vmatprep.mubr.bf16.mxu0 0
      %1286 = vmatmul.mubr.bf16.gmra.mxu0 %v1195
      %v1287 = vpop.f32.mrf.mxu0
      %v1288 = vadd.f32 %v1121, %v1287
      %v1289 = vpop.f32.mrf.mxu0
      %v1290 = vpop.f32.mrf.mxu0
      %v1291 = vadd.f32 %v1124, %v1290
      %v1292 = vpop.f32.mrf.mxu0
      %1293 = vdwg.mxu0
      %v1294 = vld [vmem:[#allocation2] sm:$0xe]
      %v1295 = vld [vmem:[#allocation2 + $0xc] sm:$0xe]
      %v1296 = vld [vmem:[#allocation2 + $0x18] sm:$0xe]
      %v1297 = vld [vmem:[#allocation2 + $0x24] sm:$0xe]
      %v1298 = vld [vmem:[#allocation2 + $0x30] sm:$0xe]
      %v1299 = vld [vmem:[#allocation2 + $0x3c] sm:$0xe]
      %v1300 = vld [vmem:[#allocation2 + $0x48] sm:$0xe]
      %v1301 = vld [vmem:[#allocation2 + $0x54] sm:$0xe]
      %vm1318 = vcmask 1042432
      %vm1319 = vcmask 1046532
      %vm1320 = vmor %vm1318, %vm1319
      %v1321 = vrot.slane %v1294, 5
      %v1322 = vrot.slane %v1321, 4
      %v1323 = vrot.slane %v752, 5
      %v1324 = vsel %vm1320, %v1322, %v1323
      %v1325 = vrot.slane %v1323, 4
      %v1326 = vrot.slane %v769, 5
      %v1327 = vsel %vm1320, %v1325, %v1326
      %v1328 = vrot.slane %v1295, 5
      %v1329 = vrot.slane %v1328, 4
      %v1330 = vrot.slane %v754, 5
      %v1331 = vsel %vm1320, %v1329, %v1330
      %v1332 = vrot.slane %v1330, 4
      %v1333 = vrot.slane %v770, 5
      %v1334 = vsel %vm1320, %v1332, %v1333
      %v1335 = vrot.slane %v1296, 5
      %v1336 = vrot.slane %v1335, 4
      %v1337 = vrot.slane %v756, 5
      %v1338 = vsel %vm1320, %v1336, %v1337
      %v1339 = vrot.slane %v1337, 4
      %v1340 = vrot.slane %v771, 5
      %v1341 = vsel %vm1320, %v1339, %v1340
      %v1342 = vrot.slane %v1297, 5
      %v1343 = vrot.slane %v1342, 4
      %v1344 = vrot.slane %v758, 5
      %v1345 = vsel %vm1320, %v1343, %v1344
      %v1346 = vrot.slane %v1344, 4
      %v1347 = vrot.slane %v772, 5
      %v1348 = vsel %vm1320, %v1346, %v1347
      %v1349 = vrot.slane %v1298, 5
      %v1350 = vrot.slane %v1349, 4
      %v1351 = vrot.slane %v760, 5
      %v1352 = vsel %vm1320, %v1350, %v1351
      %v1353 = vrot.slane %v1351, 4
      %v1354 = vrot.slane %v773, 5
      %v1355 = vsel %vm1320, %v1353, %v1354
      %v1356 = vrot.slane %v1299, 5
      %v1357 = vrot.slane %v1356, 4
      %v1358 = vrot.slane %v762, 5
      %v1359 = vsel %vm1320, %v1357, %v1358
      %v1360 = vrot.slane %v1358, 4
      %v1361 = vrot.slane %v774, 5
      %v1362 = vsel %vm1320, %v1360, %v1361
      %v1363 = vrot.slane %v1300, 5
      %v1364 = vrot.slane %v1363, 4
      %v1365 = vrot.slane %v764, 5
      %v1366 = vsel %vm1320, %v1364, %v1365
      %v1367 = vrot.slane %v1365, 4
      %v1368 = vrot.slane %v775, 5
      %v1369 = vsel %vm1320, %v1367, %v1368
      %v1370 = vrot.slane %v1301, 5
      %v1371 = vrot.slane %v1370, 4
      %v1372 = vrot.slane %v766, 5
      %v1373 = vsel %vm1320, %v1371, %v1372
      %v1374 = vrot.slane %v1372, 4
      %v1375 = vrot.slane %v776, 5
      %v1376 = vsel %vm1320, %v1374, %v1375
      %s1377 = scalar_lea.vmem %s3, 16
      %v1378 = vld [vmem:[%s1377] sm:$0xf]
      %v1379 = vld [vmem:[%s1377 + $0x4] sm:$0xf]
      %v1380 = vunpack.c.l.b16 %v1324
      %v1381 = vunpack.c.l.b16 %v1327
      %v1382 = vunpack.c.l.b16 %v1331
      %v1383 = vunpack.c.l.b16 %v1334
      %v1384 = vunpack.c.l.b16 %v1338
      %v1385 = vunpack.c.l.b16 %v1341
      %v1386 = vunpack.c.l.b16 %v1345
      %v1387 = vunpack.c.l.b16 %v1348
      %v1388 = vunpack.c.l.b16 %v1352
      %v1389 = vunpack.c.l.b16 %v1355
      %v1390 = vunpack.c.l.b16 %v1359
      %v1391 = vunpack.c.l.b16 %v1362
      %v1392 = vunpack.c.l.b16 %v1366
      %v1393 = vunpack.c.l.b16 %v1369
      %v1394 = vunpack.c.l.b16 %v1373
      %v1395 = vunpack.c.l.b16 %v1376
      %v1396 = vpack.c.b16 %v1381, %v1380
      %v1397 = vpack.c.b16 %v1383, %v1382
      %v1398 = vpack.c.b16 %v1385, %v1384
      %v1399 = vpack.c.b16 %v1387, %v1386
      %v1400 = vpack.c.b16 %v1389, %v1388
      %v1401 = vpack.c.b16 %v1391, %v1390
      %v1402 = vpack.c.b16 %v1393, %v1392
      %v1403 = vpack.c.b16 %v1395, %v1394
      %v1406 = vunpack.c.l.b16 %v1378
      %v1407 = vunpack.c.l.b16 %v1379
      %v1408 = vpack.c.b16 %v1407, %v1406
      %v1411 = vsel %vm1005, %v1396, 0
      %v1414 = vsel %vm1005, %v1397, 0
      %v1417 = vsel %vm1005, %v1398, 0
      %v1420 = vsel %vm1005, %v1399, 0
      %v1423 = vsel %vm1005, %v1400, 0
      %v1426 = vsel %vm1005, %v1401, 0
      %v1429 = vsel %vm1005, %v1402, 0
      %v1432 = vsel %vm1005, %v1403, 0
      %1434 = vmatprep.subr.bf16.mxu0 0
      %1435 = vmatpush1.bf16.msra.mxu0 0
      %1436 = vmatprep.subr.bf16.mxu0 0
      %1437 = vmatpush1.bf16.msra.mxu0 0
      %1438 = vmatprep.subr.bf16.mxu0 0
      %1439 = vmatpush1.bf16.msra.mxu0 0
      %1440 = vmatprep.subr.bf16.mxu0 0
      %1441 = vmatpush1.bf16.msra.mxu0 0
      %1442 = vmatprep.subr.bf16.mxu0 0
      %1443 = vmatpush1.bf16.msra.mxu0 0
      %1444 = vmatprep.subr.bf16.mxu0 0
      %1445 = vmatpush1.bf16.msra.mxu0 0
      %1446 = vmatprep.subr.bf16.mxu0 0
      %1447 = vmatpush1.bf16.msra.mxu0 0
      %1448 = vmatprep.subr.bf16.mxu0 0
      %1449 = vmatpush1.bf16.msra.mxu0 %v1408
      %1450 = vmatprep.subr.bf16.mxu0 0
      %1451 = vmatpush2.bf16.msra.mxu0 0
      %1452 = vmatprep.subr.bf16.mxu0 0
      %1453 = vmatpush2.bf16.msra.mxu0 0
      %1454 = vmatprep.subr.bf16.mxu0 0
      %1455 = vmatpush2.bf16.msra.mxu0 0
      %1456 = vmatprep.subr.bf16.mxu0 0
      %1457 = vmatpush2.bf16.msra.mxu0 0
      %1458 = vmatprep.subr.bf16.mxu0 0
      %1459 = vmatpush2.bf16.msra.mxu0 0
      %1460 = vmatprep.subr.bf16.mxu0 0
      %1461 = vmatpush2.bf16.msra.mxu0 0
      %1462 = vmatprep.subr.bf16.mxu0 0
      %1463 = vmatpush2.bf16.msra.mxu0 0
      %1464 = vmatprep.subr.bf16.mxu0 0
      %1465 = vmatpush2.bf16.msra.mxu0 0
      %1466 = vmatprep.mubr.bf16.mxu0 0
      %1467 = vmatmul.mubr.bf16.gmra.mxu0 %v1411
      %v1468 = vpop.f32.mrf.mxu0
      %v1469 = vadd.f32 0.0, %v1468
      %v1470 = vpop.f32.mrf.mxu0
      %v1471 = vpop.f32.mrf.mxu0
      %v1472 = vadd.f32 0.0, %v1471
      %v1473 = vpop.f32.mrf.mxu0
      %1474 = vmatprep.mubr.bf16.mxu0 0
      %1475 = vmatmul.mubr.bf16.gmra.mxu0 %v1414
      %v1476 = vpop.f32.mrf.mxu0
      %v1477 = vadd.f32 0.0, %v1476
      %v1478 = vpop.f32.mrf.mxu0
      %v1479 = vpop.f32.mrf.mxu0
      %v1480 = vadd.f32 0.0, %v1479
      %v1481 = vpop.f32.mrf.mxu0
      %1482 = vmatprep.mubr.bf16.mxu0 0
      %1483 = vmatmul.mubr.bf16.gmra.mxu0 %v1417
      %v1484 = vpop.f32.mrf.mxu0
      %v1485 = vadd.f32 0.0, %v1484
      %v1486 = vpop.f32.mrf.mxu0
      %v1487 = vpop.f32.mrf.mxu0
      %v1488 = vadd.f32 0.0, %v1487
      %v1489 = vpop.f32.mrf.mxu0
      %1490 = vmatprep.mubr.bf16.mxu0 0
      %1491 = vmatmul.mubr.bf16.gmra.mxu0 %v1420
      %v1492 = vpop.f32.mrf.mxu0
      %v1493 = vadd.f32 0.0, %v1492
      %v1494 = vpop.f32.mrf.mxu0
      %v1495 = vpop.f32.mrf.mxu0
      %v1496 = vadd.f32 0.0, %v1495
      %v1497 = vpop.f32.mrf.mxu0
      %1498 = vmatprep.mubr.bf16.mxu0 0
      %1499 = vmatmul.mubr.bf16.gmra.mxu0 %v1423
      %v1500 = vpop.f32.mrf.mxu0
      %v1501 = vadd.f32 0.0, %v1500
      %v1502 = vpop.f32.mrf.mxu0
      %v1503 = vpop.f32.mrf.mxu0
      %v1504 = vadd.f32 0.0, %v1503
      %v1505 = vpop.f32.mrf.mxu0
      %1506 = vmatprep.mubr.bf16.mxu0 0
      %1507 = vmatmul.mubr.bf16.gmra.mxu0 %v1426
      %v1508 = vpop.f32.mrf.mxu0
      %v1509 = vadd.f32 0.0, %v1508
      %v1510 = vpop.f32.mrf.mxu0
      %v1511 = vpop.f32.mrf.mxu0
      %v1512 = vadd.f32 0.0, %v1511
      %v1513 = vpop.f32.mrf.mxu0
      %1514 = vmatprep.mubr.bf16.mxu0 0
      %1515 = vmatmul.mubr.bf16.gmra.mxu0 %v1429
      %v1516 = vpop.f32.mrf.mxu0
      %v1517 = vadd.f32 0.0, %v1516
      %v1518 = vpop.f32.mrf.mxu0
      %v1519 = vpop.f32.mrf.mxu0
      %v1520 = vadd.f32 0.0, %v1519
      %v1521 = vpop.f32.mrf.mxu0
      %1522 = vmatprep.mubr.bf16.mxu0 0
      %1523 = vmatmul.mubr.bf16.gmra.mxu0 %v1432
      %v1524 = vpop.f32.mrf.mxu0
      %v1525 = vadd.f32 0.0, %v1524
      %v1526 = vpop.f32.mrf.mxu0
      %v1527 = vpop.f32.mrf.mxu0
      %v1528 = vadd.f32 0.0, %v1527
      %v1529 = vpop.f32.mrf.mxu0
      %1530 = vdwg.mxu0
      %v1531 = vadd.f32 %v1232, %v1469
      %v1532 = vadd.f32 %v1235, %v1472
      %v1533 = vadd.f32 %v1240, %v1477
      %v1534 = vadd.f32 %v1243, %v1480
      %v1535 = vadd.f32 %v1248, %v1485
      %v1536 = vadd.f32 %v1251, %v1488
      %v1537 = vadd.f32 %v1256, %v1493
      %v1538 = vadd.f32 %v1259, %v1496
      %v1539 = vadd.f32 %v1264, %v1501
      %v1540 = vadd.f32 %v1267, %v1504
      %v1541 = vadd.f32 %v1272, %v1509
      %v1542 = vadd.f32 %v1275, %v1512
      %v1543 = vadd.f32 %v1280, %v1517
      %v1544 = vadd.f32 %v1283, %v1520
      %v1545 = vadd.f32 %v1288, %v1525
      %v1546 = vadd.f32 %v1291, %v1528
      %v1547 = vld [vmem:[%s632] sm:$0xf]
      %v1548 = vld [vmem:[%s632 + $0x4] sm:$0xf]
      %v1549 = vld [vmem:[%s632 + $0xc] sm:$0xf]
      %v1550 = vld [vmem:[%s632 + $0x10] sm:$0xf]
      %v1551 = vld [vmem:[%s632 + $0x18] sm:$0xf]
      %v1552 = vld [vmem:[%s632 + $0x1c] sm:$0xf]
      %v1553 = vld [vmem:[%s632 + $0x24] sm:$0xf]
      %v1554 = vld [vmem:[%s632 + $0x28] sm:$0xf]
      %v1555 = vld [vmem:[%s632 + $0x30] sm:$0xf]
      %v1556 = vld [vmem:[%s632 + $0x34] sm:$0xf]
      %v1557 = vld [vmem:[%s632 + $0x3c] sm:$0xf]
      %v1558 = vld [vmem:[%s632 + $0x40] sm:$0xf]
      %v1559 = vld [vmem:[%s632 + $0x48] sm:$0xf]
      %v1560 = vld [vmem:[%s632 + $0x4c] sm:$0xf]
      %v1561 = vld [vmem:[%s632 + $0x54] sm:$0xf]
      %v1562 = vld [vmem:[%s632 + $0x58] sm:$0xf]
      %s1563 = scalar_lea.vmem %s3, 24
      %v1564 = vld [vmem:[%s1563] sm:$0xf]
      %v1565 = vld [vmem:[%s1563 + $0x4] sm:$0xf]
      %v1582 = vunpack.c.l.b16 %v1547
      %v1583 = vunpack.c.l.b16 %v1548
      %v1584 = vunpack.c.l.b16 %v1549
      %v1585 = vunpack.c.l.b16 %v1550
      %v1586 = vunpack.c.l.b16 %v1551
      %v1587 = vunpack.c.l.b16 %v1552
      %v1588 = vunpack.c.l.b16 %v1553
      %v1589 = vunpack.c.l.b16 %v1554
      %v1590 = vunpack.c.l.b16 %v1555
      %v1591 = vunpack.c.l.b16 %v1556
      %v1592 = vunpack.c.l.b16 %v1557
      %v1593 = vunpack.c.l.b16 %v1558
      %v1594 = vunpack.c.l.b16 %v1559
      %v1595 = vunpack.c.l.b16 %v1560
      %v1596 = vunpack.c.l.b16 %v1561
      %v1597 = vunpack.c.l.b16 %v1562
      %v1598 = vpack.c.b16 %v1583, %v1582
      %v1599 = vpack.c.b16 %v1585, %v1584
      %v1600 = vpack.c.b16 %v1587, %v1586
      %v1601 = vpack.c.b16 %v1589, %v1588
      %v1602 = vpack.c.b16 %v1591, %v1590
      %v1603 = vpack.c.b16 %v1593, %v1592
      %v1604 = vpack.c.b16 %v1595, %v1594
      %v1605 = vpack.c.b16 %v1597, %v1596
      %v1608 = vunpack.c.l.b16 %v1564
      %v1609 = vunpack.c.l.b16 %v1565
      %v1610 = vpack.c.b16 %v1609, %v1608
      %v1613 = vsel %vm1005, %v1598, 0
      %v1616 = vsel %vm1005, %v1599, 0
      %v1619 = vsel %vm1005, %v1600, 0
      %v1622 = vsel %vm1005, %v1601, 0
      %v1625 = vsel %vm1005, %v1602, 0
      %v1628 = vsel %vm1005, %v1603, 0
      %v1631 = vsel %vm1005, %v1604, 0
      %v1634 = vsel %vm1005, %v1605, 0
      %1636 = vmatprep.subr.bf16.mxu0 0
      %1637 = vmatpush1.bf16.msra.mxu0 0
      %1638 = vmatprep.subr.bf16.mxu0 0
      %1639 = vmatpush1.bf16.msra.mxu0 0
      %1640 = vmatprep.subr.bf16.mxu0 0
      %1641 = vmatpush1.bf16.msra.mxu0 0
      %1642 = vmatprep.subr.bf16.mxu0 0
      %1643 = vmatpush1.bf16.msra.mxu0 0
      %1644 = vmatprep.subr.bf16.mxu0 0
      %1645 = vmatpush1.bf16.msra.mxu0 0
      %1646 = vmatprep.subr.bf16.mxu0 0
      %1647 = vmatpush1.bf16.msra.mxu0 0
      %1648 = vmatprep.subr.bf16.mxu0 0
      %1649 = vmatpush1.bf16.msra.mxu0 0
      %1650 = vmatprep.subr.bf16.mxu0 0
      %1651 = vmatpush1.bf16.msra.mxu0 %v1610
      %1652 = vmatprep.subr.bf16.mxu0 0
      %1653 = vmatpush2.bf16.msra.mxu0 0
      %1654 = vmatprep.subr.bf16.mxu0 0
      %1655 = vmatpush2.bf16.msra.mxu0 0
      %1656 = vmatprep.subr.bf16.mxu0 0
      %1657 = vmatpush2.bf16.msra.mxu0 0
      %1658 = vmatprep.subr.bf16.mxu0 0
      %1659 = vmatpush2.bf16.msra.mxu0 0
      %1660 = vmatprep.subr.bf16.mxu0 0
      %1661 = vmatpush2.bf16.msra.mxu0 0
      %1662 = vmatprep.subr.bf16.mxu0 0
      %1663 = vmatpush2.bf16.msra.mxu0 0
      %1664 = vmatprep.subr.bf16.mxu0 0
      %1665 = vmatpush2.bf16.msra.mxu0 0
      %1666 = vmatprep.subr.bf16.mxu0 0
      %1667 = vmatpush2.bf16.msra.mxu0 0
      %1668 = vmatprep.mubr.bf16.mxu0 0
      %1669 = vmatmul.mubr.bf16.gmra.mxu0 %v1613
      %v1670 = vpop.f32.mrf.mxu0
      %v1671 = vadd.f32 0.0, %v1670
      %v1672 = vpop.f32.mrf.mxu0
      %v1673 = vpop.f32.mrf.mxu0
      %v1674 = vadd.f32 0.0, %v1673
      %v1675 = vpop.f32.mrf.mxu0
      %1676 = vmatprep.mubr.bf16.mxu0 0
      %1677 = vmatmul.mubr.bf16.gmra.mxu0 %v1616
      %v1678 = vpop.f32.mrf.mxu0
      %v1679 = vadd.f32 0.0, %v1678
      %v1680 = vpop.f32.mrf.mxu0
      %v1681 = vpop.f32.mrf.mxu0
      %v1682 = vadd.f32 0.0, %v1681
      %v1683 = vpop.f32.mrf.mxu0
      %1684 = vmatprep.mubr.bf16.mxu0 0
      %1685 = vmatmul.mubr.bf16.gmra.mxu0 %v1619
      %v1686 = vpop.f32.mrf.mxu0
      %v1687 = vadd.f32 0.0, %v1686
      %v1688 = vpop.f32.mrf.mxu0
      %v1689 = vpop.f32.mrf.mxu0
      %v1690 = vadd.f32 0.0, %v1689
      %v1691 = vpop.f32.mrf.mxu0
      %1692 = vmatprep.mubr.bf16.mxu0 0
      %1693 = vmatmul.mubr.bf16.gmra.mxu0 %v1622
      %v1694 = vpop.f32.mrf.mxu0
      %v1695 = vadd.f32 0.0, %v1694
      %v1696 = vpop.f32.mrf.mxu0
      %v1697 = vpop.f32.mrf.mxu0
      %v1698 = vadd.f32 0.0, %v1697
      %v1699 = vpop.f32.mrf.mxu0
      %1700 = vmatprep.mubr.bf16.mxu0 0
      %1701 = vmatmul.mubr.bf16.gmra.mxu0 %v1625
      %v1702 = vpop.f32.mrf.mxu0
      %v1703 = vadd.f32 0.0, %v1702
      %v1704 = vpop.f32.mrf.mxu0
      %v1705 = vpop.f32.mrf.mxu0
      %v1706 = vadd.f32 0.0, %v1705
      %v1707 = vpop.f32.mrf.mxu0
      %1708 = vmatprep.mubr.bf16.mxu0 0
      %1709 = vmatmul.mubr.bf16.gmra.mxu0 %v1628
      %v1710 = vpop.f32.mrf.mxu0
      %v1711 = vadd.f32 0.0, %v1710
      %v1712 = vpop.f32.mrf.mxu0
      %v1713 = vpop.f32.mrf.mxu0
      %v1714 = vadd.f32 0.0, %v1713
      %v1715 = vpop.f32.mrf.mxu0
      %1716 = vmatprep.mubr.bf16.mxu0 0
      %1717 = vmatmul.mubr.bf16.gmra.mxu0 %v1631
      %v1718 = vpop.f32.mrf.mxu0
      %v1719 = vadd.f32 0.0, %v1718
      %v1720 = vpop.f32.mrf.mxu0
      %v1721 = vpop.f32.mrf.mxu0
      %v1722 = vadd.f32 0.0, %v1721
      %v1723 = vpop.f32.mrf.mxu0
      %1724 = vmatprep.mubr.bf16.mxu0 0
      %1725 = vmatmul.mubr.bf16.gmra.mxu0 %v1634
      %v1726 = vpop.f32.mrf.mxu0
      %v1727 = vadd.f32 0.0, %v1726
      %v1728 = vpop.f32.mrf.mxu0
      %v1729 = vpop.f32.mrf.mxu0
      %v1730 = vadd.f32 0.0, %v1729
      %v1731 = vpop.f32.mrf.mxu0
      %1732 = vdwg.mxu0
      %v1733 = vadd.f32 %v1531, %v1671
      %v1734 = vadd.f32 %v1532, %v1674
      %v1735 = vadd.f32 %v1533, %v1679
      %v1736 = vadd.f32 %v1534, %v1682
      %v1737 = vadd.f32 %v1535, %v1687
      %v1738 = vadd.f32 %v1536, %v1690
      %v1739 = vadd.f32 %v1537, %v1695
      %v1740 = vadd.f32 %v1538, %v1698
      %v1741 = vadd.f32 %v1539, %v1703
      %v1742 = vadd.f32 %v1540, %v1706
      %v1743 = vadd.f32 %v1541, %v1711
      %v1744 = vadd.f32 %v1542, %v1714
      %v1745 = vadd.f32 %v1543, %v1719
      %v1746 = vadd.f32 %v1544, %v1722
      %v1747 = vadd.f32 %v1545, %v1727
      %v1748 = vadd.f32 %v1546, %v1730
      %v1749 = vld [vmem:[%s632] sm:$0xf]
      %v1750 = vld [vmem:[%s632 + $0x4] sm:$0xf]
      %v1751 = vld [vmem:[%s632 + $0x8] sm:$0x1]
      %v1752 = vld [vmem:[%s632 + $0xc] sm:$0xf]
      %v1753 = vld [vmem:[%s632 + $0x10] sm:$0xf]
      %v1754 = vld [vmem:[%s632 + $0x14] sm:$0x1]
      %v1755 = vld [vmem:[%s632 + $0x18] sm:$0xf]
      %v1756 = vld [vmem:[%s632 + $0x1c] sm:$0xf]
      %v1757 = vld [vmem:[%s632 + $0x20] sm:$0x1]
      %v1758 = vld [vmem:[%s632 + $0x24] sm:$0xf]
      %v1759 = vld [vmem:[%s632 + $0x28] sm:$0xf]
      %v1760 = vld [vmem:[%s632 + $0x2c] sm:$0x1]
      %v1761 = vld [vmem:[%s632 + $0x30] sm:$0xf]
      %v1762 = vld [vmem:[%s632 + $0x34] sm:$0xf]
      %v1763 = vld [vmem:[%s632 + $0x38] sm:$0x1]
      %v1764 = vld [vmem:[%s632 + $0x3c] sm:$0xf]
      %v1765 = vld [vmem:[%s632 + $0x40] sm:$0xf]
      %v1766 = vld [vmem:[%s632 + $0x44] sm:$0x1]
      %v1767 = vld [vmem:[%s632 + $0x48] sm:$0xf]
      %v1768 = vld [vmem:[%s632 + $0x4c] sm:$0xf]
      %v1769 = vld [vmem:[%s632 + $0x50] sm:$0x1]
      %v1770 = vld [vmem:[%s632 + $0x54] sm:$0xf]
      %v1771 = vld [vmem:[%s632 + $0x58] sm:$0xf]
      %v1772 = vld [vmem:[%s632 + $0x5c] sm:$0x1]
      %v1774 = vshrl.u32 %v1749, 16
      %v1776 = vrot.slane %v1774, 4
      %v1777 = vshll.u32 %v1749, 16
      %v1779 = vrot.slane %v1777, 5
      %v1780 = vor.u32 %v1776, %v1779
      %v1781 = vrot.slane %v1780, 4
      %v1783 = vshll.u32 %v1750, 16
      %v1785 = vrot.slane %v1783, 5
      %v1786 = vsel %vm779, %v1781, %v1785
      %v1787 = vshrl.u32 %v1750, 16
      %v1789 = vrot.slane %v1787, 4
      %v1790 = vor.u32 %v1789, %v1785
      %v1791 = vrot.slane %v1790, 4
      %v1793 = vshll.u32 %v1751, 16
      %v1795 = vrot.slane %v1793, 5
      %v1796 = vsel %vm779, %v1791, %v1795
      %v1798 = vshrl.u32 %v1752, 16
      %v1800 = vrot.slane %v1798, 4
      %v1801 = vshll.u32 %v1752, 16
      %v1803 = vrot.slane %v1801, 5
      %v1804 = vor.u32 %v1800, %v1803
      %v1805 = vrot.slane %v1804, 4
      %v1807 = vshll.u32 %v1753, 16
      %v1809 = vrot.slane %v1807, 5
      %v1810 = vsel %vm779, %v1805, %v1809
      %v1811 = vshrl.u32 %v1753, 16
      %v1813 = vrot.slane %v1811, 4
      %v1814 = vor.u32 %v1813, %v1809
      %v1815 = vrot.slane %v1814, 4
      %v1817 = vshll.u32 %v1754, 16
      %v1819 = vrot.slane %v1817, 5
      %v1820 = vsel %vm779, %v1815, %v1819
      %v1822 = vshrl.u32 %v1755, 16
      %v1824 = vrot.slane %v1822, 4
      %v1825 = vshll.u32 %v1755, 16
      %v1827 = vrot.slane %v1825, 5
      %v1828 = vor.u32 %v1824, %v1827
      %v1829 = vrot.slane %v1828, 4
      %v1831 = vshll.u32 %v1756, 16
      %v1833 = vrot.slane %v1831, 5
      %v1834 = vsel %vm779, %v1829, %v1833
      %v1835 = vshrl.u32 %v1756, 16
      %v1837 = vrot.slane %v1835, 4
      %v1838 = vor.u32 %v1837, %v1833
      %v1839 = vrot.slane %v1838, 4
      %v1841 = vshll.u32 %v1757, 16
      %v1843 = vrot.slane %v1841, 5
      %v1844 = vsel %vm779, %v1839, %v1843
      %v1846 = vshrl.u32 %v1758, 16
      %v1848 = vrot.slane %v1846, 4
      %v1849 = vshll.u32 %v1758, 16
      %v1851 = vrot.slane %v1849, 5
      %v1852 = vor.u32 %v1848, %v1851
      %v1853 = vrot.slane %v1852, 4
      %v1855 = vshll.u32 %v1759, 16
      %v1857 = vrot.slane %v1855, 5
      %v1858 = vsel %vm779, %v1853, %v1857
      %v1859 = vshrl.u32 %v1759, 16
      %v1861 = vrot.slane %v1859, 4
      %v1862 = vor.u32 %v1861, %v1857
      %v1863 = vrot.slane %v1862, 4
      %v1865 = vshll.u32 %v1760, 16
      %v1867 = vrot.slane %v1865, 5
      %v1868 = vsel %vm779, %v1863, %v1867
      %v1870 = vshrl.u32 %v1761, 16
      %v1872 = vrot.slane %v1870, 4
      %v1873 = vshll.u32 %v1761, 16
      %v1875 = vrot.slane %v1873, 5
      %v1876 = vor.u32 %v1872, %v1875
      %v1877 = vrot.slane %v1876, 4
      %v1879 = vshll.u32 %v1762, 16
      %v1881 = vrot.slane %v1879, 5
      %v1882 = vsel %vm779, %v1877, %v1881
      %v1883 = vshrl.u32 %v1762, 16
      %v1885 = vrot.slane %v1883, 4
      %v1886 = vor.u32 %v1885, %v1881
      %v1887 = vrot.slane %v1886, 4
      %v1889 = vshll.u32 %v1763, 16
      %v1891 = vrot.slane %v1889, 5
      %v1892 = vsel %vm779, %v1887, %v1891
      %v1894 = vshrl.u32 %v1764, 16
      %v1896 = vrot.slane %v1894, 4
      %v1897 = vshll.u32 %v1764, 16
      %v1899 = vrot.slane %v1897, 5
      %v1900 = vor.u32 %v1896, %v1899
      %v1901 = vrot.slane %v1900, 4
      %v1903 = vshll.u32 %v1765, 16
      %v1905 = vrot.slane %v1903, 5
      %v1906 = vsel %vm779, %v1901, %v1905
      %v1907 = vshrl.u32 %v1765, 16
      %v1909 = vrot.slane %v1907, 4
      %v1910 = vor.u32 %v1909, %v1905
      %v1911 = vrot.slane %v1910, 4
      %v1913 = vshll.u32 %v1766, 16
      %v1915 = vrot.slane %v1913, 5
      %v1916 = vsel %vm779, %v1911, %v1915
      %v1918 = vshrl.u32 %v1767, 16
      %v1920 = vrot.slane %v1918, 4
      %v1921 = vshll.u32 %v1767, 16
      %v1923 = vrot.slane %v1921, 5
      %v1924 = vor.u32 %v1920, %v1923
      %v1925 = vrot.slane %v1924, 4
      %v1927 = vshll.u32 %v1768, 16
      %v1929 = vrot.slane %v1927, 5
      %v1930 = vsel %vm779, %v1925, %v1929
      %v1931 = vshrl.u32 %v1768, 16
      %v1933 = vrot.slane %v1931, 4
      %v1934 = vor.u32 %v1933, %v1929
      %v1935 = vrot.slane %v1934, 4
      %v1937 = vshll.u32 %v1769, 16
      %v1939 = vrot.slane %v1937, 5
      %v1940 = vsel %vm779, %v1935, %v1939
      %v1942 = vshrl.u32 %v1770, 16
      %v1944 = vrot.slane %v1942, 4
      %v1945 = vshll.u32 %v1770, 16
      %v1947 = vrot.slane %v1945, 5
      %v1948 = vor.u32 %v1944, %v1947
      %v1949 = vrot.slane %v1948, 4
      %v1951 = vshll.u32 %v1771, 16
      %v1953 = vrot.slane %v1951, 5
      %v1954 = vsel %vm779, %v1949, %v1953
      %v1955 = vshrl.u32 %v1771, 16
      %v1957 = vrot.slane %v1955, 4
      %v1958 = vor.u32 %v1957, %v1953
      %v1959 = vrot.slane %v1958, 4
      %v1961 = vshll.u32 %v1772, 16
      %v1963 = vrot.slane %v1961, 5
      %v1964 = vsel %vm779, %v1959, %v1963
      %s1965 = scalar_lea.vmem %s3, 32
      %v1966 = vld [vmem:[%s1965] sm:$0xf]
      %v1967 = vld [vmem:[%s1965 + $0x4] sm:$0xf]
      %v1968 = vunpack.c.l.b16 %v1786
      %v1969 = vunpack.c.l.b16 %v1796
      %v1970 = vunpack.c.l.b16 %v1810
      %v1971 = vunpack.c.l.b16 %v1820
      %v1972 = vunpack.c.l.b16 %v1834
      %v1973 = vunpack.c.l.b16 %v1844
      %v1974 = vunpack.c.l.b16 %v1858
      %v1975 = vunpack.c.l.b16 %v1868
      %v1976 = vunpack.c.l.b16 %v1882
      %v1977 = vunpack.c.l.b16 %v1892
      %v1978 = vunpack.c.l.b16 %v1906
      %v1979 = vunpack.c.l.b16 %v1916
      %v1980 = vunpack.c.l.b16 %v1930
      %v1981 = vunpack.c.l.b16 %v1940
      %v1982 = vunpack.c.l.b16 %v1954
      %v1983 = vunpack.c.l.b16 %v1964
      %v1984 = vpack.c.b16 %v1969, %v1968
      %v1985 = vpack.c.b16 %v1971, %v1970
      %v1986 = vpack.c.b16 %v1973, %v1972
      %v1987 = vpack.c.b16 %v1975, %v1974
      %v1988 = vpack.c.b16 %v1977, %v1976
      %v1989 = vpack.c.b16 %v1979, %v1978
      %v1990 = vpack.c.b16 %v1981, %v1980
      %v1991 = vpack.c.b16 %v1983, %v1982
      %v1994 = vunpack.c.l.b16 %v1966
      %v1995 = vunpack.c.l.b16 %v1967
      %v1996 = vpack.c.b16 %v1995, %v1994
      %v1999 = vsel %vm1005, %v1984, 0
      %v2002 = vsel %vm1005, %v1985, 0
      %v2005 = vsel %vm1005, %v1986, 0
      %v2008 = vsel %vm1005, %v1987, 0
      %v2011 = vsel %vm1005, %v1988, 0
      %v2014 = vsel %vm1005, %v1989, 0
      %v2017 = vsel %vm1005, %v1990, 0
      %v2020 = vsel %vm1005, %v1991, 0
      %2022 = vmatprep.subr.bf16.mxu0 0
      %2023 = vmatpush1.bf16.msra.mxu0 0
      %2024 = vmatprep.subr.bf16.mxu0 0
      %2025 = vmatpush1.bf16.msra.mxu0 0
      %2026 = vmatprep.subr.bf16.mxu0 0
      %2027 = vmatpush1.bf16.msra.mxu0 0
      %2028 = vmatprep.subr.bf16.mxu0 0
      %2029 = vmatpush1.bf16.msra.mxu0 0
      %2030 = vmatprep.subr.bf16.mxu0 0
      %2031 = vmatpush1.bf16.msra.mxu0 0
      %2032 = vmatprep.subr.bf16.mxu0 0
      %2033 = vmatpush1.bf16.msra.mxu0 0
      %2034 = vmatprep.subr.bf16.mxu0 0
      %2035 = vmatpush1.bf16.msra.mxu0 0
      %2036 = vmatprep.subr.bf16.mxu0 0
      %2037 = vmatpush1.bf16.msra.mxu0 %v1996
      %2038 = vmatprep.subr.bf16.mxu0 0
      %2039 = vmatpush2.bf16.msra.mxu0 0
      %2040 = vmatprep.subr.bf16.mxu0 0
      %2041 = vmatpush2.bf16.msra.mxu0 0
      %2042 = vmatprep.subr.bf16.mxu0 0
      %2043 = vmatpush2.bf16.msra.mxu0 0
      %2044 = vmatprep.subr.bf16.mxu0 0
      %2045 = vmatpush2.bf16.msra.mxu0 0
      %2046 = vmatprep.subr.bf16.mxu0 0
      %2047 = vmatpush2.bf16.msra.mxu0 0
      %2048 = vmatprep.subr.bf16.mxu0 0
      %2049 = vmatpush2.bf16.msra.mxu0 0
      %2050 = vmatprep.subr.bf16.mxu0 0
      %2051 = vmatpush2.bf16.msra.mxu0 0
      %2052 = vmatprep.subr.bf16.mxu0 0
      %2053 = vmatpush2.bf16.msra.mxu0 0
      %2054 = vmatprep.mubr.bf16.mxu0 0
      %2055 = vmatmul.mubr.bf16.gmra.mxu0 %v1999
      %v2056 = vpop.f32.mrf.mxu0
      %v2057 = vadd.f32 0.0, %v2056
      %v2058 = vpop.f32.mrf.mxu0
      %v2059 = vpop.f32.mrf.mxu0
      %v2060 = vadd.f32 0.0, %v2059
      %v2061 = vpop.f32.mrf.mxu0
      %2062 = vmatprep.mubr.bf16.mxu0 0
      %2063 = vmatmul.mubr.bf16.gmra.mxu0 %v2002
      %v2064 = vpop.f32.mrf.mxu0
      %v2065 = vadd.f32 0.0, %v2064
      %v2066 = vpop.f32.mrf.mxu0
      %v2067 = vpop.f32.mrf.mxu0
      %v2068 = vadd.f32 0.0, %v2067
      %v2069 = vpop.f32.mrf.mxu0
      %2070 = vmatprep.mubr.bf16.mxu0 0
      %2071 = vmatmul.mubr.bf16.gmra.mxu0 %v2005
      %v2072 = vpop.f32.mrf.mxu0
      %v2073 = vadd.f32 0.0, %v2072
      %v2074 = vpop.f32.mrf.mxu0
      %v2075 = vpop.f32.mrf.mxu0
      %v2076 = vadd.f32 0.0, %v2075
      %v2077 = vpop.f32.mrf.mxu0
      %2078 = vmatprep.mubr.bf16.mxu0 0
      %2079 = vmatmul.mubr.bf16.gmra.mxu0 %v2008
      %v2080 = vpop.f32.mrf.mxu0
      %v2081 = vadd.f32 0.0, %v2080
      %v2082 = vpop.f32.mrf.mxu0
      %v2083 = vpop.f32.mrf.mxu0
      %v2084 = vadd.f32 0.0, %v2083
      %v2085 = vpop.f32.mrf.mxu0
      %2086 = vmatprep.mubr.bf16.mxu0 0
      %2087 = vmatmul.mubr.bf16.gmra.mxu0 %v2011
      %v2088 = vpop.f32.mrf.mxu0
      %v2089 = vadd.f32 0.0, %v2088
      %v2090 = vpop.f32.mrf.mxu0
      %v2091 = vpop.f32.mrf.mxu0
      %v2092 = vadd.f32 0.0, %v2091
      %v2093 = vpop.f32.mrf.mxu0
      %2094 = vmatprep.mubr.bf16.mxu0 0
      %2095 = vmatmul.mubr.bf16.gmra.mxu0 %v2014
      %v2096 = vpop.f32.mrf.mxu0
      %v2097 = vadd.f32 0.0, %v2096
      %v2098 = vpop.f32.mrf.mxu0
      %v2099 = vpop.f32.mrf.mxu0
      %v2100 = vadd.f32 0.0, %v2099
      %v2101 = vpop.f32.mrf.mxu0
      %2102 = vmatprep.mubr.bf16.mxu0 0
      %2103 = vmatmul.mubr.bf16.gmra.mxu0 %v2017
      %v2104 = vpop.f32.mrf.mxu0
      %v2105 = vadd.f32 0.0, %v2104
      %v2106 = vpop.f32.mrf.mxu0
      %v2107 = vpop.f32.mrf.mxu0
      %v2108 = vadd.f32 0.0, %v2107
      %v2109 = vpop.f32.mrf.mxu0
      %2110 = vmatprep.mubr.bf16.mxu0 0
      %2111 = vmatmul.mubr.bf16.gmra.mxu0 %v2020
      %v2112 = vpop.f32.mrf.mxu0
      %v2113 = vadd.f32 0.0, %v2112
      %v2114 = vpop.f32.mrf.mxu0
      %v2115 = vpop.f32.mrf.mxu0
      %v2116 = vadd.f32 0.0, %v2115
      %v2117 = vpop.f32.mrf.mxu0
      %2118 = vdwg.mxu0
      %v2119 = vadd.f32 %v1733, %v2057
      %v2120 = vadd.f32 %v1734, %v2060
      %v2121 = vadd.f32 %v1735, %v2065
      %v2122 = vadd.f32 %v1736, %v2068
      %v2123 = vadd.f32 %v1737, %v2073
      %v2124 = vadd.f32 %v1738, %v2076
      %v2125 = vadd.f32 %v1739, %v2081
      %v2126 = vadd.f32 %v1740, %v2084
      %v2127 = vadd.f32 %v1741, %v2089
      %v2128 = vadd.f32 %v1742, %v2092
      %v2129 = vadd.f32 %v1743, %v2097
      %v2130 = vadd.f32 %v1744, %v2100
      %v2131 = vadd.f32 %v1745, %v2105
      %v2132 = vadd.f32 %v1746, %v2108
      %v2133 = vadd.f32 %v1747, %v2113
      %v2134 = vadd.f32 %v1748, %v2116
      %v2135 = vld [vmem:[%s632] sm:$0xe]
      %v2136 = vld [vmem:[%s632 + $0xc] sm:$0xe]
      %v2137 = vld [vmem:[%s632 + $0x18] sm:$0xe]
      %v2138 = vld [vmem:[%s632 + $0x24] sm:$0xe]
      %v2139 = vld [vmem:[%s632 + $0x30] sm:$0xe]
      %v2140 = vld [vmem:[%s632 + $0x3c] sm:$0xe]
      %v2141 = vld [vmem:[%s632 + $0x48] sm:$0xe]
      %v2142 = vld [vmem:[%s632 + $0x54] sm:$0xe]
      %v2167 = vrot.slane %v2135, 5
      %v2168 = vrot.slane %v2167, 4
      %v2169 = vrot.slane %v1750, 5
      %v2170 = vsel %vm1320, %v2168, %v2169
      %v2171 = vrot.slane %v2169, 4
      %v2172 = vrot.slane %v1751, 5
      %v2173 = vsel %vm1320, %v2171, %v2172
      %v2174 = vrot.slane %v2136, 5
      %v2175 = vrot.slane %v2174, 4
      %v2176 = vrot.slane %v1753, 5
      %v2177 = vsel %vm1320, %v2175, %v2176
      %v2178 = vrot.slane %v2176, 4
      %v2179 = vrot.slane %v1754, 5
      %v2180 = vsel %vm1320, %v2178, %v2179
      %v2181 = vrot.slane %v2137, 5
      %v2182 = vrot.slane %v2181, 4
      %v2183 = vrot.slane %v1756, 5
      %v2184 = vsel %vm1320, %v2182, %v2183
      %v2185 = vrot.slane %v2183, 4
      %v2186 = vrot.slane %v1757, 5
      %v2187 = vsel %vm1320, %v2185, %v2186
      %v2188 = vrot.slane %v2138, 5
      %v2189 = vrot.slane %v2188, 4
      %v2190 = vrot.slane %v1759, 5
      %v2191 = vsel %vm1320, %v2189, %v2190
      %v2192 = vrot.slane %v2190, 4
      %v2193 = vrot.slane %v1760, 5
      %v2194 = vsel %vm1320, %v2192, %v2193
      %v2195 = vrot.slane %v2139, 5
      %v2196 = vrot.slane %v2195, 4
      %v2197 = vrot.slane %v1762, 5
      %v2198 = vsel %vm1320, %v2196, %v2197
      %v2199 = vrot.slane %v2197, 4
      %v2200 = vrot.slane %v1763, 5
      %v2201 = vsel %vm1320, %v2199, %v2200
      %v2202 = vrot.slane %v2140, 5
      %v2203 = vrot.slane %v2202, 4
      %v2204 = vrot.slane %v1765, 5
      %v2205 = vsel %vm1320, %v2203, %v2204
      %v2206 = vrot.slane %v2204, 4
      %v2207 = vrot.slane %v1766, 5
      %v2208 = vsel %vm1320, %v2206, %v2207
      %v2209 = vrot.slane %v2141, 5
      %v2210 = vrot.slane %v2209, 4
      %v2211 = vrot.slane %v1768, 5
      %v2212 = vsel %vm1320, %v2210, %v2211
      %v2213 = vrot.slane %v2211, 4
      %v2214 = vrot.slane %v1769, 5
      %v2215 = vsel %vm1320, %v2213, %v2214
      %v2216 = vrot.slane %v2142, 5
      %v2217 = vrot.slane %v2216, 4
      %v2218 = vrot.slane %v1771, 5
      %v2219 = vsel %vm1320, %v2217, %v2218
      %v2220 = vrot.slane %v2218, 4
      %v2221 = vrot.slane %v1772, 5
      %v2222 = vsel %vm1320, %v2220, %v2221
      %s2223 = scalar_lea.vmem %s3, 40
      %v2224 = vld [vmem:[%s2223] sm:$0xf]
      %v2225 = vld [vmem:[%s2223 + $0x4] sm:$0xf]
      %v2226 = vunpack.c.l.b16 %v2170
      %v2227 = vunpack.c.l.b16 %v2173
      %v2228 = vunpack.c.l.b16 %v2177
      %v2229 = vunpack.c.l.b16 %v2180
      %v2230 = vunpack.c.l.b16 %v2184
      %v2231 = vunpack.c.l.b16 %v2187
      %v2232 = vunpack.c.l.b16 %v2191
      %v2233 = vunpack.c.l.b16 %v2194
      %v2234 = vunpack.c.l.b16 %v2198
      %v2235 = vunpack.c.l.b16 %v2201
      %v2236 = vunpack.c.l.b16 %v2205
      %v2237 = vunpack.c.l.b16 %v2208
      %v2238 = vunpack.c.l.b16 %v2212
      %v2239 = vunpack.c.l.b16 %v2215
      %v2240 = vunpack.c.l.b16 %v2219
      %v2241 = vunpack.c.l.b16 %v2222
      %v2242 = vpack.c.b16 %v2227, %v2226
      %v2243 = vpack.c.b16 %v2229, %v2228
      %v2244 = vpack.c.b16 %v2231, %v2230
      %v2245 = vpack.c.b16 %v2233, %v2232
      %v2246 = vpack.c.b16 %v2235, %v2234
      %v2247 = vpack.c.b16 %v2237, %v2236
      %v2248 = vpack.c.b16 %v2239, %v2238
      %v2249 = vpack.c.b16 %v2241, %v2240
      %v2252 = vunpack.c.l.b16 %v2224
      %v2253 = vunpack.c.l.b16 %v2225
      %v2254 = vpack.c.b16 %v2253, %v2252
      %v2257 = vsel %vm1005, %v2242, 0
      %v2260 = vsel %vm1005, %v2243, 0
      %v2263 = vsel %vm1005, %v2244, 0
      %v2266 = vsel %vm1005, %v2245, 0
      %v2269 = vsel %vm1005, %v2246, 0
      %v2272 = vsel %vm1005, %v2247, 0
      %v2275 = vsel %vm1005, %v2248, 0
      %v2278 = vsel %vm1005, %v2249, 0
      %2280 = vmatprep.subr.bf16.mxu0 0
      %2281 = vmatpush1.bf16.msra.mxu0 0
      %2282 = vmatprep.subr.bf16.mxu0 0
      %2283 = vmatpush1.bf16.msra.mxu0 0
      %2284 = vmatprep.subr.bf16.mxu0 0
      %2285 = vmatpush1.bf16.msra.mxu0 0
      %2286 = vmatprep.subr.bf16.mxu0 0
      %2287 = vmatpush1.bf16.msra.mxu0 0
      %2288 = vmatprep.subr.bf16.mxu0 0
      %2289 = vmatpush1.bf16.msra.mxu0 0
      %2290 = vmatprep.subr.bf16.mxu0 0
      %2291 = vmatpush1.bf16.msra.mxu0 0
      %2292 = vmatprep.subr.bf16.mxu0 0
      %2293 = vmatpush1.bf16.msra.mxu0 0
      %2294 = vmatprep.subr.bf16.mxu0 0
      %2295 = vmatpush1.bf16.msra.mxu0 %v2254
      %2296 = vmatprep.subr.bf16.mxu0 0
      %2297 = vmatpush2.bf16.msra.mxu0 0
      %2298 = vmatprep.subr.bf16.mxu0 0
      %2299 = vmatpush2.bf16.msra.mxu0 0
      %2300 = vmatprep.subr.bf16.mxu0 0
      %2301 = vmatpush2.bf16.msra.mxu0 0
      %2302 = vmatprep.subr.bf16.mxu0 0
      %2303 = vmatpush2.bf16.msra.mxu0 0
      %2304 = vmatprep.subr.bf16.mxu0 0
      %2305 = vmatpush2.bf16.msra.mxu0 0
      %2306 = vmatprep.subr.bf16.mxu0 0
      %2307 = vmatpush2.bf16.msra.mxu0 0
      %2308 = vmatprep.subr.bf16.mxu0 0
      %2309 = vmatpush2.bf16.msra.mxu0 0
      %2310 = vmatprep.subr.bf16.mxu0 0
      %2311 = vmatpush2.bf16.msra.mxu0 0
      %2312 = vmatprep.mubr.bf16.mxu0 0
      %2313 = vmatmul.mubr.bf16.gmra.mxu0 %v2257
      %v2314 = vpop.f32.mrf.mxu0
      %v2315 = vadd.f32 0.0, %v2314
      %v2316 = vpop.f32.mrf.mxu0
      %v2317 = vpop.f32.mrf.mxu0
      %v2318 = vadd.f32 0.0, %v2317
      %v2319 = vpop.f32.mrf.mxu0
      %2320 = vmatprep.mubr.bf16.mxu0 0
      %2321 = vmatmul.mubr.bf16.gmra.mxu0 %v2260
      %v2322 = vpop.f32.mrf.mxu0
      %v2323 = vadd.f32 0.0, %v2322
      %v2324 = vpop.f32.mrf.mxu0
      %v2325 = vpop.f32.mrf.mxu0
      %v2326 = vadd.f32 0.0, %v2325
      %v2327 = vpop.f32.mrf.mxu0
      %2328 = vmatprep.mubr.bf16.mxu0 0
      %2329 = vmatmul.mubr.bf16.gmra.mxu0 %v2263
      %v2330 = vpop.f32.mrf.mxu0
      %v2331 = vadd.f32 0.0, %v2330
      %v2332 = vpop.f32.mrf.mxu0
      %v2333 = vpop.f32.mrf.mxu0
      %v2334 = vadd.f32 0.0, %v2333
      %v2335 = vpop.f32.mrf.mxu0
      %2336 = vmatprep.mubr.bf16.mxu0 0
      %2337 = vmatmul.mubr.bf16.gmra.mxu0 %v2266
      %v2338 = vpop.f32.mrf.mxu0
      %v2339 = vadd.f32 0.0, %v2338
      %v2340 = vpop.f32.mrf.mxu0
      %v2341 = vpop.f32.mrf.mxu0
      %v2342 = vadd.f32 0.0, %v2341
      %v2343 = vpop.f32.mrf.mxu0
      %2344 = vmatprep.mubr.bf16.mxu0 0
      %2345 = vmatmul.mubr.bf16.gmra.mxu0 %v2269
      %v2346 = vpop.f32.mrf.mxu0
      %v2347 = vadd.f32 0.0, %v2346
      %v2348 = vpop.f32.mrf.mxu0
      %v2349 = vpop.f32.mrf.mxu0
      %v2350 = vadd.f32 0.0, %v2349
      %v2351 = vpop.f32.mrf.mxu0
      %2352 = vmatprep.mubr.bf16.mxu0 0
      %2353 = vmatmul.mubr.bf16.gmra.mxu0 %v2272
      %v2354 = vpop.f32.mrf.mxu0
      %v2355 = vadd.f32 0.0, %v2354
      %v2356 = vpop.f32.mrf.mxu0
      %v2357 = vpop.f32.mrf.mxu0
      %v2358 = vadd.f32 0.0, %v2357
      %v2359 = vpop.f32.mrf.mxu0
      %2360 = vmatprep.mubr.bf16.mxu0 0
      %2361 = vmatmul.mubr.bf16.gmra.mxu0 %v2275
      %v2362 = vpop.f32.mrf.mxu0
      %v2363 = vadd.f32 0.0, %v2362
      %v2364 = vpop.f32.mrf.mxu0
      %v2365 = vpop.f32.mrf.mxu0
      %v2366 = vadd.f32 0.0, %v2365
      %v2367 = vpop.f32.mrf.mxu0
      %2368 = vmatprep.mubr.bf16.mxu0 0
      %2369 = vmatmul.mubr.bf16.gmra.mxu0 %v2278
      %v2370 = vpop.f32.mrf.mxu0
      %v2371 = vadd.f32 0.0, %v2370
      %v2372 = vpop.f32.mrf.mxu0
      %v2373 = vpop.f32.mrf.mxu0
      %v2374 = vadd.f32 0.0, %v2373
      %v2375 = vpop.f32.mrf.mxu0
      %2376 = vdwg.mxu0
      %v2377 = vadd.f32 %v2119, %v2315
      %v2378 = vadd.f32 %v2120, %v2318
      %v2379 = vadd.f32 %v2121, %v2323
      %v2380 = vadd.f32 %v2122, %v2326
      %v2381 = vadd.f32 %v2123, %v2331
      %v2382 = vadd.f32 %v2124, %v2334
      %v2383 = vadd.f32 %v2125, %v2339
      %v2384 = vadd.f32 %v2126, %v2342
      %v2385 = vadd.f32 %v2127, %v2347
      %v2386 = vadd.f32 %v2128, %v2350
      %v2387 = vadd.f32 %v2129, %v2355
      %v2388 = vadd.f32 %v2130, %v2358
      %v2389 = vadd.f32 %v2131, %v2363
      %v2390 = vadd.f32 %v2132, %v2366
      %v2391 = vadd.f32 %v2133, %v2371
      %v2392 = vadd.f32 %v2134, %v2374
      %s2393 = scalar_lea.vmem [#allocation2], 24
      %v2394 = vld [vmem:[%s2393] sm:$0xf]
      %v2395 = vld [vmem:[%s2393 + $0x4] sm:$0xf]
      %v2396 = vld [vmem:[%s2393 + $0xc] sm:$0xf]
      %v2397 = vld [vmem:[%s2393 + $0x10] sm:$0xf]
      %v2398 = vld [vmem:[%s2393 + $0x18] sm:$0xf]
      %v2399 = vld [vmem:[%s2393 + $0x1c] sm:$0xf]
      %v2400 = vld [vmem:[%s2393 + $0x24] sm:$0xf]
      %v2401 = vld [vmem:[%s2393 + $0x28] sm:$0xf]
      %v2402 = vld [vmem:[%s2393 + $0x30] sm:$0xf]
      %v2403 = vld [vmem:[%s2393 + $0x34] sm:$0xf]
      %v2404 = vld [vmem:[%s2393 + $0x3c] sm:$0xf]
      %v2405 = vld [vmem:[%s2393 + $0x40] sm:$0xf]
      %v2406 = vld [vmem:[%s2393 + $0x48] sm:$0xf]
      %v2407 = vld [vmem:[%s2393 + $0x4c] sm:$0xf]
      %v2408 = vld [vmem:[%s2393 + $0x54] sm:$0xf]
      %v2409 = vld [vmem:[%s2393 + $0x58] sm:$0xf]
      %s2410 = scalar_lea.vmem %s3, 48
      %v2411 = vld [vmem:[%s2410] sm:$0xf]
      %v2412 = vld [vmem:[%s2410 + $0x4] sm:$0xf]
      %v2429 = vunpack.c.l.b16 %v2394
      %v2430 = vunpack.c.l.b16 %v2395
      %v2431 = vunpack.c.l.b16 %v2396
      %v2432 = vunpack.c.l.b16 %v2397
      %v2433 = vunpack.c.l.b16 %v2398
      %v2434 = vunpack.c.l.b16 %v2399
      %v2435 = vunpack.c.l.b16 %v2400
      %v2436 = vunpack.c.l.b16 %v2401
      %v2437 = vunpack.c.l.b16 %v2402
      %v2438 = vunpack.c.l.b16 %v2403
      %v2439 = vunpack.c.l.b16 %v2404
      %v2440 = vunpack.c.l.b16 %v2405
      %v2441 = vunpack.c.l.b16 %v2406
      %v2442 = vunpack.c.l.b16 %v2407
      %v2443 = vunpack.c.l.b16 %v2408
      %v2444 = vunpack.c.l.b16 %v2409
      %v2445 = vpack.c.b16 %v2430, %v2429
      %v2446 = vpack.c.b16 %v2432, %v2431
      %v2447 = vpack.c.b16 %v2434, %v2433
      %v2448 = vpack.c.b16 %v2436, %v2435
      %v2449 = vpack.c.b16 %v2438, %v2437
      %v2450 = vpack.c.b16 %v2440, %v2439
      %v2451 = vpack.c.b16 %v2442, %v2441
      %v2452 = vpack.c.b16 %v2444, %v2443
      %v2455 = vunpack.c.l.b16 %v2411
      %v2456 = vunpack.c.l.b16 %v2412
      %v2457 = vpack.c.b16 %v2456, %v2455
      %v2460 = vsel %vm1005, %v2445, 0
      %v2463 = vsel %vm1005, %v2446, 0
      %v2466 = vsel %vm1005, %v2447, 0
      %v2469 = vsel %vm1005, %v2448, 0
      %v2472 = vsel %vm1005, %v2449, 0
      %v2475 = vsel %vm1005, %v2450, 0
      %v2478 = vsel %vm1005, %v2451, 0
      %v2481 = vsel %vm1005, %v2452, 0
      %2483 = vmatprep.subr.bf16.mxu0 0
      %2484 = vmatpush1.bf16.msra.mxu0 0
      %2485 = vmatprep.subr.bf16.mxu0 0
      %2486 = vmatpush1.bf16.msra.mxu0 0
      %2487 = vmatprep.subr.bf16.mxu0 0
      %2488 = vmatpush1.bf16.msra.mxu0 0
      %2489 = vmatprep.subr.bf16.mxu0 0
      %2490 = vmatpush1.bf16.msra.mxu0 0
      %2491 = vmatprep.subr.bf16.mxu0 0
      %2492 = vmatpush1.bf16.msra.mxu0 0
      %2493 = vmatprep.subr.bf16.mxu0 0
      %2494 = vmatpush1.bf16.msra.mxu0 0
      %2495 = vmatprep.subr.bf16.mxu0 0
      %2496 = vmatpush1.bf16.msra.mxu0 0
      %2497 = vmatprep.subr.bf16.mxu0 0
      %2498 = vmatpush1.bf16.msra.mxu0 %v2457
      %2499 = vmatprep.subr.bf16.mxu0 0
      %2500 = vmatpush2.bf16.msra.mxu0 0
      %2501 = vmatprep.subr.bf16.mxu0 0
      %2502 = vmatpush2.bf16.msra.mxu0 0
      %2503 = vmatprep.subr.bf16.mxu0 0
      %2504 = vmatpush2.bf16.msra.mxu0 0
      %2505 = vmatprep.subr.bf16.mxu0 0
      %2506 = vmatpush2.bf16.msra.mxu0 0
      %2507 = vmatprep.subr.bf16.mxu0 0
      %2508 = vmatpush2.bf16.msra.mxu0 0
      %2509 = vmatprep.subr.bf16.mxu0 0
      %2510 = vmatpush2.bf16.msra.mxu0 0
      %2511 = vmatprep.subr.bf16.mxu0 0
      %2512 = vmatpush2.bf16.msra.mxu0 0
      %2513 = vmatprep.subr.bf16.mxu0 0
      %2514 = vmatpush2.bf16.msra.mxu0 0
      %2515 = vmatprep.mubr.bf16.mxu0 0
      %2516 = vmatmul.mubr.bf16.gmra.mxu0 %v2460
      %v2517 = vpop.f32.mrf.mxu0
      %v2518 = vadd.f32 0.0, %v2517
      %v2519 = vpop.f32.mrf.mxu0
      %v2520 = vpop.f32.mrf.mxu0
      %v2521 = vadd.f32 0.0, %v2520
      %v2522 = vpop.f32.mrf.mxu0
      %2523 = vmatprep.mubr.bf16.mxu0 0
      %2524 = vmatmul.mubr.bf16.gmra.mxu0 %v2463
      %v2525 = vpop.f32.mrf.mxu0
      %v2526 = vadd.f32 0.0, %v2525
      %v2527 = vpop.f32.mrf.mxu0
      %v2528 = vpop.f32.mrf.mxu0
      %v2529 = vadd.f32 0.0, %v2528
      %v2530 = vpop.f32.mrf.mxu0
      %2531 = vmatprep.mubr.bf16.mxu0 0
      %2532 = vmatmul.mubr.bf16.gmra.mxu0 %v2466
      %v2533 = vpop.f32.mrf.mxu0
      %v2534 = vadd.f32 0.0, %v2533
      %v2535 = vpop.f32.mrf.mxu0
      %v2536 = vpop.f32.mrf.mxu0
      %v2537 = vadd.f32 0.0, %v2536
      %v2538 = vpop.f32.mrf.mxu0
      %2539 = vmatprep.mubr.bf16.mxu0 0
      %2540 = vmatmul.mubr.bf16.gmra.mxu0 %v2469
      %v2541 = vpop.f32.mrf.mxu0
      %v2542 = vadd.f32 0.0, %v2541
      %v2543 = vpop.f32.mrf.mxu0
      %v2544 = vpop.f32.mrf.mxu0
      %v2545 = vadd.f32 0.0, %v2544
      %v2546 = vpop.f32.mrf.mxu0
      %2547 = vmatprep.mubr.bf16.mxu0 0
      %2548 = vmatmul.mubr.bf16.gmra.mxu0 %v2472
      %v2549 = vpop.f32.mrf.mxu0
      %v2550 = vadd.f32 0.0, %v2549
      %v2551 = vpop.f32.mrf.mxu0
      %v2552 = vpop.f32.mrf.mxu0
      %v2553 = vadd.f32 0.0, %v2552
      %v2554 = vpop.f32.mrf.mxu0
      %2555 = vmatprep.mubr.bf16.mxu0 0
      %2556 = vmatmul.mubr.bf16.gmra.mxu0 %v2475
      %v2557 = vpop.f32.mrf.mxu0
      %v2558 = vadd.f32 0.0, %v2557
      %v2559 = vpop.f32.mrf.mxu0
      %v2560 = vpop.f32.mrf.mxu0
      %v2561 = vadd.f32 0.0, %v2560
      %v2562 = vpop.f32.mrf.mxu0
      %2563 = vmatprep.mubr.bf16.mxu0 0
      %2564 = vmatmul.mubr.bf16.gmra.mxu0 %v2478
      %v2565 = vpop.f32.mrf.mxu0
      %v2566 = vadd.f32 0.0, %v2565
      %v2567 = vpop.f32.mrf.mxu0
      %v2568 = vpop.f32.mrf.mxu0
      %v2569 = vadd.f32 0.0, %v2568
      %v2570 = vpop.f32.mrf.mxu0
      %2571 = vmatprep.mubr.bf16.mxu0 0
      %2572 = vmatmul.mubr.bf16.gmra.mxu0 %v2481
      %v2573 = vpop.f32.mrf.mxu0
      %v2574 = vadd.f32 0.0, %v2573
      %v2575 = vpop.f32.mrf.mxu0
      %v2576 = vpop.f32.mrf.mxu0
      %v2577 = vadd.f32 0.0, %v2576
      %v2578 = vpop.f32.mrf.mxu0
      %2579 = vdwg.mxu0
      %v2580 = vadd.f32 %v2377, %v2518
      %v2581 = vadd.f32 %v2378, %v2521
      %v2582 = vadd.f32 %v2379, %v2526
      %v2583 = vadd.f32 %v2380, %v2529
      %v2584 = vadd.f32 %v2381, %v2534
      %v2585 = vadd.f32 %v2382, %v2537
      %v2586 = vadd.f32 %v2383, %v2542
      %v2587 = vadd.f32 %v2384, %v2545
      %v2588 = vadd.f32 %v2385, %v2550
      %v2589 = vadd.f32 %v2386, %v2553
      %v2590 = vadd.f32 %v2387, %v2558
      %v2591 = vadd.f32 %v2388, %v2561
      %v2592 = vadd.f32 %v2389, %v2566
      %v2593 = vadd.f32 %v2390, %v2569
      %v2594 = vadd.f32 %v2391, %v2574
      %v2595 = vadd.f32 %v2392, %v2577
      %v2596 = vld [vmem:[%s2393] sm:$0xf]
      %v2597 = vld [vmem:[%s2393 + $0x4] sm:$0xf]
      %v2598 = vld [vmem:[%s2393 + $0x8] sm:$0x1]
      %v2599 = vld [vmem:[%s2393 + $0xc] sm:$0xf]
      %v2600 = vld [vmem:[%s2393 + $0x10] sm:$0xf]
      %v2601 = vld [vmem:[%s2393 + $0x14] sm:$0x1]
      %v2602 = vld [vmem:[%s2393 + $0x18] sm:$0xf]
      %v2603 = vld [vmem:[%s2393 + $0x1c] sm:$0xf]
      %v2604 = vld [vmem:[%s2393 + $0x20] sm:$0x1]
      %v2605 = vld [vmem:[%s2393 + $0x24] sm:$0xf]
      %v2606 = vld [vmem:[%s2393 + $0x28] sm:$0xf]
      %v2607 = vld [vmem:[%s2393 + $0x2c] sm:$0x1]
      %v2608 = vld [vmem:[%s2393 + $0x30] sm:$0xf]
      %v2609 = vld [vmem:[%s2393 + $0x34] sm:$0xf]
      %v2610 = vld [vmem:[%s2393 + $0x38] sm:$0x1]
      %v2611 = vld [vmem:[%s2393 + $0x3c] sm:$0xf]
      %v2612 = vld [vmem:[%s2393 + $0x40] sm:$0xf]
      %v2613 = vld [vmem:[%s2393 + $0x44] sm:$0x1]
      %v2614 = vld [vmem:[%s2393 + $0x48] sm:$0xf]
      %v2615 = vld [vmem:[%s2393 + $0x4c] sm:$0xf]
      %v2616 = vld [vmem:[%s2393 + $0x50] sm:$0x1]
      %v2617 = vld [vmem:[%s2393 + $0x54] sm:$0xf]
      %v2618 = vld [vmem:[%s2393 + $0x58] sm:$0xf]
      %v2619 = vld [vmem:[%s2393 + $0x5c] sm:$0x1]
      %v2621 = vshrl.u32 %v2596, 16
      %v2623 = vrot.slane %v2621, 4
      %v2624 = vshll.u32 %v2596, 16
      %v2626 = vrot.slane %v2624, 5
      %v2627 = vor.u32 %v2623, %v2626
      %v2628 = vrot.slane %v2627, 4
      %v2630 = vshll.u32 %v2597, 16
      %v2632 = vrot.slane %v2630, 5
      %v2633 = vsel %vm779, %v2628, %v2632
      %v2634 = vshrl.u32 %v2597, 16
      %v2636 = vrot.slane %v2634, 4
      %v2637 = vor.u32 %v2636, %v2632
      %v2638 = vrot.slane %v2637, 4
      %v2640 = vshll.u32 %v2598, 16
      %v2642 = vrot.slane %v2640, 5
      %v2643 = vsel %vm779, %v2638, %v2642
      %v2645 = vshrl.u32 %v2599, 16
      %v2647 = vrot.slane %v2645, 4
      %v2648 = vshll.u32 %v2599, 16
      %v2650 = vrot.slane %v2648, 5
      %v2651 = vor.u32 %v2647, %v2650
      %v2652 = vrot.slane %v2651, 4
      %v2654 = vshll.u32 %v2600, 16
      %v2656 = vrot.slane %v2654, 5
      %v2657 = vsel %vm779, %v2652, %v2656
      %v2658 = vshrl.u32 %v2600, 16
      %v2660 = vrot.slane %v2658, 4
      %v2661 = vor.u32 %v2660, %v2656
      %v2662 = vrot.slane %v2661, 4
      %v2664 = vshll.u32 %v2601, 16
      %v2666 = vrot.slane %v2664, 5
      %v2667 = vsel %vm779, %v2662, %v2666
      %v2669 = vshrl.u32 %v2602, 16
      %v2671 = vrot.slane %v2669, 4
      %v2672 = vshll.u32 %v2602, 16
      %v2674 = vrot.slane %v2672, 5
      %v2675 = vor.u32 %v2671, %v2674
      %v2676 = vrot.slane %v2675, 4
      %v2678 = vshll.u32 %v2603, 16
      %v2680 = vrot.slane %v2678, 5
      %v2681 = vsel %vm779, %v2676, %v2680
      %v2682 = vshrl.u32 %v2603, 16
      %v2684 = vrot.slane %v2682, 4
      %v2685 = vor.u32 %v2684, %v2680
      %v2686 = vrot.slane %v2685, 4
      %v2688 = vshll.u32 %v2604, 16
      %v2690 = vrot.slane %v2688, 5
      %v2691 = vsel %vm779, %v2686, %v2690
      %v2693 = vshrl.u32 %v2605, 16
      %v2695 = vrot.slane %v2693, 4
      %v2696 = vshll.u32 %v2605, 16
      %v2698 = vrot.slane %v2696, 5
      %v2699 = vor.u32 %v2695, %v2698
      %v2700 = vrot.slane %v2699, 4
      %v2702 = vshll.u32 %v2606, 16
      %v2704 = vrot.slane %v2702, 5
      %v2705 = vsel %vm779, %v2700, %v2704
      %v2706 = vshrl.u32 %v2606, 16
      %v2708 = vrot.slane %v2706, 4
      %v2709 = vor.u32 %v2708, %v2704
      %v2710 = vrot.slane %v2709, 4
      %v2712 = vshll.u32 %v2607, 16
      %v2714 = vrot.slane %v2712, 5
      %v2715 = vsel %vm779, %v2710, %v2714
      %v2717 = vshrl.u32 %v2608, 16
      %v2719 = vrot.slane %v2717, 4
      %v2720 = vshll.u32 %v2608, 16
      %v2722 = vrot.slane %v2720, 5
      %v2723 = vor.u32 %v2719, %v2722
      %v2724 = vrot.slane %v2723, 4
      %v2726 = vshll.u32 %v2609, 16
      %v2728 = vrot.slane %v2726, 5
      %v2729 = vsel %vm779, %v2724, %v2728
      %v2730 = vshrl.u32 %v2609, 16
      %v2732 = vrot.slane %v2730, 4
      %v2733 = vor.u32 %v2732, %v2728
      %v2734 = vrot.slane %v2733, 4
      %v2736 = vshll.u32 %v2610, 16
      %v2738 = vrot.slane %v2736, 5
      %v2739 = vsel %vm779, %v2734, %v2738
      %v2741 = vshrl.u32 %v2611, 16
      %v2743 = vrot.slane %v2741, 4
      %v2744 = vshll.u32 %v2611, 16
      %v2746 = vrot.slane %v2744, 5
      %v2747 = vor.u32 %v2743, %v2746
      %v2748 = vrot.slane %v2747, 4
      %v2750 = vshll.u32 %v2612, 16
      %v2752 = vrot.slane %v2750, 5
      %v2753 = vsel %vm779, %v2748, %v2752
      %v2754 = vshrl.u32 %v2612, 16
      %v2756 = vrot.slane %v2754, 4
      %v2757 = vor.u32 %v2756, %v2752
      %v2758 = vrot.slane %v2757, 4
      %v2760 = vshll.u32 %v2613, 16
      %v2762 = vrot.slane %v2760, 5
      %v2763 = vsel %vm779, %v2758, %v2762
      %v2765 = vshrl.u32 %v2614, 16
      %v2767 = vrot.slane %v2765, 4
      %v2768 = vshll.u32 %v2614, 16
      %v2770 = vrot.slane %v2768, 5
      %v2771 = vor.u32 %v2767, %v2770
      %v2772 = vrot.slane %v2771, 4
      %v2774 = vshll.u32 %v2615, 16
      %v2776 = vrot.slane %v2774, 5
      %v2777 = vsel %vm779, %v2772, %v2776
      %v2778 = vshrl.u32 %v2615, 16
      %v2780 = vrot.slane %v2778, 4
      %v2781 = vor.u32 %v2780, %v2776
      %v2782 = vrot.slane %v2781, 4
      %v2784 = vshll.u32 %v2616, 16
      %v2786 = vrot.slane %v2784, 5
      %v2787 = vsel %vm779, %v2782, %v2786
      %v2789 = vshrl.u32 %v2617, 16
      %v2791 = vrot.slane %v2789, 4
      %v2792 = vshll.u32 %v2617, 16
      %v2794 = vrot.slane %v2792, 5
      %v2795 = vor.u32 %v2791, %v2794
      %v2796 = vrot.slane %v2795, 4
      %v2798 = vshll.u32 %v2618, 16
      %v2800 = vrot.slane %v2798, 5
      %v2801 = vsel %vm779, %v2796, %v2800
      %v2802 = vshrl.u32 %v2618, 16
      %v2804 = vrot.slane %v2802, 4
      %v2805 = vor.u32 %v2804, %v2800
      %v2806 = vrot.slane %v2805, 4
      %v2808 = vshll.u32 %v2619, 16
      %v2810 = vrot.slane %v2808, 5
      %v2811 = vsel %vm779, %v2806, %v2810
      %s2812 = scalar_lea.vmem %s3, 56
      %v2813 = vld [vmem:[%s2812] sm:$0xf]
      %v2814 = vld [vmem:[%s2812 + $0x4] sm:$0xf]
      %v2815 = vunpack.c.l.b16 %v2633
      %v2816 = vunpack.c.l.b16 %v2643
      %v2817 = vunpack.c.l.b16 %v2657
      %v2818 = vunpack.c.l.b16 %v2667
      %v2819 = vunpack.c.l.b16 %v2681
      %v2820 = vunpack.c.l.b16 %v2691
      %v2821 = vunpack.c.l.b16 %v2705
      %v2822 = vunpack.c.l.b16 %v2715
      %v2823 = vunpack.c.l.b16 %v2729
      %v2824 = vunpack.c.l.b16 %v2739
      %v2825 = vunpack.c.l.b16 %v2753
      %v2826 = vunpack.c.l.b16 %v2763
      %v2827 = vunpack.c.l.b16 %v2777
      %v2828 = vunpack.c.l.b16 %v2787
      %v2829 = vunpack.c.l.b16 %v2801
      %v2830 = vunpack.c.l.b16 %v2811
      %v2831 = vpack.c.b16 %v2816, %v2815
      %v2832 = vpack.c.b16 %v2818, %v2817
      %v2833 = vpack.c.b16 %v2820, %v2819
      %v2834 = vpack.c.b16 %v2822, %v2821
      %v2835 = vpack.c.b16 %v2824, %v2823
      %v2836 = vpack.c.b16 %v2826, %v2825
      %v2837 = vpack.c.b16 %v2828, %v2827
      %v2838 = vpack.c.b16 %v2830, %v2829
      %v2841 = vunpack.c.l.b16 %v2813
      %v2842 = vunpack.c.l.b16 %v2814
      %v2843 = vpack.c.b16 %v2842, %v2841
      %v2846 = vsel %vm1005, %v2831, 0
      %v2849 = vsel %vm1005, %v2832, 0
      %v2852 = vsel %vm1005, %v2833, 0
      %v2855 = vsel %vm1005, %v2834, 0
      %v2858 = vsel %vm1005, %v2835, 0
      %v2861 = vsel %vm1005, %v2836, 0
      %v2864 = vsel %vm1005, %v2837, 0
      %v2867 = vsel %vm1005, %v2838, 0
      %2869 = vmatprep.subr.bf16.mxu0 0
      %2870 = vmatpush1.bf16.msra.mxu0 0
      %2871 = vmatprep.subr.bf16.mxu0 0
      %2872 = vmatpush1.bf16.msra.mxu0 0
      %2873 = vmatprep.subr.bf16.mxu0 0
      %2874 = vmatpush1.bf16.msra.mxu0 0
      %2875 = vmatprep.subr.bf16.mxu0 0
      %2876 = vmatpush1.bf16.msra.mxu0 0
      %2877 = vmatprep.subr.bf16.mxu0 0
      %2878 = vmatpush1.bf16.msra.mxu0 0
      %2879 = vmatprep.subr.bf16.mxu0 0
      %2880 = vmatpush1.bf16.msra.mxu0 0
      %2881 = vmatprep.subr.bf16.mxu0 0
      %2882 = vmatpush1.bf16.msra.mxu0 0
      %2883 = vmatprep.subr.bf16.mxu0 0
      %2884 = vmatpush1.bf16.msra.mxu0 %v2843
      %2885 = vmatprep.subr.bf16.mxu0 0
      %2886 = vmatpush2.bf16.msra.mxu0 0
      %2887 = vmatprep.subr.bf16.mxu0 0
      %2888 = vmatpush2.bf16.msra.mxu0 0
      %2889 = vmatprep.subr.bf16.mxu0 0
      %2890 = vmatpush2.bf16.msra.mxu0 0
      %2891 = vmatprep.subr.bf16.mxu0 0
      %2892 = vmatpush2.bf16.msra.mxu0 0
      %2893 = vmatprep.subr.bf16.mxu0 0
      %2894 = vmatpush2.bf16.msra.mxu0 0
      %2895 = vmatprep.subr.bf16.mxu0 0
      %2896 = vmatpush2.bf16.msra.mxu0 0
      %2897 = vmatprep.subr.bf16.mxu0 0
      %2898 = vmatpush2.bf16.msra.mxu0 0
      %2899 = vmatprep.subr.bf16.mxu0 0
      %2900 = vmatpush2.bf16.msra.mxu0 0
      %2901 = vmatprep.mubr.bf16.mxu0 0
      %2902 = vmatmul.mubr.bf16.gmra.mxu0 %v2846
      %v2903 = vpop.f32.mrf.mxu0
      %v2904 = vadd.f32 0.0, %v2903
      %v2905 = vpop.f32.mrf.mxu0
      %v2906 = vpop.f32.mrf.mxu0
      %v2907 = vadd.f32 0.0, %v2906
      %v2908 = vpop.f32.mrf.mxu0
      %2909 = vmatprep.mubr.bf16.mxu0 0
      %2910 = vmatmul.mubr.bf16.gmra.mxu0 %v2849
      %v2911 = vpop.f32.mrf.mxu0
      %v2912 = vadd.f32 0.0, %v2911
      %v2913 = vpop.f32.mrf.mxu0
      %v2914 = vpop.f32.mrf.mxu0
      %v2915 = vadd.f32 0.0, %v2914
      %v2916 = vpop.f32.mrf.mxu0
      %2917 = vmatprep.mubr.bf16.mxu0 0
      %2918 = vmatmul.mubr.bf16.gmra.mxu0 %v2852
      %v2919 = vpop.f32.mrf.mxu0
      %v2920 = vadd.f32 0.0, %v2919
      %v2921 = vpop.f32.mrf.mxu0
      %v2922 = vpop.f32.mrf.mxu0
      %v2923 = vadd.f32 0.0, %v2922
      %v2924 = vpop.f32.mrf.mxu0
      %2925 = vmatprep.mubr.bf16.mxu0 0
      %2926 = vmatmul.mubr.bf16.gmra.mxu0 %v2855
      %v2927 = vpop.f32.mrf.mxu0
      %v2928 = vadd.f32 0.0, %v2927
      %v2929 = vpop.f32.mrf.mxu0
      %v2930 = vpop.f32.mrf.mxu0
      %v2931 = vadd.f32 0.0, %v2930
      %v2932 = vpop.f32.mrf.mxu0
      %2933 = vmatprep.mubr.bf16.mxu0 0
      %2934 = vmatmul.mubr.bf16.gmra.mxu0 %v2858
      %v2935 = vpop.f32.mrf.mxu0
      %v2936 = vadd.f32 0.0, %v2935
      %v2937 = vpop.f32.mrf.mxu0
      %v2938 = vpop.f32.mrf.mxu0
      %v2939 = vadd.f32 0.0, %v2938
      %v2940 = vpop.f32.mrf.mxu0
      %2941 = vmatprep.mubr.bf16.mxu0 0
      %2942 = vmatmul.mubr.bf16.gmra.mxu0 %v2861
      %v2943 = vpop.f32.mrf.mxu0
      %v2944 = vadd.f32 0.0, %v2943
      %v2945 = vpop.f32.mrf.mxu0
      %v2946 = vpop.f32.mrf.mxu0
      %v2947 = vadd.f32 0.0, %v2946
      %v2948 = vpop.f32.mrf.mxu0
      %2949 = vmatprep.mubr.bf16.mxu0 0
      %2950 = vmatmul.mubr.bf16.gmra.mxu0 %v2864
      %v2951 = vpop.f32.mrf.mxu0
      %v2952 = vadd.f32 0.0, %v2951
      %v2953 = vpop.f32.mrf.mxu0
      %v2954 = vpop.f32.mrf.mxu0
      %v2955 = vadd.f32 0.0, %v2954
      %v2956 = vpop.f32.mrf.mxu0
      %2957 = vmatprep.mubr.bf16.mxu0 0
      %2958 = vmatmul.mubr.bf16.gmra.mxu0 %v2867
      %v2959 = vpop.f32.mrf.mxu0
      %v2960 = vadd.f32 0.0, %v2959
      %v2961 = vpop.f32.mrf.mxu0
      %v2962 = vpop.f32.mrf.mxu0
      %v2963 = vadd.f32 0.0, %v2962
      %v2964 = vpop.f32.mrf.mxu0
      %2965 = vdwg.mxu0
      %v2966 = vadd.f32 %v2580, %v2904
      %v2967 = vadd.f32 %v2581, %v2907
      %v2968 = vadd.f32 %v2582, %v2912
      %v2969 = vadd.f32 %v2583, %v2915
      %v2970 = vadd.f32 %v2584, %v2920
      %v2971 = vadd.f32 %v2585, %v2923
      %v2972 = vadd.f32 %v2586, %v2928
      %v2973 = vadd.f32 %v2587, %v2931
      %v2974 = vadd.f32 %v2588, %v2936
      %v2975 = vadd.f32 %v2589, %v2939
      %v2976 = vadd.f32 %v2590, %v2944
      %v2977 = vadd.f32 %v2591, %v2947
      %v2978 = vadd.f32 %v2592, %v2952
      %v2979 = vadd.f32 %v2593, %v2955
      %v2980 = vadd.f32 %v2594, %v2960
      %v2981 = vadd.f32 %v2595, %v2963
      %v2982 = vld [vmem:[%s2393] sm:$0xe]
      %v2983 = vld [vmem:[%s2393 + $0xc] sm:$0xe]
      %v2984 = vld [vmem:[%s2393 + $0x18] sm:$0xe]
      %v2985 = vld [vmem:[%s2393 + $0x24] sm:$0xe]
      %v2986 = vld [vmem:[%s2393 + $0x30] sm:$0xe]
      %v2987 = vld [vmem:[%s2393 + $0x3c] sm:$0xe]
      %v2988 = vld [vmem:[%s2393 + $0x48] sm:$0xe]
      %v2989 = vld [vmem:[%s2393 + $0x54] sm:$0xe]
      %v3014 = vrot.slane %v2982, 5
      %v3015 = vrot.slane %v3014, 4
      %v3016 = vrot.slane %v2597, 5
      %v3017 = vsel %vm1320, %v3015, %v3016
      %v3018 = vrot.slane %v3016, 4
      %v3019 = vrot.slane %v2598, 5
      %v3020 = vsel %vm1320, %v3018, %v3019
      %v3021 = vrot.slane %v2983, 5
      %v3022 = vrot.slane %v3021, 4
      %v3023 = vrot.slane %v2600, 5
      %v3024 = vsel %vm1320, %v3022, %v3023
      %v3025 = vrot.slane %v3023, 4
      %v3026 = vrot.slane %v2601, 5
      %v3027 = vsel %vm1320, %v3025, %v3026
      %v3028 = vrot.slane %v2984, 5
      %v3029 = vrot.slane %v3028, 4
      %v3030 = vrot.slane %v2603, 5
      %v3031 = vsel %vm1320, %v3029, %v3030
      %v3032 = vrot.slane %v3030, 4
      %v3033 = vrot.slane %v2604, 5
      %v3034 = vsel %vm1320, %v3032, %v3033
      %v3035 = vrot.slane %v2985, 5
      %v3036 = vrot.slane %v3035, 4
      %v3037 = vrot.slane %v2606, 5
      %v3038 = vsel %vm1320, %v3036, %v3037
      %v3039 = vrot.slane %v3037, 4
      %v3040 = vrot.slane %v2607, 5
      %v3041 = vsel %vm1320, %v3039, %v3040
      %v3042 = vrot.slane %v2986, 5
      %v3043 = vrot.slane %v3042, 4
      %v3044 = vrot.slane %v2609, 5
      %v3045 = vsel %vm1320, %v3043, %v3044
      %v3046 = vrot.slane %v3044, 4
      %v3047 = vrot.slane %v2610, 5
      %v3048 = vsel %vm1320, %v3046, %v3047
      %v3049 = vrot.slane %v2987, 5
      %v3050 = vrot.slane %v3049, 4
      %v3051 = vrot.slane %v2612, 5
      %v3052 = vsel %vm1320, %v3050, %v3051
      %v3053 = vrot.slane %v3051, 4
      %v3054 = vrot.slane %v2613, 5
      %v3055 = vsel %vm1320, %v3053, %v3054
      %v3056 = vrot.slane %v2988, 5
      %v3057 = vrot.slane %v3056, 4
      %v3058 = vrot.slane %v2615, 5
      %v3059 = vsel %vm1320, %v3057, %v3058
      %v3060 = vrot.slane %v3058, 4
      %v3061 = vrot.slane %v2616, 5
      %v3062 = vsel %vm1320, %v3060, %v3061
      %v3063 = vrot.slane %v2989, 5
      %v3064 = vrot.slane %v3063, 4
      %v3065 = vrot.slane %v2618, 5
      %v3066 = vsel %vm1320, %v3064, %v3065
      %v3067 = vrot.slane %v3065, 4
      %v3068 = vrot.slane %v2619, 5
      %v3069 = vsel %vm1320, %v3067, %v3068
      %s3070 = scalar_lea.vmem %s3, 64
      %v3071 = vld [vmem:[%s3070] sm:$0xf]
      %v3072 = vld [vmem:[%s3070 + $0x4] sm:$0xf]
      %v3073 = vunpack.c.l.b16 %v3017
      %v3074 = vunpack.c.l.b16 %v3020
      %v3075 = vunpack.c.l.b16 %v3024
      %v3076 = vunpack.c.l.b16 %v3027
      %v3077 = vunpack.c.l.b16 %v3031
      %v3078 = vunpack.c.l.b16 %v3034
      %v3079 = vunpack.c.l.b16 %v3038
      %v3080 = vunpack.c.l.b16 %v3041
      %v3081 = vunpack.c.l.b16 %v3045
      %v3082 = vunpack.c.l.b16 %v3048
      %v3083 = vunpack.c.l.b16 %v3052
      %v3084 = vunpack.c.l.b16 %v3055
      %v3085 = vunpack.c.l.b16 %v3059
      %v3086 = vunpack.c.l.b16 %v3062
      %v3087 = vunpack.c.l.b16 %v3066
      %v3088 = vunpack.c.l.b16 %v3069
      %v3089 = vpack.c.b16 %v3074, %v3073
      %v3090 = vpack.c.b16 %v3076, %v3075
      %v3091 = vpack.c.b16 %v3078, %v3077
      %v3092 = vpack.c.b16 %v3080, %v3079
      %v3093 = vpack.c.b16 %v3082, %v3081
      %v3094 = vpack.c.b16 %v3084, %v3083
      %v3095 = vpack.c.b16 %v3086, %v3085
      %v3096 = vpack.c.b16 %v3088, %v3087
      %v3099 = vunpack.c.l.b16 %v3071
      %v3100 = vunpack.c.l.b16 %v3072
      %v3101 = vpack.c.b16 %v3100, %v3099
      %v3104 = vsel %vm1005, %v3089, 0
      %v3107 = vsel %vm1005, %v3090, 0
      %v3110 = vsel %vm1005, %v3091, 0
      %v3113 = vsel %vm1005, %v3092, 0
      %v3116 = vsel %vm1005, %v3093, 0
      %v3119 = vsel %vm1005, %v3094, 0
      %v3122 = vsel %vm1005, %v3095, 0
      %v3125 = vsel %vm1005, %v3096, 0
      %3127 = vmatprep.subr.bf16.mxu0 0
      %3128 = vmatpush1.bf16.msra.mxu0 0
      %3129 = vmatprep.subr.bf16.mxu0 0
      %3130 = vmatpush1.bf16.msra.mxu0 0
      %3131 = vmatprep.subr.bf16.mxu0 0
      %3132 = vmatpush1.bf16.msra.mxu0 0
      %3133 = vmatprep.subr.bf16.mxu0 0
      %3134 = vmatpush1.bf16.msra.mxu0 0
      %3135 = vmatprep.subr.bf16.mxu0 0
      %3136 = vmatpush1.bf16.msra.mxu0 0
      %3137 = vmatprep.subr.bf16.mxu0 0
      %3138 = vmatpush1.bf16.msra.mxu0 0
      %3139 = vmatprep.subr.bf16.mxu0 0
      %3140 = vmatpush1.bf16.msra.mxu0 0
      %3141 = vmatprep.subr.bf16.mxu0 0
      %3142 = vmatpush1.bf16.msra.mxu0 %v3101
      %3143 = vmatprep.subr.bf16.mxu0 0
      %3144 = vmatpush2.bf16.msra.mxu0 0
      %3145 = vmatprep.subr.bf16.mxu0 0
      %3146 = vmatpush2.bf16.msra.mxu0 0
      %3147 = vmatprep.subr.bf16.mxu0 0
      %3148 = vmatpush2.bf16.msra.mxu0 0
      %3149 = vmatprep.subr.bf16.mxu0 0
      %3150 = vmatpush2.bf16.msra.mxu0 0
      %3151 = vmatprep.subr.bf16.mxu0 0
      %3152 = vmatpush2.bf16.msra.mxu0 0
      %3153 = vmatprep.subr.bf16.mxu0 0
      %3154 = vmatpush2.bf16.msra.mxu0 0
      %3155 = vmatprep.subr.bf16.mxu0 0
      %3156 = vmatpush2.bf16.msra.mxu0 0
      %3157 = vmatprep.subr.bf16.mxu0 0
      %3158 = vmatpush2.bf16.msra.mxu0 0
      %3159 = vmatprep.mubr.bf16.mxu0 0
      %3160 = vmatmul.mubr.bf16.gmra.mxu0 %v3104
      %v3161 = vpop.f32.mrf.mxu0
      %v3162 = vadd.f32 0.0, %v3161
      %v3163 = vpop.f32.mrf.mxu0
      %v3164 = vpop.f32.mrf.mxu0
      %v3165 = vadd.f32 0.0, %v3164
      %v3166 = vpop.f32.mrf.mxu0
      %3167 = vmatprep.mubr.bf16.mxu0 0
      %3168 = vmatmul.mubr.bf16.gmra.mxu0 %v3107
      %v3169 = vpop.f32.mrf.mxu0
      %v3170 = vadd.f32 0.0, %v3169
      %v3171 = vpop.f32.mrf.mxu0
      %v3172 = vpop.f32.mrf.mxu0
      %v3173 = vadd.f32 0.0, %v3172
      %v3174 = vpop.f32.mrf.mxu0
      %3175 = vmatprep.mubr.bf16.mxu0 0
      %3176 = vmatmul.mubr.bf16.gmra.mxu0 %v3110
      %v3177 = vpop.f32.mrf.mxu0
      %v3178 = vadd.f32 0.0, %v3177
      %v3179 = vpop.f32.mrf.mxu0
      %v3180 = vpop.f32.mrf.mxu0
      %v3181 = vadd.f32 0.0, %v3180
      %v3182 = vpop.f32.mrf.mxu0
      %3183 = vmatprep.mubr.bf16.mxu0 0
      %3184 = vmatmul.mubr.bf16.gmra.mxu0 %v3113
      %v3185 = vpop.f32.mrf.mxu0
      %v3186 = vadd.f32 0.0, %v3185
      %v3187 = vpop.f32.mrf.mxu0
      %v3188 = vpop.f32.mrf.mxu0
      %v3189 = vadd.f32 0.0, %v3188
      %v3190 = vpop.f32.mrf.mxu0
      %3191 = vmatprep.mubr.bf16.mxu0 0
      %3192 = vmatmul.mubr.bf16.gmra.mxu0 %v3116
      %v3193 = vpop.f32.mrf.mxu0
      %v3194 = vadd.f32 0.0, %v3193
      %v3195 = vpop.f32.mrf.mxu0
      %v3196 = vpop.f32.mrf.mxu0
      %v3197 = vadd.f32 0.0, %v3196
      %v3198 = vpop.f32.mrf.mxu0
      %3199 = vmatprep.mubr.bf16.mxu0 0
      %3200 = vmatmul.mubr.bf16.gmra.mxu0 %v3119
      %v3201 = vpop.f32.mrf.mxu0
      %v3202 = vadd.f32 0.0, %v3201
      %v3203 = vpop.f32.mrf.mxu0
      %v3204 = vpop.f32.mrf.mxu0
      %v3205 = vadd.f32 0.0, %v3204
      %v3206 = vpop.f32.mrf.mxu0
      %3207 = vmatprep.mubr.bf16.mxu0 0
      %3208 = vmatmul.mubr.bf16.gmra.mxu0 %v3122
      %v3209 = vpop.f32.mrf.mxu0
      %v3210 = vadd.f32 0.0, %v3209
      %v3211 = vpop.f32.mrf.mxu0
      %v3212 = vpop.f32.mrf.mxu0
      %v3213 = vadd.f32 0.0, %v3212
      %v3214 = vpop.f32.mrf.mxu0
      %3215 = vmatprep.mubr.bf16.mxu0 0
      %3216 = vmatmul.mubr.bf16.gmra.mxu0 %v3125
      %v3217 = vpop.f32.mrf.mxu0
      %v3218 = vadd.f32 0.0, %v3217
      %v3219 = vpop.f32.mrf.mxu0
      %v3220 = vpop.f32.mrf.mxu0
      %v3221 = vadd.f32 0.0, %v3220
      %v3222 = vpop.f32.mrf.mxu0
      %3223 = vdwg.mxu0
      %v3224 = vadd.f32 %v2966, %v3162
      %v3225 = vadd.f32 %v2967, %v3165
      %v3226 = vadd.f32 %v2968, %v3170
      %v3227 = vadd.f32 %v2969, %v3173
      %v3228 = vadd.f32 %v2970, %v3178
      %v3229 = vadd.f32 %v2971, %v3181
      %v3230 = vadd.f32 %v2972, %v3186
      %v3231 = vadd.f32 %v2973, %v3189
      %v3232 = vadd.f32 %v2974, %v3194
      %v3233 = vadd.f32 %v2975, %v3197
      %v3234 = vadd.f32 %v2976, %v3202
      %v3235 = vadd.f32 %v2977, %v3205
      %v3236 = vadd.f32 %v2978, %v3210
      %v3237 = vadd.f32 %v2979, %v3213
      %v3238 = vadd.f32 %v2980, %v3218
      %v3239 = vadd.f32 %v2981, %v3221
      %v3240 = vld [vmem:[%s4] sm:$0x1]
      %v3242 = vlaneseq
      %v3243 = vshrl.u32 %v3242, 7
      %v3244 = vsub.s32 0, %v3243
      %v3245 = vrot.slane %v3240, %v3244
      %v3247 = vadd.f32 %v3224, %v3245
      %v3248 = vadd.f32 %v3225, %v3245
      %v3249 = vadd.f32 %v3226, %v3245
      %v3250 = vadd.f32 %v3227, %v3245
      %v3251 = vadd.f32 %v3228, %v3245
      %v3252 = vadd.f32 %v3229, %v3245
      %v3253 = vadd.f32 %v3230, %v3245
      %v3254 = vadd.f32 %v3231, %v3245
      %v3255 = vadd.f32 %v3232, %v3245
      %v3256 = vadd.f32 %v3233, %v3245
      %v3257 = vadd.f32 %v3234, %v3245
      %v3258 = vadd.f32 %v3235, %v3245
      %v3259 = vadd.f32 %v3236, %v3245
      %v3260 = vadd.f32 %v3237, %v3245
      %v3261 = vadd.f32 %v3238, %v3245
      %v3262 = vadd.f32 %v3239, %v3245
      %v3263 = vmax.f32 %v3247, 0.0
      %v3264 = vmax.f32 %v3248, 0.0
      %v3265 = vmax.f32 %v3249, 0.0
      %v3266 = vmax.f32 %v3250, 0.0
      %v3267 = vmax.f32 %v3251, 0.0
      %v3268 = vmax.f32 %v3252, 0.0
      %v3269 = vmax.f32 %v3253, 0.0
      %v3270 = vmax.f32 %v3254, 0.0
      %v3271 = vmax.f32 %v3255, 0.0
      %v3272 = vmax.f32 %v3256, 0.0
      %v3273 = vmax.f32 %v3257, 0.0
      %v3274 = vmax.f32 %v3258, 0.0
      %v3275 = vmax.f32 %v3259, 0.0
      %v3276 = vmax.f32 %v3260, 0.0
      %v3277 = vmax.f32 %v3261, 0.0
      %v3278 = vmax.f32 %v3262, 0.0
      %v3279 = vld [vmem:[%s5] sm:$0xf]
      %v3280 = vld [vmem:[%s6] sm:$0x1]
      %v3282 = vlaneseq
      %v3283 = vshrl.u32 %v3282, 7
      %v3284 = vsub.s32 0, %v3283
      %v3285 = vrot.slane %v3280, %v3284
      %vm3287 = vcmask 31744
      %v3289 = vsel %vm3287, %v3263, 0
      %v3292 = vsel %vm3287, %v3264, 0
      %v3295 = vsel %vm3287, %v3265, 0
      %v3298 = vsel %vm3287, %v3266, 0
      %v3301 = vsel %vm3287, %v3267, 0
      %v3304 = vsel %vm3287, %v3268, 0
      %v3307 = vsel %vm3287, %v3269, 0
      %v3310 = vsel %vm3287, %v3270, 0
      %v3313 = vsel %vm3287, %v3271, 0
      %v3316 = vsel %vm3287, %v3272, 0
      %v3319 = vsel %vm3287, %v3273, 0
      %v3322 = vsel %vm3287, %v3274, 0
      %v3325 = vsel %vm3287, %v3275, 0
      %v3328 = vsel %vm3287, %v3276, 0
      %v3331 = vsel %vm3287, %v3277, 0
      %v3334 = vsel %vm3287, %v3278, 0
      %vm3336 = vcmask 1043456
      %v3338 = vsel %vm3336, %v3279, 0
      %3340 = vmatprep.subr.mxu0 0.0
      %3341 = vmatpush1.msra.mxu0 0.0
      %3342 = vmatprep.subr.mxu0 0.0
      %3343 = vmatpush1.msra.mxu0 0.0
      %3344 = vmatprep.subr.mxu0 0.0
      %3345 = vmatpush1.msra.mxu0 0.0
      %3346 = vmatprep.subr.mxu0 0.0
      %3347 = vmatpush1.msra.mxu0 0.0
      %3348 = vmatprep.subr.mxu0 0.0
      %3349 = vmatpush1.msra.mxu0 0.0
      %3350 = vmatprep.subr.mxu0 0.0
      %3351 = vmatpush1.msra.mxu0 0.0
      %3352 = vmatprep.subr.mxu0 0.0
      %3353 = vmatpush1.msra.mxu0 0.0
      %3354 = vmatprep.subr.mxu0 0.0
      %3355 = vmatpush1.msra.mxu0 0.0
      %3356 = vmatprep.subr.mxu0 0.0
      %3357 = vmatpush1.msra.mxu0 0.0
      %3358 = vmatprep.subr.mxu0 0.0
      %3359 = vmatpush1.msra.mxu0 0.0
      %3360 = vmatprep.subr.mxu0 0.0
      %3361 = vmatpush1.msra.mxu0 0.0
      %3362 = vmatprep.subr.mxu0 0.0
      %3363 = vmatpush1.msra.mxu0 0.0
      %3364 = vmatprep.subr.mxu0 0.0
      %3365 = vmatpush1.msra.mxu0 0.0
      %3366 = vmatprep.subr.mxu0 0.0
      %3367 = vmatpush1.msra.mxu0 0.0
      %3368 = vmatprep.subr.mxu0 0.0
      %3369 = vmatpush1.msra.mxu0 0.0
      %3370 = vmatprep.subr.mxu0 0.0
      %3371 = vmatpush1.msra.mxu0 %v3338
      %3372 = vmatprep.subr.mxu0 0.0
      %3373 = vmatpush2.msra.mxu0 0.0
      %3374 = vmatprep.subr.mxu0 0.0
      %3375 = vmatpush2.msra.mxu0 0.0
      %3376 = vmatprep.subr.mxu0 0.0
      %3377 = vmatpush2.msra.mxu0 0.0
      %3378 = vmatprep.subr.mxu0 0.0
      %3379 = vmatpush2.msra.mxu0 0.0
      %3380 = vmatprep.subr.mxu0 0.0
      %3381 = vmatpush2.msra.mxu0 0.0
      %3382 = vmatprep.subr.mxu0 0.0
      %3383 = vmatpush2.msra.mxu0 0.0
      %3384 = vmatprep.subr.mxu0 0.0
      %3385 = vmatpush2.msra.mxu0 0.0
      %3386 = vmatprep.subr.mxu0 0.0
      %3387 = vmatpush2.msra.mxu0 0.0
      %3388 = vmatprep.subr.mxu0 0.0
      %3389 = vmatpush2.msra.mxu0 0.0
      %3390 = vmatprep.subr.mxu0 0.0
      %3391 = vmatpush2.msra.mxu0 0.0
      %3392 = vmatprep.subr.mxu0 0.0
      %3393 = vmatpush2.msra.mxu0 0.0
      %3394 = vmatprep.subr.mxu0 0.0
      %3395 = vmatpush2.msra.mxu0 0.0
      %3396 = vmatprep.subr.mxu0 0.0
      %3397 = vmatpush2.msra.mxu0 0.0
      %3398 = vmatprep.subr.mxu0 0.0
      %3399 = vmatpush2.msra.mxu0 0.0
      %3400 = vmatprep.subr.mxu0 0.0
      %3401 = vmatpush2.msra.mxu0 0.0
      %3402 = vmatprep.subr.mxu0 0.0
      %3403 = vmatpush2.msra.mxu0 0.0
      %3404 = vmatprep.mubr.f32.mxu0 0.0
      %3405 = vmatmul.mubr.f32.gmra.mxu0 %v3289
      %v3406 = vpop.f32.mrf.mxu0
      %v3407 = vadd.f32 %v3285, %v3406
      %v3408 = vpop.f32.mrf.mxu0
      %3409 = vmatprep.mubr.f32.mxu0 0.0
      %3410 = vmatmul.mubr.f32.gmra.mxu0 %v3292
      %v3411 = vpop.f32.mrf.mxu0
      %v3412 = vadd.f32 %v3285, %v3411
      %v3413 = vpop.f32.mrf.mxu0
      %3414 = vmatprep.mubr.f32.mxu0 0.0
      %3415 = vmatmul.mubr.f32.gmra.mxu0 %v3295
      %v3416 = vpop.f32.mrf.mxu0
      %v3417 = vadd.f32 %v3285, %v3416
      %v3418 = vpop.f32.mrf.mxu0
      %3419 = vmatprep.mubr.f32.mxu0 0.0
      %3420 = vmatmul.mubr.f32.gmra.mxu0 %v3298
      %v3421 = vpop.f32.mrf.mxu0
      %v3422 = vadd.f32 %v3285, %v3421
      %v3423 = vpop.f32.mrf.mxu0
      %3424 = vmatprep.mubr.f32.mxu0 0.0
      %3425 = vmatmul.mubr.f32.gmra.mxu0 %v3301
      %v3426 = vpop.f32.mrf.mxu0
      %v3427 = vadd.f32 %v3285, %v3426
      %v3428 = vpop.f32.mrf.mxu0
      %3429 = vmatprep.mubr.f32.mxu0 0.0
      %3430 = vmatmul.mubr.f32.gmra.mxu0 %v3304
      %v3431 = vpop.f32.mrf.mxu0
      %v3432 = vadd.f32 %v3285, %v3431
      %v3433 = vpop.f32.mrf.mxu0
      %3434 = vmatprep.mubr.f32.mxu0 0.0
      %3435 = vmatmul.mubr.f32.gmra.mxu0 %v3307
      %v3436 = vpop.f32.mrf.mxu0
      %v3437 = vadd.f32 %v3285, %v3436
      %v3438 = vpop.f32.mrf.mxu0
      %3439 = vmatprep.mubr.f32.mxu0 0.0
      %3440 = vmatmul.mubr.f32.gmra.mxu0 %v3310
      %v3441 = vpop.f32.mrf.mxu0
      %v3442 = vadd.f32 %v3285, %v3441
      %v3443 = vpop.f32.mrf.mxu0
      %3444 = vmatprep.mubr.f32.mxu0 0.0
      %3445 = vmatmul.mubr.f32.gmra.mxu0 %v3313
      %v3446 = vpop.f32.mrf.mxu0
      %v3447 = vadd.f32 %v3285, %v3446
      %v3448 = vpop.f32.mrf.mxu0
      %3449 = vmatprep.mubr.f32.mxu0 0.0
      %3450 = vmatmul.mubr.f32.gmra.mxu0 %v3316
      %v3451 = vpop.f32.mrf.mxu0
      %v3452 = vadd.f32 %v3285, %v3451
      %v3453 = vpop.f32.mrf.mxu0
      %3454 = vmatprep.mubr.f32.mxu0 0.0
      %3455 = vmatmul.mubr.f32.gmra.mxu0 %v3319
      %v3456 = vpop.f32.mrf.mxu0
      %v3457 = vadd.f32 %v3285, %v3456
      %v3458 = vpop.f32.mrf.mxu0
      %3459 = vmatprep.mubr.f32.mxu0 0.0
      %3460 = vmatmul.mubr.f32.gmra.mxu0 %v3322
      %v3461 = vpop.f32.mrf.mxu0
      %v3462 = vadd.f32 %v3285, %v3461
      %v3463 = vpop.f32.mrf.mxu0
      %3464 = vmatprep.mubr.f32.mxu0 0.0
      %3465 = vmatmul.mubr.f32.gmra.mxu0 %v3325
      %v3466 = vpop.f32.mrf.mxu0
      %v3467 = vadd.f32 %v3285, %v3466
      %v3468 = vpop.f32.mrf.mxu0
      %3469 = vmatprep.mubr.f32.mxu0 0.0
      %3470 = vmatmul.mubr.f32.gmra.mxu0 %v3328
      %v3471 = vpop.f32.mrf.mxu0
      %v3472 = vadd.f32 %v3285, %v3471
      %v3473 = vpop.f32.mrf.mxu0
      %3474 = vmatprep.mubr.f32.mxu0 0.0
      %3475 = vmatmul.mubr.f32.gmra.mxu0 %v3331
      %v3476 = vpop.f32.mrf.mxu0
      %v3477 = vadd.f32 %v3285, %v3476
      %v3478 = vpop.f32.mrf.mxu0
      %3479 = vmatprep.mubr.f32.mxu0 0.0
      %3480 = vmatmul.mubr.f32.gmra.mxu0 %v3334
      %v3481 = vpop.f32.mrf.mxu0
      %v3482 = vadd.f32 %v3285, %v3481
      %v3483 = vpop.f32.mrf.mxu0
      %3484 = vdwg.mxu0
      %3485 = vst.msk [vmem:[%s387] sm:$0xff] %vm3287, %v3407
      %3486 = vst.msk [vmem:[%s387 + $0x8] sm:$0xff] %vm3287, %v3412
      %3487 = vst.msk [vmem:[%s387 + $0x10] sm:$0xff] %vm3287, %v3417
      %3488 = vst.msk [vmem:[%s387 + $0x18] sm:$0xff] %vm3287, %v3422
      %3489 = vst.msk [vmem:[%s387 + $0x20] sm:$0xff] %vm3287, %v3427
      %3490 = vst.msk [vmem:[%s387 + $0x28] sm:$0xff] %vm3287, %v3432
      %3491 = vst.msk [vmem:[%s387 + $0x30] sm:$0xff] %vm3287, %v3437
      %3492 = vst.msk [vmem:[%s387 + $0x38] sm:$0xff] %vm3287, %v3442
      %3493 = vst.msk [vmem:[%s387 + $0x40] sm:$0xff] %vm3287, %v3447
      %3494 = vst.msk [vmem:[%s387 + $0x48] sm:$0xff] %vm3287, %v3452
      %3495 = vst.msk [vmem:[%s387 + $0x50] sm:$0xff] %vm3287, %v3457
      %3496 = vst.msk [vmem:[%s387 + $0x58] sm:$0xff] %vm3287, %v3462
      %3497 = vst.msk [vmem:[%s387 + $0x60] sm:$0xff] %vm3287, %v3467
      %3498 = vst.msk [vmem:[%s387 + $0x68] sm:$0xff] %vm3287, %v3472
      %3499 = vst.msk [vmem:[%s387 + $0x70] sm:$0xff] %vm3287, %v3477
      %3500 = vst.msk [vmem:[%s387 + $0x78] sm:$0xff] %vm3287, %v3482
      %p3501 = scmp.lt.s32.totalorder %s22, 1
      %s3502 = scalar_select %p3501, %s22, 1
      %p3503 = scmp.lt.s32.totalorder %s23, 1
      %s3504 = scalar_select %p3503, %s23, 1
      %s3505 = smul.addr %s3504, 16
      %s3506 = smul.addr %s3502, 32
      %s3507 = sadd.s32 %s3505, %s3506
      %s3508 = smul.addr %s3507, 8
      %s3509 = scalar_lea.vmem %s7, %s3508
      // Predicated region
      $region49: #{fcn_head_forward.1} parent=47 // pred_check
        %p3510 = pneg %p218
      $region50: #{fcn_head_forward.1} parent=47 // pred_check_branch
        %3512 = sbr.rel (%p3510) target = $region52
      $region51: #{fcn_head_forward.1} parent=47 // pred_region
        _
      $region52: #{fcn_head_forward.1} parent=47 // pred_fallthru
        _
    $region48: #{fcn_head_forward.1} parent=5 // pred_fallthru
      _
    %p3513 = scmp.le.s32.totalorder 2, %s13
    // Predicated region
    $region53: #{fcn_head_forward.1} parent=5 // pred_check
      %p3514 = pneg %p3513
    $region54: #{fcn_head_forward.1} parent=5 // pred_check_branch
      %3516 = sbr.rel (%p3514) target = $region56
    $region55: #{fcn_head_forward.1} parent=5 // pred_region
      %s3517 = ssub.s32 %s13, 2
      // Predicated region
      $region57: #{fcn_head_forward.1} parent=55 // pred_check
        %p3518 = pneg %p224
      $region58: #{fcn_head_forward.1} parent=55 // pred_check_branch
        %3520 = sbr.rel (%p3518) target = $region60
      $region59: #{fcn_head_forward.1} parent=55 // pred_region
        %p3521 = scmp.lt.s32.totalorder %s24, 1
        %s3522 = scalar_select %p3521, %s24, 1
        %p3523 = scmp.lt.s32.totalorder %s25, 1
        %s3524 = scalar_select %p3523, %s25, 1
        %s3525 = smul.addr %s3524, 16
        %s3526 = smul.addr %s3522, 32
        %s3527 = sadd.s32 %s3525, %s3526
        %s3528 = smul.addr %s3527, 8
        %s3529 = scalar_lea.vmem %s7, %s3528
      $region60: #{fcn_head_forward.1} parent=55 // pred_fallthru
        _
    $region56: #{fcn_head_forward.1} parent=5 // pred_fallthru
      _
  $region6: #{fcn_head_forward.1} parent=0 // loop_footer
    %s17 = sadd.s32 1, %s13
  $region7: #{fcn_head_forward.1} parent=0 // loop_footer_branch
    %12 = sbr.rel target = $region3
  $region8: #{fcn_head_forward.1} parent=0 // loop_exit
    _

</llo_original>
